<compile_context>
chip_gen: v7x
topology: tpu7x:2x2x1
jax: 0.10.0
libtpu: 0.0.40
codegen_flags: <defaults>
</compile_context>

<pallas_src>
import functools
import math

import jax
import jax.numpy as jnp
from jax.experimental import pallas as pl
from jax.experimental.pallas import tpu as pltpu

LANE = 128


def _round_up(x, m):
    return (x + m - 1) // m * m


def _pad2(a, rows, cols):
    r, c = a.shape
    return jnp.pad(a, ((0, rows - r), (0, cols - c)))


def _fused_sage_kernel(a_ref, x_ref, inv_ref,
                       wl1_ref, wr1_ref, b1_ref,
                       wl2_ref, wr2_ref, b2_ref,
                       o_ref, h1_ref, acc_ref, *, tile_m, tile_k):
    layer = pl.program_id(0)   # 0: conv1 (+relu) -> h1 scratch ; 1: conv2 -> out
    i = pl.program_id(1)       # output-row tile
    k = pl.program_id(2)       # reduction tile over adjacency columns
    nk = pl.num_programs(2)

    @pl.when(k == 0)
    def _():
        acc_ref[...] = jnp.zeros_like(acc_ref)

    # int8 edge counts -> bf16 (exact for counts <= 256) for the MXU.
    a = a_ref[...].astype(jnp.bfloat16)            # (tile_m, tile_k)
    kk = pl.multiple_of(k * tile_k, tile_k)

    # --- aggregation partial sums: counts @ features ------------------------
    @pl.when(layer == 0)
    def _():
        acc_ref[...] += jnp.dot(a, x_ref[pl.ds(kk, tile_k), :],
                                preferred_element_type=jnp.float32)

    @pl.when(layer == 1)
    def _():
        acc_ref[...] += jnp.dot(a, h1_ref[pl.ds(kk, tile_k), :],
                                preferred_element_type=jnp.float32)

    # --- finalize (last k step): 1/deg scale, project, root + bias, store ---
    @pl.when(jnp.logical_and(layer == 0, k == nk - 1))
    def _():
        rows = pl.multiple_of(i * tile_m, tile_m)
        agg = (acc_ref[...] * inv_ref[...]).astype(jnp.bfloat16)
        pre = (jnp.dot(agg, wl1_ref[...], preferred_element_type=jnp.float32)
               + jnp.dot(x_ref[pl.ds(rows, tile_m), :], wr1_ref[...],
                         preferred_element_type=jnp.float32)
               + b1_ref[...])
        h1_ref[pl.ds(rows, tile_m), :] = jnp.maximum(pre, 0.0).astype(h1_ref.dtype)

    @pl.when(jnp.logical_and(layer == 1, k == nk - 1))
    def _():
        rows = pl.multiple_of(i * tile_m, tile_m)
        agg = (acc_ref[...] * inv_ref[...]).astype(jnp.bfloat16)
        out = (jnp.dot(agg, wl2_ref[...], preferred_element_type=jnp.float32)
               + jnp.dot(h1_ref[pl.ds(rows, tile_m), :], wr2_ref[...],
                         preferred_element_type=jnp.float32)
               + b2_ref[...])
        o_ref[...] = out.astype(o_ref.dtype)


def build_adjacency_counts(edge_index, num_nodes):
    """Dense edge-count matrix and in-degrees: counts[i, j] = #edges j->i."""
    src = edge_index[0]
    dst = edge_index[1]
    counts = jnp.zeros((num_nodes, num_nodes), jnp.float32).at[dst, src].add(1.0)
    deg = jnp.sum(counts, axis=1, keepdims=True)
    return counts, deg


def gnn_encoder_forward(x, edge_index, params, *, tile_m=256, tile_k=512):
    """GNNEncoder.forward: relu(conv1(x, ei)) -> conv2(., ei), fused kernel."""
    N, F = x.shape
    H = params["w_l1"].shape[1]
    C = _round_up(max(F, H), LANE)            # shared lane-padded feature width

    # Clamp tiles to the 128-padded node count (no point over-tiling small N),
    # then pad the node axis so both tile sizes divide it.
    n128 = _round_up(N, LANE)
    tile_m = min(tile_m, n128)
    tile_k = min(tile_k, n128)
    Np = _round_up(N, math.lcm(tile_m, tile_k))
    assert Np % tile_m == 0 and Np % tile_k == 0

    # Glue (plain JAX): dense edge counts (int8) + per-row 1/deg + padding.
    counts, deg = build_adjacency_counts(edge_index, N)
    a_p = _pad2(jnp.minimum(counts, 127.0), Np, Np).astype(jnp.int8)
    inv_p = _pad2((1.0 / jnp.maximum(deg, 1.0)).astype(jnp.float32), Np, 1)
    x_p = _pad2(x, Np, C).astype(jnp.bfloat16)
    wl1 = _pad2(params["w_l1"], C, C).astype(jnp.bfloat16)
    wr1 = _pad2(params["w_r1"], C, C).astype(jnp.bfloat16)
    b1 = _pad2(params["b1"], 1, C)
    wl2 = _pad2(params["w_l2"], C, C).astype(jnp.bfloat16)
    wr2 = _pad2(params["w_r2"], C, C).astype(jnp.bfloat16)
    b2 = _pad2(params["b2"], 1, C)

    ni, nk = Np // tile_m, Np // tile_k
    kernel = functools.partial(_fused_sage_kernel, tile_m=tile_m, tile_k=tile_k)

    cost = pl.CostEstimate(
        flops=int(4 * Np * Np * C + 8 * Np * C * C),
        transcendentals=0,
        bytes_accessed=int(2 * Np * Np            # int8 A, read once per layer
                           + Np * C * 2           # resident X (bf16)
                           + 4 * C * C * 2        # bf16 weights
                           + Np * C * 4           # f32 output
                           + 2 * Np * 4),         # inv_deg
    )

    # VMEM budget (double-buffered inputs/outputs + scratch), capped for v7x.
    vmem_need = (2 * tile_m * tile_k              # A tile (int8), 2 buffers
                 + 2 * Np * C * 2                 # resident X, 2 buffers
                 + Np * C * 2                     # h1 scratch
                 + 2 * tile_m * C * 4             # out tile, 2 buffers
                 + tile_m * C * 4                 # accumulator
                 + 2 * (4 * C * C * 2 + 2 * C * 4 + tile_m * 4))
    vmem_limit = int(min(max(32 << 20, 2 * vmem_need), 48 << 20))

    out_p = pl.pallas_call(
        kernel,
        out_shape=jax.ShapeDtypeStruct((Np, C), jnp.float32),
        grid=(2, ni, nk),
        in_specs=[
            # Adjacency counts, streamed in (tile_m, tile_k) int8 blocks.
            pl.BlockSpec((tile_m, tile_k), lambda l, i, k: (i, k)),
            # X: single resident block, indexed with pl.ds inside the kernel.
            pl.BlockSpec((Np, C), lambda l, i, k: (0, 0)),
            # Per-row 1/deg for the finalize scale.
            pl.BlockSpec((tile_m, 1), lambda l, i, k: (i, 0)),
            # Weights / biases: constant index maps -> fetched once, resident.
            pl.BlockSpec((C, C), lambda l, i, k: (0, 0)),   # W_l1
            pl.BlockSpec((C, C), lambda l, i, k: (0, 0)),   # W_r1
            pl.BlockSpec((1, C), lambda l, i, k: (0, 0)),   # b1
            pl.BlockSpec((C, C), lambda l, i, k: (0, 0)),   # W_l2
            pl.BlockSpec((C, C), lambda l, i, k: (0, 0)),   # W_r2
            pl.BlockSpec((1, C), lambda l, i, k: (0, 0)),   # b2
        ],
        # Layer 0 never writes/cycles the output block; layer 1 writes every
        # block exactly once in its finalize step.
        out_specs=pl.BlockSpec((tile_m, C), lambda l, i, k: (i * l, 0)),
        scratch_shapes=[
            pltpu.VMEM((Np, C), jnp.bfloat16),     # h1 (layer-1 activations)
            pltpu.VMEM((tile_m, C), jnp.float32),  # aggregation accumulator
        ],
        compiler_params=pltpu.CompilerParams(
            # layer axis: phase 1 depends on ALL of phase 0 (h1 scratch);
            # row axis: shares the h1 scratch -> cannot be megacore-parallel;
            # k axis: reduction into the accumulator.
            dimension_semantics=("arbitrary", "arbitrary", "arbitrary"),
            vmem_limit_bytes=vmem_limit,
        ),
        cost_estimate=cost,
    )(a_p, x_p, inv_p, wl1, wr1, b1, wl2, wr2, b2)

    return out_p[:N, :H]


def gnn_encoder_reference(x, edge_index, params):
    """Pure-JAX f32 reference (highest matmul precision)."""
    counts, deg = build_adjacency_counts(edge_index, x.shape[0])
    a = counts / jnp.maximum(deg, 1.0)
    hp = jax.lax.Precision.HIGHEST

    def layer(h, wl, wr, b):
        agg = jnp.dot(a, h, precision=hp)
        return jnp.dot(agg, wl, precision=hp) + jnp.dot(h, wr, precision=hp) + b

    h1 = jnp.maximum(layer(x, params["w_l1"], params["w_r1"], params["b1"]), 0.0)
    return layer(h1, params["w_l2"], params["w_r2"], params["b2"])


def init_params(key, in_features, hidden):
    """Deterministic glorot-uniform init (shapes match SAGEConv lin_l/lin_r)."""
    def glorot(k, fan_in, fan_out):
        limit = jnp.sqrt(6.0 / (fan_in + fan_out))
        return jax.random.uniform(
            k, (fan_in, fan_out), jnp.float32, minval=-limit, maxval=limit
        )

    k1, k2, k3, k4, k5, k6 = jax.random.split(key, 6)
    return {
        # conv1: in_features -> hidden
        "w_l1": glorot(k1, in_features, hidden),
        "w_r1": glorot(k2, in_features, hidden),
        "b1": 0.1 * jax.random.normal(k5, (1, hidden), jnp.float32),
        # conv2: hidden -> hidden
        "w_l2": glorot(k3, hidden, hidden),
        "w_r2": glorot(k4, hidden, hidden),
        "b2": 0.1 * jax.random.normal(k6, (1, hidden), jnp.float32),
    }


if __name__ == "__main__":
    N = 200       # number of nodes (pads to 256 with clamped tiles)
    F_IN = 16     # input feature dim
    HIDDEN = 32   # hidden_channels
    E = 800       # number of edges

    root = jax.random.PRNGKey(0)
    k_x, k_src, k_dst, k_params = jax.random.split(root, 4)

    x = jax.random.normal(k_x, (N, F_IN), jnp.float32)
    src = jax.random.randint(k_src, (E,), 0, N, dtype=jnp.int32)
    dst = jax.random.randint(k_dst, (E,), 0, N, dtype=jnp.int32)
    edge_index = jnp.stack([src, dst], axis=0)  # [2, E]

    params = init_params(k_params, F_IN, HIDDEN)

    out = gnn_encoder_forward(x, edge_index, params)
    out = jax.block_until_ready(out)

    ref = gnn_encoder_reference(x, edge_index, params)
    assert out.shape == (N, HIDDEN)
    # Tolerances sized for bf16 MXU operands (f32 accumulation, exact int8
    # counts, f32 1/deg); a structural bug gives O(1) error.
    rel_l2 = float(jnp.linalg.norm(out - ref) / jnp.linalg.norm(ref))
    assert rel_l2 < 5e-2, f"relative L2 error too large: {rel_l2}"
    assert jnp.allclose(out, ref, atol=1e-1, rtol=1e-1), "mismatch vs reference"

    print("KERNEL_OK")
</pallas_src>

<mosaic_0001>
module attributes {stable_mosaic.version = 11 : i64} {
  func.func @_fused_sage_kernel(%arg0: i32, %arg1: i32, %arg2: i32, %arg3: memref<256x256xi8, #tpu.memory_space<vmem>>, %arg4: memref<256x128xbf16, #tpu.memory_space<vmem>>, %arg5: memref<256x1xf32, #tpu.memory_space<vmem>>, %arg6: memref<128x128xbf16, #tpu.memory_space<vmem>>, %arg7: memref<128x128xbf16, #tpu.memory_space<vmem>>, %arg8: memref<1x128xf32, #tpu.memory_space<vmem>>, %arg9: memref<128x128xbf16, #tpu.memory_space<vmem>>, %arg10: memref<128x128xbf16, #tpu.memory_space<vmem>>, %arg11: memref<1x128xf32, #tpu.memory_space<vmem>>, %arg12: memref<256x128xf32, #tpu.memory_space<vmem>>, %arg13: memref<256x128xbf16, #tpu.memory_space<vmem>>, %arg14: memref<256x128xf32, #tpu.memory_space<vmem>>) attributes {dimension_semantics = [#tpu.dimension_semantics<arbitrary>, #tpu.dimension_semantics<arbitrary>, #tpu.dimension_semantics<arbitrary>], iteration_bounds = array<i64: 2, 1, 1>, scalar_prefetch = 0 : i64, scratch_operands = 2 : i64, tpu.core_type = #tpu.core_type<tc>, window_params = [{transform_indices = @transform_0, window_bounds = array<i64: 256, 256>}, {pipeline_mode = #tpu.pipeline_mode<synchronous>, transform_indices = @transform_1, window_bounds = array<i64: 256, 128>}, {transform_indices = @transform_2, window_bounds = array<i64: 256, 1>}, {pipeline_mode = #tpu.pipeline_mode<synchronous>, transform_indices = @transform_3, window_bounds = array<i64: 128, 128>}, {pipeline_mode = #tpu.pipeline_mode<synchronous>, transform_indices = @transform_4, window_bounds = array<i64: 128, 128>}, {pipeline_mode = #tpu.pipeline_mode<synchronous>, transform_indices = @transform_5, window_bounds = array<i64: 1, 128>}, {pipeline_mode = #tpu.pipeline_mode<synchronous>, transform_indices = @transform_6, window_bounds = array<i64: 128, 128>}, {pipeline_mode = #tpu.pipeline_mode<synchronous>, transform_indices = @transform_7, window_bounds = array<i64: 128, 128>}, {pipeline_mode = #tpu.pipeline_mode<synchronous>, transform_indices = @transform_8, window_bounds = array<i64: 1, 128>}, {transform_indices = @transform_9, window_bounds = array<i64: 256, 128>}]} {
    %c0_i32 = arith.constant 0 : i32
    %0 = arith.cmpi eq, %arg2, %c0_i32 : i32
    %1 = arith.extui %0 : i1 to i32
    %c0_i32_0 = arith.constant 0 : i32
    %2 = arith.cmpi ne, %1, %c0_i32_0 : i32
    scf.if %2 {
      %cst = arith.constant 0.000000e+00 : f32
      %23 = vector.broadcast %cst : f32 to vector<256x128xf32>
      %c0_11 = arith.constant 0 : index
      %c0_12 = arith.constant 0 : index
      %24 = vector.load %arg14[%c0_11, %c0_12] : memref<256x128xf32, #tpu.memory_space<vmem>>, vector<256x128xf32>
      tpu.vector_store %arg14[%c0_11, %c0_12], %23 {strides = array<i32>} : memref<256x128xf32, #tpu.memory_space<vmem>>, vector<256x128xf32>,
    } else {
    }
    %c0 = arith.constant 0 : index
    %c0_1 = arith.constant 0 : index
    %3 = vector.load %arg3[%c0, %c0_1] : memref<256x256xi8, #tpu.memory_space<vmem>>, vector<256x256xi8>
    %4 = arith.sitofp %3 : vector<256x256xi8> to vector<256x256xbf16>
    %c256_i32 = arith.constant 256 : i32
    %5 = arith.muli %arg2, %c256_i32 : i32
    %6 = tpu.assume_multiple %5, 256 : i32
    %c0_i32_2 = arith.constant 0 : i32
    %7 = arith.cmpi eq, %arg0, %c0_i32_2 : i32
    %8 = arith.extui %7 : i1 to i32
    %c0_i32_3 = arith.constant 0 : i32
    %9 = arith.cmpi ne, %8, %c0_i32_3 : i32
    scf.if %9 {
      %c0_11 = arith.constant 0 : index
      %c0_12 = arith.constant 0 : index
      %23 = vector.load %arg14[%c0_11, %c0_12] : memref<256x128xf32, #tpu.memory_space<vmem>>, vector<256x128xf32>
      %24 = arith.index_cast %6 : i32 to index
      %c0_13 = arith.constant 0 : index
      %25 = vector.load %arg4[%24, %c0_13] : memref<256x128xbf16, #tpu.memory_space<vmem>>, vector<256x128xbf16>
      %cst = arith.constant dense<0.000000e+00> : vector<256x128xf32>
      %26 = tpu.matmul %4, %25, %cst {dimension_numbers = #tpu.dot_dimension_numbers<[1], [0], [0], [1], [0, 0, 1, 1], [], []>} : vector<256x256xbf16>, vector<256x128xbf16>, vector<256x128xf32> -> vector<256x128xf32>
      %27 = arith.addf %23, %26 : vector<256x128xf32>
      %c0_14 = arith.constant 0 : index
      %c0_15 = arith.constant 0 : index
      %28 = vector.load %arg14[%c0_14, %c0_15] : memref<256x128xf32, #tpu.memory_space<vmem>>, vector<256x128xf32>
      tpu.vector_store %arg14[%c0_14, %c0_15], %27 {strides = array<i32>} : memref<256x128xf32, #tpu.memory_space<vmem>>, vector<256x128xf32>,
    } else {
    }
    %c1_i32 = arith.constant 1 : i32
    %10 = arith.cmpi eq, %arg0, %c1_i32 : i32
    %11 = arith.extui %10 : i1 to i32
    %c0_i32_4 = arith.constant 0 : i32
    %12 = arith.cmpi ne, %11, %c0_i32_4 : i32
    scf.if %12 {
      %c0_11 = arith.constant 0 : index
      %c0_12 = arith.constant 0 : index
      %23 = vector.load %arg14[%c0_11, %c0_12] : memref<256x128xf32, #tpu.memory_space<vmem>>, vector<256x128xf32>
      %24 = arith.index_cast %6 : i32 to index
      %c0_13 = arith.constant 0 : index
      %25 = vector.load %arg13[%24, %c0_13] : memref<256x128xbf16, #tpu.memory_space<vmem>>, vector<256x128xbf16>
      %cst = arith.constant dense<0.000000e+00> : vector<256x128xf32>
      %26 = tpu.matmul %4, %25, %cst {dimension_numbers = #tpu.dot_dimension_numbers<[1], [0], [0], [1], [0, 0, 1, 1], [], []>} : vector<256x256xbf16>, vector<256x128xbf16>, vector<256x128xf32> -> vector<256x128xf32>
      %27 = arith.addf %23, %26 : vector<256x128xf32>
      %c0_14 = arith.constant 0 : index
      %c0_15 = arith.constant 0 : index
      %28 = vector.load %arg14[%c0_14, %c0_15] : memref<256x128xf32, #tpu.memory_space<vmem>>, vector<256x128xf32>
      tpu.vector_store %arg14[%c0_14, %c0_15], %27 {strides = array<i32>} : memref<256x128xf32, #tpu.memory_space<vmem>>, vector<256x128xf32>,
    } else {
    }
    %c0_i32_5 = arith.constant 0 : i32
    %13 = arith.cmpi eq, %arg0, %c0_i32_5 : i32
    %c0_i32_6 = arith.constant 0 : i32
    %14 = arith.cmpi eq, %arg2, %c0_i32_6 : i32
    %15 = arith.andi %13, %14 : i1
    %16 = arith.extui %15 : i1 to i32
    %c0_i32_7 = arith.constant 0 : i32
    %17 = arith.cmpi ne, %16, %c0_i32_7 : i32
    scf.if %17 {
      %c256_i32_11 = arith.constant 256 : i32
      %23 = arith.muli %arg1, %c256_i32_11 : i32
      %24 = tpu.assume_multiple %23, 256 : i32
      %c0_12 = arith.constant 0 : index
      %c0_13 = arith.constant 0 : index
      %25 = vector.load %arg14[%c0_12, %c0_13] : memref<256x128xf32, #tpu.memory_space<vmem>>, vector<256x128xf32>
      %c0_14 = arith.constant 0 : index
      %c0_15 = arith.constant 0 : index
      %26 = vector.load %arg5[%c0_14, %c0_15] : memref<256x1xf32, #tpu.memory_space<vmem>>, vector<256x1xf32>
      %27 = vector.broadcast %26 : vector<256x1xf32> to vector<256x128xf32>
      %28 = arith.mulf %25, %27 : vector<256x128xf32>
      %29 = arith.truncf %28 : vector<256x128xf32> to vector<256x128xbf16>
      %c0_16 = arith.constant 0 : index
      %c0_17 = arith.constant 0 : index
      %30 = vector.load %arg6[%c0_16, %c0_17] : memref<128x128xbf16, #tpu.memory_space<vmem>>, vector<128x128xbf16>
      %cst = arith.constant dense<0.000000e+00> : vector<256x128xf32>
      %31 = tpu.matmul %29, %30, %cst {dimension_numbers = #tpu.dot_dimension_numbers<[1], [0], [0], [1], [0, 0, 1, 1], [], []>} : vector<256x128xbf16>, vector<128x128xbf16>, vector<256x128xf32> -> vector<256x128xf32>
      %32 = arith.index_cast %24 : i32 to index
      %c0_18 = arith.constant 0 : index
      %33 = vector.load %arg4[%32, %c0_18] : memref<256x128xbf16, #tpu.memory_space<vmem>>, vector<256x128xbf16>
      %c0_19 = arith.constant 0 : index
      %c0_20 = arith.constant 0 : index
      %34 = vector.load %arg7[%c0_19, %c0_20] : memref<128x128xbf16, #tpu.memory_space<vmem>>, vector<128x128xbf16>
      %cst_21 = arith.constant dense<0.000000e+00> : vector<256x128xf32>
      %35 = tpu.matmul %33, %34, %cst_21 {dimension_numbers = #tpu.dot_dimension_numbers<[1], [0], [0], [1], [0, 0, 1, 1], [], []>} : vector<256x128xbf16>, vector<128x128xbf16>, vector<256x128xf32> -> vector<256x128xf32>
      %36 = arith.addf %31, %35 : vector<256x128xf32>
      %c0_22 = arith.constant 0 : index
      %c0_23 = arith.constant 0 : index
      %37 = vector.load %arg8[%c0_22, %c0_23] : memref<1x128xf32, #tpu.memory_space<vmem>>, vector<1x128xf32>
      %38 = vector.broadcast %37 : vector<1x128xf32> to vector<256x128xf32>
      %39 = arith.addf %36, %38 : vector<256x128xf32>
      %cst_24 = arith.constant 0.000000e+00 : f32
      %40 = vector.broadcast %cst_24 : f32 to vector<256x128xf32>
      %41 = arith.maximumf %39, %40 : vector<256x128xf32>
      %42 = arith.truncf %41 : vector<256x128xf32> to vector<256x128xbf16>
      %43 = arith.index_cast %24 : i32 to index
      %c0_25 = arith.constant 0 : index
      %44 = vector.load %arg13[%43, %c0_25] : memref<256x128xbf16, #tpu.memory_space<vmem>>, vector<256x128xbf16>
      tpu.vector_store %arg13[%43, %c0_25], %42 {strides = array<i32>} : memref<256x128xbf16, #tpu.memory_space<vmem>>, vector<256x128xbf16>,
    } else {
    }
    %c1_i32_8 = arith.constant 1 : i32
    %18 = arith.cmpi eq, %arg0, %c1_i32_8 : i32
    %c0_i32_9 = arith.constant 0 : i32
    %19 = arith.cmpi eq, %arg2, %c0_i32_9 : i32
    %20 = arith.andi %18, %19 : i1
    %21 = arith.extui %20 : i1 to i32
    %c0_i32_10 = arith.constant 0 : i32
    %22 = arith.cmpi ne, %21, %c0_i32_10 : i32
    scf.if %22 {
      %c256_i32_11 = arith.constant 256 : i32
      %23 = arith.muli %arg1, %c256_i32_11 : i32
      %24 = tpu.assume_multiple %23, 256 : i32
      %c0_12 = arith.constant 0 : index
      %c0_13 = arith.constant 0 : index
      %25 = vector.load %arg14[%c0_12, %c0_13] : memref<256x128xf32, #tpu.memory_space<vmem>>, vector<256x128xf32>
      %c0_14 = arith.constant 0 : index
      %c0_15 = arith.constant 0 : index
      %26 = vector.load %arg5[%c0_14, %c0_15] : memref<256x1xf32, #tpu.memory_space<vmem>>, vector<256x1xf32>
      %27 = vector.broadcast %26 : vector<256x1xf32> to vector<256x128xf32>
      %28 = arith.mulf %25, %27 : vector<256x128xf32>
      %29 = arith.truncf %28 : vector<256x128xf32> to vector<256x128xbf16>
      %c0_16 = arith.constant 0 : index
      %c0_17 = arith.constant 0 : index
      %30 = vector.load %arg9[%c0_16, %c0_17] : memref<128x128xbf16, #tpu.memory_space<vmem>>, vector<128x128xbf16>
      %cst = arith.constant dense<0.000000e+00> : vector<256x128xf32>
      %31 = tpu.matmul %29, %30, %cst {dimension_numbers = #tpu.dot_dimension_numbers<[1], [0], [0], [1], [0, 0, 1, 1], [], []>} : vector<256x128xbf16>, vector<128x128xbf16>, vector<256x128xf32> -> vector<256x128xf32>
      %32 = arith.index_cast %24 : i32 to index
      %c0_18 = arith.constant 0 : index
      %33 = vector.load %arg13[%32, %c0_18] : memref<256x128xbf16, #tpu.memory_space<vmem>>, vector<256x128xbf16>
      %c0_19 = arith.constant 0 : index
      %c0_20 = arith.constant 0 : index
      %34 = vector.load %arg10[%c0_19, %c0_20] : memref<128x128xbf16, #tpu.memory_space<vmem>>, vector<128x128xbf16>
      %cst_21 = arith.constant dense<0.000000e+00> : vector<256x128xf32>
      %35 = tpu.matmul %33, %34, %cst_21 {dimension_numbers = #tpu.dot_dimension_numbers<[1], [0], [0], [1], [0, 0, 1, 1], [], []>} : vector<256x128xbf16>, vector<128x128xbf16>, vector<256x128xf32> -> vector<256x128xf32>
      %36 = arith.addf %31, %35 : vector<256x128xf32>
      %c0_22 = arith.constant 0 : index
      %c0_23 = arith.constant 0 : index
      %37 = vector.load %arg11[%c0_22, %c0_23] : memref<1x128xf32, #tpu.memory_space<vmem>>, vector<1x128xf32>
      %38 = vector.broadcast %37 : vector<1x128xf32> to vector<256x128xf32>
      %39 = arith.addf %36, %38 : vector<256x128xf32>
      %c0_24 = arith.constant 0 : index
      %c0_25 = arith.constant 0 : index
      %40 = vector.load %arg12[%c0_24, %c0_25] : memref<256x128xf32, #tpu.memory_space<vmem>>, vector<256x128xf32>
      tpu.vector_store %arg12[%c0_24, %c0_25], %39 {strides = array<i32>} : memref<256x128xf32, #tpu.memory_space<vmem>>, vector<256x128xf32>,
    } else {
    }
    return
  }
  func.func @transform_0(%arg0: i32, %arg1: i32, %arg2: i32) -> (i32, i32) {
    %c0_i32 = arith.constant 0 : i32
    return %arg1, %arg2 : i32, i32
  }
  func.func @transform_1(%arg0: i32, %arg1: i32, %arg2: i32) -> (i32, i32) {
    %c0_i32 = arith.constant 0 : i32
    %c0_i32_0 = arith.constant 0 : i32
    %c0_i32_1 = arith.constant 0 : i32
    return %c0_i32, %c0_i32_0 : i32, i32
  }
  func.func @transform_2(%arg0: i32, %arg1: i32, %arg2: i32) -> (i32, i32) {
    %c0_i32 = arith.constant 0 : i32
    %c0_i32_0 = arith.constant 0 : i32
    return %arg1, %c0_i32 : i32, i32
  }
  func.func @transform_3(%arg0: i32, %arg1: i32, %arg2: i32) -> (i32, i32) {
    %c0_i32 = arith.constant 0 : i32
    %c0_i32_0 = arith.constant 0 : i32
    %c0_i32_1 = arith.constant 0 : i32
    return %c0_i32, %c0_i32_0 : i32, i32
  }
  func.func @transform_4(%arg0: i32, %arg1: i32, %arg2: i32) -> (i32, i32) {
    %c0_i32 = arith.constant 0 : i32
    %c0_i32_0 = arith.constant 0 : i32
    %c0_i32_1 = arith.constant 0 : i32
    return %c0_i32, %c0_i32_0 : i32, i32
  }
  func.func @transform_5(%arg0: i32, %arg1: i32, %arg2: i32) -> (i32, i32) {
    %c0_i32 = arith.constant 0 : i32
    %c0_i32_0 = arith.constant 0 : i32
    %c0_i32_1 = arith.constant 0 : i32
    return %c0_i32, %c0_i32_0 : i32, i32
  }
  func.func @transform_6(%arg0: i32, %arg1: i32, %arg2: i32) -> (i32, i32) {
    %c0_i32 = arith.constant 0 : i32
    %c0_i32_0 = arith.constant 0 : i32
    %c0_i32_1 = arith.constant 0 : i32
    return %c0_i32, %c0_i32_0 : i32, i32
  }
  func.func @transform_7(%arg0: i32, %arg1: i32, %arg2: i32) -> (i32, i32) {
    %c0_i32 = arith.constant 0 : i32
    %c0_i32_0 = arith.constant 0 : i32
    %c0_i32_1 = arith.constant 0 : i32
    return %c0_i32, %c0_i32_0 : i32, i32
  }
  func.func @transform_8(%arg0: i32, %arg1: i32, %arg2: i32) -> (i32, i32) {
    %c0_i32 = arith.constant 0 : i32
    %c0_i32_0 = arith.constant 0 : i32
    %c0_i32_1 = arith.constant 0 : i32
    return %c0_i32, %c0_i32_0 : i32, i32
  }
  func.func @transform_9(%arg0: i32, %arg1: i32, %arg2: i32) -> (i32, i32) {
    %0 = arith.muli %arg1, %arg0 : i32
    %c0_i32 = arith.constant 0 : i32
    %c0_i32_0 = arith.constant 0 : i32
    return %0, %c0_i32 : i32, i32
  }
}

</mosaic_0001>

<llo_original>
// kernel: tpu_custom_call.1
$region0: #{tpu_custom_call.1}
  #allocation0 [shape = 'u32[]', space=smem, size = 0x4, offset = 0x4, fixed_abs, tag = 'smem constant byte address 0x4 - core index']
  #allocation1 [shape = 'u32[144,128]{1,0:T(1,128)}', space=vmem, size = 0x12000, scoped, tag = 'internal scratch']
  #allocation2 [shape = 'bf16[256,128]{1,0:T(16,128)(2,1)}', space=vmem, size = 0x10000, scoped, tag = 'scratch operand']
  #allocation3 [shape = 'f32[256,128]{1,0:T(8,128)}', space=vmem, size = 0x20000, scoped, tag = 'scratch operand']
  %s0 = inlined_call_operand.vmem [shape: s8[256,256], index: 0, kind: input, shape index: {}]
  %s1 = inlined_call_operand.vmem [shape: bf16[256,128], index: 1, kind: input, shape index: {}]
  %s2 = inlined_call_operand.vmem [shape: f32[256,1], index: 2, kind: input, shape index: {}]
  %s3 = inlined_call_operand.hbm [shape: bf16[128,128], index: 3, kind: input, shape index: {}]
  %s4 = inlined_call_operand.hbm [shape: bf16[128,128], index: 4, kind: input, shape index: {}]
  %s5 = inlined_call_operand.vmem [shape: f32[1,128], index: 5, kind: input, shape index: {}]
  %s6 = inlined_call_operand.hbm [shape: bf16[128,128], index: 6, kind: input, shape index: {}]
  %s7 = inlined_call_operand.hbm [shape: bf16[128,128], index: 7, kind: input, shape index: {}]
  %s8 = inlined_call_operand.vmem [shape: f32[1,128], index: 8, kind: input, shape index: {}]
  %s9 = inlined_call_operand.hbm [shape: f32[256,128], index: 9, kind: output, shape index: {}]
  %s10 = sld [smem:[#allocation0]]
  $region105: #{tpu_custom_call.1} parent=0
    _
  %s12 = ssub.s32 1, %s10
  %s13 = scalar_select 0, %s12, %s10
  $region1: #{tpu_custom_call.1} parent=0
    #allocation4 [shape = 'u8[32768]{0}', space=vmem, size = 0x8000, scoped, tag = 'input window, operand 3, single buffered']
    #allocation5 [shape = 's32[2]{0}', space=sflag, size = 0x8, scoped, tag = 'scoped memory for tpu_custom_call.1']
    #allocation6 [shape = 's32[2]{0}', space=sflag, size = 0x8, scoped, tag = 'scoped memory for tpu_custom_call.1']
    #allocation7 [shape = 'u8[32768]{0}', space=vmem, size = 0x8000, scoped, tag = 'input window, operand 4, single buffered']
    #allocation8 [shape = 's32[1]{0}', space=sflag, size = 0x4, scoped, tag = 'scoped memory for tpu_custom_call.1']
    #allocation9 [shape = 'u8[32768]{0}', space=vmem, size = 0x8000, scoped, tag = 'input window, operand 6, single buffered']
    #allocation10 [shape = 'u8[32768]{0}', space=vmem, size = 0x8000, scoped, tag = 'input window, operand 7, single buffered']
    #allocation11 [shape = 's32[1]{0}', space=sflag, size = 0x4, scoped, tag = 'scoped memory for tpu_custom_call.1']
    #allocation12 [shape = 'u8[262144]{0}', space=vmem, size = 0x40000, scoped, tag = 'output window, operand 0']
    %14 = vsyncpa [#allocation5], 0
    %15 = vsyncpa [#allocation8], 0
    %16 = vsyncpa [#allocation11], 0
    %17 = vsyncpa [#allocation6], 0
    %s18 = scalar_lea.sflag [#allocation6], 1
    %19 = vsyncpa %s18, 0
    loop: start=0, step=1, limit=4
    $region2: #{tpu_custom_call.1} parent=1 // loop_pre_header
      _
    $region3: #{tpu_custom_call.1} parent=1 // loop_header
      %s21 = sphi 0, %s25
      %p22 = scmp.ge.s32.totalorder %s21, 4
      %s28 = sphi 0, %s47
      %s29 = sphi 0, %s43
      %s30 = sphi 0, %s39
      %s31 = sphi 0, %s28
      %s32 = sphi 0, %s29
      %s33 = sphi 0, %s30
      %s34 = sphi 0, %s31
      %s35 = sphi 0, %s32
      %s36 = sphi 0, %s33
      %s52 = sphi 0, %s54
      %s55 = sphi 0, %s52
      %s56 = sphi 0, %s55
      %s72 = sphi 0, %s56
      %s76 = sphi 0, %s76
      %s78 = sphi 0, %s76
      %s79 = sphi 0, %s78
      %s93 = sphi 0, %s79
      %s99 = sphi 0, %s101
      %s102 = sphi 0, %s99
      %s103 = sphi 0, %s102
      %s119 = sphi 0, %s103
      %s123 = sphi 0, %s123
      %s125 = sphi 0, %s123
      %s126 = sphi 0, %s125
      %s140 = sphi 0, %s126
      %s144 = sphi 0, %s144
      %s146 = sphi 0, %s144
      %s147 = sphi 0, %s146
      %s161 = sphi 0, %s147
      %s165 = sphi 0, %s165
      %s167 = sphi 0, %s165
      %s168 = sphi 0, %s167
      %s182 = sphi 0, %s168
      %s186 = sphi 0, %s186
      %s188 = sphi 0, %s186
      %s189 = sphi 0, %s188
      %s203 = sphi 0, %s189
      %s207 = sphi 0, %s207
      %s209 = sphi 0, %s207
      %s210 = sphi 0, %s209
      %s224 = sphi 0, %s210
      %s228 = sphi 0, %s228
      %s230 = sphi 0, %s228
      %s231 = sphi 0, %s230
      %s245 = sphi 0, %s231
      %s253 = sphi 0, %s255
      %s256 = sphi 0, %s253
      %s257 = sphi 0, %s256
      %s273 = sphi 0, %s257
    $region4: #{tpu_custom_call.1} parent=1 // loop_header_branch
      %24 = sbr.rel (%p22) target = $region8
    $region5: #{tpu_custom_call.1} parent=1 // loop_body
      %s26 = ssub.s32 %s21, 1
      %s27 = ssub.s32 %s21, 2
      %s37 = sadd.s32 1, %s30
      %p38 = scmp.ge.s32.totalorder %s37, 1
      %s39 = scalar_select %p38, 0, %s37
      %s40 = sadd.s32 1, %s29
      %s41 = scalar_select %p38, %s40, %s29
      %p42 = scmp.ge.s32.totalorder %s41, 1
      %s43 = scalar_select %p42, 0, %s41
      %s44 = sadd.s32 1, %s28
      %s45 = scalar_select %p42, %s44, %s28
      %p46 = scmp.ge.s32.totalorder %s45, 2
      %s47 = scalar_select %p46, 0, %s45
      %s48 = ssub.s32 %s29, %s43
      %s49 = ssub.s32 %s30, %s39
      %s50 = sor.u32 %s48, %s49
      %p51 = scmp.eq.s32.totalorder %s50, 0
      %s53 = sadd.s32 %s52, 1
      %s54 = scalar_select %p51, %s52, %s53
      %p57 = pneg %p51
      %p58 = scmp.eq.s32.totalorder %s21, 1
      %p59 = por %p57, %p58
      %p60 = scmp.ne.s32.totalorder %s52, %s55
      %p61 = scmp.eq.s32.totalorder %s21, 0
      %p62 = por %p60, %p61
      %p63 = scmp.ne.s32.totalorder %s52, %s55
      %p64 = scmp.eq.s32.totalorder %s26, 1
      %p65 = por %p63, %p64
      %p66 = scmp.ne.s32.totalorder %s55, %s56
      %p67 = scmp.eq.s32.totalorder %s26, 0
      %p68 = por %p66, %p67
      %p69 = scmp.ne.s32.totalorder %s55, %s56
      %p70 = scmp.eq.s32.totalorder %s27, 1
      %p71 = por %p69, %p70
      %p73 = scmp.ne.s32.totalorder %s56, %s72
      %p74 = scmp.eq.s32.totalorder %s27, 0
      %p75 = por %p73, %p74
      %s77 = sadd.s32 %s76, 1
      %p80 = scmp.eq.s32.totalorder %s21, 1
      %p81 = scmp.ne.s32.totalorder %s76, %s78
      %p82 = scmp.eq.s32.totalorder %s21, 0
      %p83 = por %p81, %p82
      %p84 = scmp.ne.s32.totalorder %s76, %s78
      %p85 = scmp.eq.s32.totalorder %s26, 1
      %p86 = por %p84, %p85
      %p87 = scmp.ne.s32.totalorder %s78, %s79
      %p88 = scmp.eq.s32.totalorder %s26, 0
      %p89 = por %p87, %p88
      %p90 = scmp.ne.s32.totalorder %s78, %s79
      %p91 = scmp.eq.s32.totalorder %s27, 1
      %p92 = por %p90, %p91
      %p94 = scmp.ne.s32.totalorder %s79, %s93
      %p95 = scmp.eq.s32.totalorder %s27, 0
      %p96 = por %p94, %p95
      %s97 = ssub.s32 %s29, %s43
      %p98 = scmp.eq.s32.totalorder %s97, 0
      %s100 = sadd.s32 %s99, 1
      %s101 = scalar_select %p98, %s99, %s100
      %p104 = pneg %p98
      %p105 = scmp.eq.s32.totalorder %s21, 1
      %p106 = por %p104, %p105
      %p107 = scmp.ne.s32.totalorder %s99, %s102
      %p108 = scmp.eq.s32.totalorder %s21, 0
      %p109 = por %p107, %p108
      %p110 = scmp.ne.s32.totalorder %s99, %s102
      %p111 = scmp.eq.s32.totalorder %s26, 1
      %p112 = por %p110, %p111
      %p113 = scmp.ne.s32.totalorder %s102, %s103
      %p114 = scmp.eq.s32.totalorder %s26, 0
      %p115 = por %p113, %p114
      %p116 = scmp.ne.s32.totalorder %s102, %s103
      %p117 = scmp.eq.s32.totalorder %s27, 1
      %p118 = por %p116, %p117
      %p120 = scmp.ne.s32.totalorder %s103, %s119
      %p121 = scmp.eq.s32.totalorder %s27, 0
      %p122 = por %p120, %p121
      %s124 = sadd.s32 %s123, 1
      %p127 = scmp.eq.s32.totalorder %s21, 1
      %p128 = scmp.ne.s32.totalorder %s123, %s125
      %p129 = scmp.eq.s32.totalorder %s21, 0
      %p130 = por %p128, %p129
      %p131 = scmp.ne.s32.totalorder %s123, %s125
      %p132 = scmp.eq.s32.totalorder %s26, 1
      %p133 = por %p131, %p132
      %p134 = scmp.ne.s32.totalorder %s125, %s126
      %p135 = scmp.eq.s32.totalorder %s26, 0
      %p136 = por %p134, %p135
      %p137 = scmp.ne.s32.totalorder %s125, %s126
      %p138 = scmp.eq.s32.totalorder %s27, 1
      %p139 = por %p137, %p138
      %p141 = scmp.ne.s32.totalorder %s126, %s140
      %p142 = scmp.eq.s32.totalorder %s27, 0
      %p143 = por %p141, %p142
      %s145 = sadd.s32 %s144, 1
      %p148 = scmp.eq.s32.totalorder %s21, 1
      %p149 = scmp.ne.s32.totalorder %s144, %s146
      %p150 = scmp.eq.s32.totalorder %s21, 0
      %p151 = por %p149, %p150
      %p152 = scmp.ne.s32.totalorder %s144, %s146
      %p153 = scmp.eq.s32.totalorder %s26, 1
      %p154 = por %p152, %p153
      %p155 = scmp.ne.s32.totalorder %s146, %s147
      %p156 = scmp.eq.s32.totalorder %s26, 0
      %p157 = por %p155, %p156
      %p158 = scmp.ne.s32.totalorder %s146, %s147
      %p159 = scmp.eq.s32.totalorder %s27, 1
      %p160 = por %p158, %p159
      %p162 = scmp.ne.s32.totalorder %s147, %s161
      %p163 = scmp.eq.s32.totalorder %s27, 0
      %p164 = por %p162, %p163
      %s166 = sadd.s32 %s165, 1
      %p169 = scmp.eq.s32.totalorder %s21, 1
      %p170 = scmp.ne.s32.totalorder %s165, %s167
      %p171 = scmp.eq.s32.totalorder %s21, 0
      %p172 = por %p170, %p171
      %p173 = scmp.ne.s32.totalorder %s165, %s167
      %p174 = scmp.eq.s32.totalorder %s26, 1
      %p175 = por %p173, %p174
      %p176 = scmp.ne.s32.totalorder %s167, %s168
      %p177 = scmp.eq.s32.totalorder %s26, 0
      %p178 = por %p176, %p177
      %p179 = scmp.ne.s32.totalorder %s167, %s168
      %p180 = scmp.eq.s32.totalorder %s27, 1
      %p181 = por %p179, %p180
      %p183 = scmp.ne.s32.totalorder %s168, %s182
      %p184 = scmp.eq.s32.totalorder %s27, 0
      %p185 = por %p183, %p184
      %s187 = sadd.s32 %s186, 1
      %p190 = scmp.eq.s32.totalorder %s21, 1
      %p191 = scmp.ne.s32.totalorder %s186, %s188
      %p192 = scmp.eq.s32.totalorder %s21, 0
      %p193 = por %p191, %p192
      %p194 = scmp.ne.s32.totalorder %s186, %s188
      %p195 = scmp.eq.s32.totalorder %s26, 1
      %p196 = por %p194, %p195
      %p197 = scmp.ne.s32.totalorder %s188, %s189
      %p198 = scmp.eq.s32.totalorder %s26, 0
      %p199 = por %p197, %p198
      %p200 = scmp.ne.s32.totalorder %s188, %s189
      %p201 = scmp.eq.s32.totalorder %s27, 1
      %p202 = por %p200, %p201
      %p204 = scmp.ne.s32.totalorder %s189, %s203
      %p205 = scmp.eq.s32.totalorder %s27, 0
      %p206 = por %p204, %p205
      %s208 = sadd.s32 %s207, 1
      %p211 = scmp.eq.s32.totalorder %s21, 1
      %p212 = scmp.ne.s32.totalorder %s207, %s209
      %p213 = scmp.eq.s32.totalorder %s21, 0
      %p214 = por %p212, %p213
      %p215 = scmp.ne.s32.totalorder %s207, %s209
      %p216 = scmp.eq.s32.totalorder %s26, 1
      %p217 = por %p215, %p216
      %p218 = scmp.ne.s32.totalorder %s209, %s210
      %p219 = scmp.eq.s32.totalorder %s26, 0
      %p220 = por %p218, %p219
      %p221 = scmp.ne.s32.totalorder %s209, %s210
      %p222 = scmp.eq.s32.totalorder %s27, 1
      %p223 = por %p221, %p222
      %p225 = scmp.ne.s32.totalorder %s210, %s224
      %p226 = scmp.eq.s32.totalorder %s27, 0
      %p227 = por %p225, %p226
      %s229 = sadd.s32 %s228, 1
      %p232 = scmp.eq.s32.totalorder %s21, 1
      %p233 = scmp.ne.s32.totalorder %s228, %s230
      %p234 = scmp.eq.s32.totalorder %s21, 0
      %p235 = por %p233, %p234
      %p236 = scmp.ne.s32.totalorder %s228, %s230
      %p237 = scmp.eq.s32.totalorder %s26, 1
      %p238 = por %p236, %p237
      %p239 = scmp.ne.s32.totalorder %s230, %s231
      %p240 = scmp.eq.s32.totalorder %s26, 0
      %p241 = por %p239, %p240
      %p242 = scmp.ne.s32.totalorder %s230, %s231
      %p243 = scmp.eq.s32.totalorder %s27, 1
      %p244 = por %p242, %p243
      %p246 = scmp.ne.s32.totalorder %s231, %s245
      %p247 = scmp.eq.s32.totalorder %s27, 0
      %p248 = por %p246, %p247
      %s249 = smul.u32 %s29, %s28
      %s250 = smul.u32 %s43, %s47
      %s251 = ssub.s32 %s249, %s250
      %p252 = scmp.eq.s32.totalorder %s251, 0
      %s254 = sadd.s32 %s253, 1
      %s255 = scalar_select %p252, %s253, %s254
      %p258 = pneg %p252
      %p259 = scmp.eq.s32.totalorder %s21, 1
      %p260 = por %p258, %p259
      %p261 = scmp.ne.s32.totalorder %s253, %s256
      %p262 = scmp.eq.s32.totalorder %s21, 0
      %p263 = por %p261, %p262
      %p264 = scmp.ne.s32.totalorder %s253, %s256
      %p265 = scmp.eq.s32.totalorder %s26, 1
      %p266 = por %p264, %p265
      %p267 = scmp.ne.s32.totalorder %s256, %s257
      %p268 = scmp.eq.s32.totalorder %s26, 0
      %p269 = por %p267, %p268
      %p270 = scmp.ne.s32.totalorder %s256, %s257
      %p271 = scmp.eq.s32.totalorder %s27, 1
      %p272 = por %p270, %p271
      %p274 = scmp.ne.s32.totalorder %s257, %s273
      %p275 = scmp.eq.s32.totalorder %s27, 0
      %p276 = por %p274, %p275
      %p277 = scmp.le.s32.totalorder 1, %s21
      %p278 = scmp.lt.s32.totalorder %s21, 3
      %p279 = pnand %p277, %p278
      %p280 = pneg %p279
      // Predicated region
      $region9: #{tpu_custom_call.1} parent=5 // pred_check
        _
      $region10: #{tpu_custom_call.1} parent=5 // pred_check_branch
        %282 = sbr.rel (%p279) target = $region12
      $region11: #{tpu_custom_call.1} parent=5 // pred_region
        %s283 = ssub.s32 %s21, 1
        // Predicated region
        $region13: #{tpu_custom_call.1} parent=11 // pred_check
          %p284 = pneg %p68
        $region14: #{tpu_custom_call.1} parent=11 // pred_check_branch
          %286 = sbr.rel (%p284) target = $region16
        $region15: #{tpu_custom_call.1} parent=11 // pred_region
          %s287 = smul.u32 8, %s32
          %s288 = smul.u32 2, %s33
          %p289 = scmp.lt.s32.totalorder %s287, 7
          %s290 = scalar_select %p289, %s287, 7
          %p291 = scmp.lt.s32.totalorder %s288, 1
          %s292 = scalar_select %p291, %s288, 1
          %s293 = smul.addr %s290, 2
          %s294 = sadd.s32 %s292, %s293
          %s295 = smul.addr %s294, 8
          %s296 = scalar_lea.vmem %s0, %s295
          %s297 = smul.u32 8, %s32
          %s298 = smul.u32 2, %s33
        $region16: #{tpu_custom_call.1} parent=11 // pred_fallthru
          _
        // Predicated region
        $region17: #{tpu_custom_call.1} parent=11 // pred_check
          %p299 = pneg %p89
        $region18: #{tpu_custom_call.1} parent=11 // pred_check_branch
          %301 = sbr.rel (%p299) target = $region20
        $region19: #{tpu_custom_call.1} parent=11 // pred_region
          _
        $region20: #{tpu_custom_call.1} parent=11 // pred_fallthru
          _
        // Predicated region
        $region21: #{tpu_custom_call.1} parent=11 // pred_check
          %p302 = pneg %p115
        $region22: #{tpu_custom_call.1} parent=11 // pred_check_branch
          %304 = sbr.rel (%p302) target = $region24
        $region23: #{tpu_custom_call.1} parent=11 // pred_region
          %s305 = smul.u32 32, %s32
          %p306 = scmp.lt.s32.totalorder %s305, 31
          %s307 = scalar_select %p306, %s305, 31
          %s308 = smul.addr %s307, 8
          %s309 = scalar_lea.vmem %s2, %s308
          %s310 = smul.u32 32, %s32
        $region24: #{tpu_custom_call.1} parent=11 // pred_fallthru
          _
        // Predicated region
        $region25: #{tpu_custom_call.1} parent=11 // pred_check
          %p311 = pneg %p136
        $region26: #{tpu_custom_call.1} parent=11 // pred_check_branch
          %313 = sbr.rel (%p311) target = $region28
        $region27: #{tpu_custom_call.1} parent=11 // pred_region
          %s315 = ssub.s32 1024, 1024
          %316 = vsyncadd [#allocation5], %s315
          %s317 = sshll.u32 [#allocation4], 4
          %s318 = int_to_ptr.vmem [resolvable:$true] %s317
          %323 = dma.hbm_to_vmem [thread:$0]  %s3, 1024, %s318, [#allocation5], 64, 64, 4
        $region28: #{tpu_custom_call.1} parent=11 // pred_fallthru
          _
        // Predicated region
        $region29: #{tpu_custom_call.1} parent=11 // pred_check
          %p324 = pneg %p157
        $region30: #{tpu_custom_call.1} parent=11 // pred_check_branch
          %326 = sbr.rel (%p324) target = $region32
        $region31: #{tpu_custom_call.1} parent=11 // pred_region
          %s328 = ssub.s32 1024, 1024
          %329 = vsyncadd [#allocation8], %s328
          %s330 = sshll.u32 [#allocation7], 4
          %s331 = int_to_ptr.vmem [resolvable:$true] %s330
          %336 = dma.hbm_to_vmem [thread:$0]  %s4, 1024, %s331, [#allocation8], 64, 64, 4
        $region32: #{tpu_custom_call.1} parent=11 // pred_fallthru
          _
        // Predicated region
        $region33: #{tpu_custom_call.1} parent=11 // pred_check
          %p337 = pneg %p178
        $region34: #{tpu_custom_call.1} parent=11 // pred_check_branch
          %339 = sbr.rel (%p337) target = $region36
        $region35: #{tpu_custom_call.1} parent=11 // pred_region
          _
        $region36: #{tpu_custom_call.1} parent=11 // pred_fallthru
          _
        // Predicated region
        $region37: #{tpu_custom_call.1} parent=11 // pred_check
          %p340 = pneg %p199
        $region38: #{tpu_custom_call.1} parent=11 // pred_check_branch
          %342 = sbr.rel (%p340) target = $region40
        $region39: #{tpu_custom_call.1} parent=11 // pred_region
          %s344 = ssub.s32 1024, 1024
          %345 = vsyncadd [#allocation8], %s344
          %s346 = sshll.u32 [#allocation9], 4
          %s347 = int_to_ptr.vmem [resolvable:$true] %s346
          %352 = dma.hbm_to_vmem [thread:$0]  %s6, 1024, %s347, [#allocation8], 64, 64, 4
        $region40: #{tpu_custom_call.1} parent=11 // pred_fallthru
          _
        // Predicated region
        $region41: #{tpu_custom_call.1} parent=11 // pred_check
          %p353 = pneg %p220
        $region42: #{tpu_custom_call.1} parent=11 // pred_check_branch
          %355 = sbr.rel (%p353) target = $region44
        $region43: #{tpu_custom_call.1} parent=11 // pred_region
          %s357 = ssub.s32 1024, 1024
          %358 = vsyncadd [#allocation11], %s357
          %s359 = sshll.u32 [#allocation10], 4
          %s360 = int_to_ptr.vmem [resolvable:$true] %s359
          %365 = dma.hbm_to_vmem [thread:$0]  %s7, 1024, %s360, [#allocation11], 64, 64, 4
        $region44: #{tpu_custom_call.1} parent=11 // pred_fallthru
          _
        // Predicated region
        $region45: #{tpu_custom_call.1} parent=11 // pred_check
          %p366 = pneg %p241
        $region46: #{tpu_custom_call.1} parent=11 // pred_check_branch
          %368 = sbr.rel (%p366) target = $region48
        $region47: #{tpu_custom_call.1} parent=11 // pred_region
          _
        $region48: #{tpu_custom_call.1} parent=11 // pred_fallthru
          _
      $region12: #{tpu_custom_call.1} parent=5 // pred_fallthru
        _
      %p369 = scmp.lt.s32.totalorder %s21, 2
      // Predicated region
      $region49: #{tpu_custom_call.1} parent=5 // pred_check
        %p370 = pneg %p369
      $region50: #{tpu_custom_call.1} parent=5 // pred_check_branch
        %372 = sbr.rel (%p370) target = $region52
      $region51: #{tpu_custom_call.1} parent=5 // pred_region
        _
      $region52: #{tpu_custom_call.1} parent=5 // pred_fallthru
        _
      %p373 = scmp.le.s32.totalorder 1, %s21
      %p374 = scmp.lt.s32.totalorder %s21, 3
      %p375 = pnand %p373, %p374
      %p376 = pneg %p375
      // Predicated region
      $region53: #{tpu_custom_call.1} parent=5 // pred_check
        _
      $region54: #{tpu_custom_call.1} parent=5 // pred_check_branch
        %378 = sbr.rel (%p375) target = $region56
      $region55: #{tpu_custom_call.1} parent=5 // pred_region
        %s379 = ssub.s32 %s21, 1
        // Predicated region
        $region57: #{tpu_custom_call.1} parent=55 // pred_check
          %p380 = pneg %p136
        $region58: #{tpu_custom_call.1} parent=55 // pred_check_branch
          %382 = sbr.rel (%p380) target = $region60
        $region59: #{tpu_custom_call.1} parent=55 // pred_region
          %383 = dma.done [#allocation5], 1024
        $region60: #{tpu_custom_call.1} parent=55 // pred_fallthru
          _
        // Predicated region
        $region61: #{tpu_custom_call.1} parent=55 // pred_check
          %p384 = pneg %p157
        $region62: #{tpu_custom_call.1} parent=55 // pred_check_branch
          %386 = sbr.rel (%p384) target = $region64
        $region63: #{tpu_custom_call.1} parent=55 // pred_region
          %387 = dma.done [#allocation8], 1024
        $region64: #{tpu_custom_call.1} parent=55 // pred_fallthru
          _
        // Predicated region
        $region65: #{tpu_custom_call.1} parent=55 // pred_check
          %p388 = pneg %p199
        $region66: #{tpu_custom_call.1} parent=55 // pred_check_branch
          %390 = sbr.rel (%p388) target = $region68
        $region67: #{tpu_custom_call.1} parent=55 // pred_region
          %391 = dma.done [#allocation8], 1024
        $region68: #{tpu_custom_call.1} parent=55 // pred_fallthru
          _
        // Predicated region
        $region69: #{tpu_custom_call.1} parent=55 // pred_check
          %p392 = pneg %p220
        $region70: #{tpu_custom_call.1} parent=55 // pred_check_branch
          %394 = sbr.rel (%p392) target = $region72
        $region71: #{tpu_custom_call.1} parent=55 // pred_region
          %395 = dma.done [#allocation11], 1024
        $region72: #{tpu_custom_call.1} parent=55 // pred_fallthru
          _
        %s396 = smul.u32 8, %s32
        %s397 = smul.u32 2, %s33
        %p398 = scmp.lt.s32.totalorder %s396, 7
        %s399 = scalar_select %p398, %s396, 7
        %p400 = scmp.lt.s32.totalorder %s397, 1
        %s401 = scalar_select %p400, %s397, 1
        %s402 = smul.addr %s399, 2
        %s403 = sadd.s32 %s401, %s402
        %s404 = smul.addr %s403, 8
        %s405 = scalar_lea.vmem %s0, %s404
        %p406 = pneg %p68
        %p407 = pneg %p65
        %p408 = pneg %p89
        %p409 = pneg %p86
        %s410 = smul.u32 32, %s32
        %p411 = scmp.lt.s32.totalorder %s410, 31
        %s412 = scalar_select %p411, %s410, 31
        %s413 = smul.addr %s412, 8
        %s414 = scalar_lea.vmem %s2, %s413
        %p415 = pneg %p115
        %p416 = pneg %p112
        %p417 = pneg %p136
        %p418 = pneg %p133
        %p419 = pneg %p157
        %p420 = pneg %p154
        %p421 = pneg %p178
        %p422 = pneg %p175
        %p423 = pneg %p199
        %p424 = pneg %p196
        %p425 = pneg %p220
        %p426 = pneg %p217
        %p427 = pneg %p241
        %p428 = pneg %p238
        %p429 = pneg %p269
        %p430 = pneg %p266
        %s431 = sand.u32 %s256, 1
        %s432 = scalar_lea.sflag [#allocation6], %s431
        %s433 = sand.u32 %s256, 1
        %s434 = smul.addr %s433, 256
        %s435 = scalar_lea.vmem [#allocation12], %s434
        %s436 = smul.u32 8, %s32
        %s437 = smul.u32 2, %s33
        %p438 = scmp.lt.s32.totalorder %s436, 7
        %s439 = scalar_select %p438, %s436, 7
        %p440 = scmp.lt.s32.totalorder %s437, 1
        %s441 = scalar_select %p440, %s437, 1
        %s442 = smul.addr %s439, 2
        %s443 = sadd.s32 %s441, %s442
        %s444 = smul.addr %s443, 8
        %s445 = scalar_lea.vmem %s0, %s444
        %s446 = smul.u32 8, %s32
        %s447 = smul.u32 2, %s33
        %s448 = smul.u32 32, %s32
        %p449 = scmp.lt.s32.totalorder %s448, 31
        %s450 = scalar_select %p449, %s448, 31
        %s451 = smul.addr %s450, 8
        %s452 = scalar_lea.vmem %s2, %s451
        %s453 = smul.u32 32, %s32
        %s454 = smul.u32 %s32, %s31
        %s455 = smul.u32 32, %s454
        %p457 = scmp.eq.s32.totalorder %s33, 0
        // Predicated region
        $region73: #{tpu_custom_call.1} parent=55 // pred_check
          %p458 = pneg %p457
        $region74: #{tpu_custom_call.1} parent=55 // pred_check_branch
          %460 = sbr.rel (%p458) target = $region76
        $region75: #{tpu_custom_call.1} parent=55 // pred_region
          %461 = vst [vmem:[#allocation3] sm:$0xff] 0.0
          %462 = vst [vmem:[#allocation3 + $0x8] sm:$0xff] 0.0
          %463 = vst [vmem:[#allocation3 + $0x10] sm:$0xff] 0.0
          %464 = vst [vmem:[#allocation3 + $0x18] sm:$0xff] 0.0
          %465 = vst [vmem:[#allocation3 + $0x20] sm:$0xff] 0.0
          %466 = vst [vmem:[#allocation3 + $0x28] sm:$0xff] 0.0
          %467 = vst [vmem:[#allocation3 + $0x30] sm:$0xff] 0.0
          %468 = vst [vmem:[#allocation3 + $0x38] sm:$0xff] 0.0
          %469 = vst [vmem:[#allocation3 + $0x40] sm:$0xff] 0.0
          %470 = vst [vmem:[#allocation3 + $0x48] sm:$0xff] 0.0
          %471 = vst [vmem:[#allocation3 + $0x50] sm:$0xff] 0.0
          %472 = vst [vmem:[#allocation3 + $0x58] sm:$0xff] 0.0
          %473 = vst [vmem:[#allocation3 + $0x60] sm:$0xff] 0.0
          %474 = vst [vmem:[#allocation3 + $0x68] sm:$0xff] 0.0
          %475 = vst [vmem:[#allocation3 + $0x70] sm:$0xff] 0.0
          %476 = vst [vmem:[#allocation3 + $0x78] sm:$0xff] 0.0
          %477 = vst [vmem:[#allocation3 + $0x80] sm:$0xff] 0.0
          %478 = vst [vmem:[#allocation3 + $0x88] sm:$0xff] 0.0
          %479 = vst [vmem:[#allocation3 + $0x90] sm:$0xff] 0.0
          %480 = vst [vmem:[#allocation3 + $0x98] sm:$0xff] 0.0
          %481 = vst [vmem:[#allocation3 + $0xa0] sm:$0xff] 0.0
          %482 = vst [vmem:[#allocation3 + $0xa8] sm:$0xff] 0.0
          %483 = vst [vmem:[#allocation3 + $0xb0] sm:$0xff] 0.0
          %484 = vst [vmem:[#allocation3 + $0xb8] sm:$0xff] 0.0
          %485 = vst [vmem:[#allocation3 + $0xc0] sm:$0xff] 0.0
          %486 = vst [vmem:[#allocation3 + $0xc8] sm:$0xff] 0.0
          %487 = vst [vmem:[#allocation3 + $0xd0] sm:$0xff] 0.0
          %488 = vst [vmem:[#allocation3 + $0xd8] sm:$0xff] 0.0
          %489 = vst [vmem:[#allocation3 + $0xe0] sm:$0xff] 0.0
          %490 = vst [vmem:[#allocation3 + $0xe8] sm:$0xff] 0.0
          %491 = vst [vmem:[#allocation3 + $0xf0] sm:$0xff] 0.0
          %492 = vst [vmem:[#allocation3 + $0xf8] sm:$0xff] 0.0
        $region76: #{tpu_custom_call.1} parent=55 // pred_fallthru
          _
        %v493 = vld [vmem:[%s445] sm:$0xff]
        %v494 = vld [vmem:[%s445 + $0x8] sm:$0xff]
        %v495 = vld [vmem:[%s445 + $0x10] sm:$0xff]
        %v496 = vld [vmem:[%s445 + $0x18] sm:$0xff]
        %v497 = vld [vmem:[%s445 + $0x20] sm:$0xff]
        %v498 = vld [vmem:[%s445 + $0x28] sm:$0xff]
        %v499 = vld [vmem:[%s445 + $0x30] sm:$0xff]
        %v500 = vld [vmem:[%s445 + $0x38] sm:$0xff]
        %v501 = vld [vmem:[%s445 + $0x40] sm:$0xff]
        %v502 = vld [vmem:[%s445 + $0x48] sm:$0xff]
        %v503 = vld [vmem:[%s445 + $0x50] sm:$0xff]
        %v504 = vld [vmem:[%s445 + $0x58] sm:$0xff]
        %v505 = vld [vmem:[%s445 + $0x60] sm:$0xff]
        %v506 = vld [vmem:[%s445 + $0x68] sm:$0xff]
        %v507 = vld [vmem:[%s445 + $0x70] sm:$0xff]
        %v508 = vld [vmem:[%s445 + $0x78] sm:$0xff]
        %v509 = vunpack.c.l.s8.bf16 %v493
        %v510 = vunpack.c.l.s8.bf16 %v494
        %v511 = vunpack.c.h.s8.bf16 %v493
        %v512 = vunpack.c.h.s8.bf16 %v494
        %v513 = vunpack.c.l.s8.bf16 %v495
        %v514 = vunpack.c.l.s8.bf16 %v496
        %v515 = vunpack.c.h.s8.bf16 %v495
        %v516 = vunpack.c.h.s8.bf16 %v496
        %v517 = vunpack.c.l.s8.bf16 %v497
        %v518 = vunpack.c.l.s8.bf16 %v498
        %v519 = vunpack.c.h.s8.bf16 %v497
        %v520 = vunpack.c.h.s8.bf16 %v498
        %v521 = vunpack.c.l.s8.bf16 %v499
        %v522 = vunpack.c.l.s8.bf16 %v500
        %v523 = vunpack.c.h.s8.bf16 %v499
        %v524 = vunpack.c.h.s8.bf16 %v500
        %v525 = vunpack.c.l.s8.bf16 %v501
        %v526 = vunpack.c.l.s8.bf16 %v502
        %v527 = vunpack.c.h.s8.bf16 %v501
        %v528 = vunpack.c.h.s8.bf16 %v502
        %v529 = vunpack.c.l.s8.bf16 %v503
        %v530 = vunpack.c.l.s8.bf16 %v504
        %v531 = vunpack.c.h.s8.bf16 %v503
        %v532 = vunpack.c.h.s8.bf16 %v504
        %v533 = vunpack.c.l.s8.bf16 %v505
        %v534 = vunpack.c.l.s8.bf16 %v506
        %v535 = vunpack.c.h.s8.bf16 %v505
        %v536 = vunpack.c.h.s8.bf16 %v506
        %v537 = vunpack.c.l.s8.bf16 %v507
        %v538 = vunpack.c.l.s8.bf16 %v508
        %v539 = vunpack.c.h.s8.bf16 %v507
        %v540 = vunpack.c.h.s8.bf16 %v508
        %s541 = smul.u32 %s33, 256
        %p542 = scmp.eq.s32.totalorder %s31, 0
        // Predicated region
        $region77: #{tpu_custom_call.1} parent=55 // pred_check
          %p543 = pneg %p542
        $region78: #{tpu_custom_call.1} parent=55 // pred_check_branch
          %545 = sbr.rel (%p543) target = $region80
        $region79: #{tpu_custom_call.1} parent=55 // pred_region
          %v546 = vld [vmem:[#allocation3] sm:$0xff]
          %v547 = vld [vmem:[#allocation3 + $0x8] sm:$0xff]
          %v548 = vld [vmem:[#allocation3 + $0x10] sm:$0xff]
          %v549 = vld [vmem:[#allocation3 + $0x18] sm:$0xff]
          %v550 = vld [vmem:[#allocation3 + $0x20] sm:$0xff]
          %v551 = vld [vmem:[#allocation3 + $0x28] sm:$0xff]
          %v552 = vld [vmem:[#allocation3 + $0x30] sm:$0xff]
          %v553 = vld [vmem:[#allocation3 + $0x38] sm:$0xff]
          %v554 = vld [vmem:[#allocation3 + $0x40] sm:$0xff]
          %v555 = vld [vmem:[#allocation3 + $0x48] sm:$0xff]
          %v556 = vld [vmem:[#allocation3 + $0x50] sm:$0xff]
          %v557 = vld [vmem:[#allocation3 + $0x58] sm:$0xff]
          %v558 = vld [vmem:[#allocation3 + $0x60] sm:$0xff]
          %v559 = vld [vmem:[#allocation3 + $0x68] sm:$0xff]
          %v560 = vld [vmem:[#allocation3 + $0x70] sm:$0xff]
          %v561 = vld [vmem:[#allocation3 + $0x78] sm:$0xff]
          %v562 = vld [vmem:[#allocation3 + $0x80] sm:$0xff]
          %v563 = vld [vmem:[#allocation3 + $0x88] sm:$0xff]
          %v564 = vld [vmem:[#allocation3 + $0x90] sm:$0xff]
          %v565 = vld [vmem:[#allocation3 + $0x98] sm:$0xff]
          %v566 = vld [vmem:[#allocation3 + $0xa0] sm:$0xff]
          %v567 = vld [vmem:[#allocation3 + $0xa8] sm:$0xff]
          %v568 = vld [vmem:[#allocation3 + $0xb0] sm:$0xff]
          %v569 = vld [vmem:[#allocation3 + $0xb8] sm:$0xff]
          %v570 = vld [vmem:[#allocation3 + $0xc0] sm:$0xff]
          %v571 = vld [vmem:[#allocation3 + $0xc8] sm:$0xff]
          %v572 = vld [vmem:[#allocation3 + $0xd0] sm:$0xff]
          %v573 = vld [vmem:[#allocation3 + $0xd8] sm:$0xff]
          %v574 = vld [vmem:[#allocation3 + $0xe0] sm:$0xff]
          %v575 = vld [vmem:[#allocation3 + $0xe8] sm:$0xff]
          %v576 = vld [vmem:[#allocation3 + $0xf0] sm:$0xff]
          %v577 = vld [vmem:[#allocation3 + $0xf8] sm:$0xff]
          %s578 = sshra.s32 %s541, 3
          %s579 = sand.u32 %s541, 7
          %s580 = smul.addr %s578, 4
          %s581 = scalar_lea.vmem %s1, %s580
          %v582 = vld [vmem:[%s581] sm:$0xf]
          %v583 = vld [vmem:[%s581 + $0x4] sm:$0xf]
          %v584 = vld [vmem:[%s581 + $0x8] sm:$0xf]
          %v585 = vld [vmem:[%s581 + $0xc] sm:$0xf]
          %v586 = vld [vmem:[%s581 + $0x10] sm:$0xf]
          %v587 = vld [vmem:[%s581 + $0x14] sm:$0xf]
          %v588 = vld [vmem:[%s581 + $0x18] sm:$0xf]
          %v589 = vld [vmem:[%s581 + $0x1c] sm:$0xf]
          %v590 = vld [vmem:[%s581 + $0x20] sm:$0xf]
          %v591 = vld [vmem:[%s581 + $0x24] sm:$0xf]
          %v592 = vld [vmem:[%s581 + $0x28] sm:$0xf]
          %v593 = vld [vmem:[%s581 + $0x2c] sm:$0xf]
          %v594 = vld [vmem:[%s581 + $0x30] sm:$0xf]
          %v595 = vld [vmem:[%s581 + $0x34] sm:$0xf]
          %v596 = vld [vmem:[%s581 + $0x38] sm:$0xf]
          %v597 = vld [vmem:[%s581 + $0x3c] sm:$0xf]
          %v598 = vld [vmem:[%s581 + $0x40] sm:$0xf]
          %v599 = vld [vmem:[%s581 + $0x44] sm:$0xf]
          %v600 = vld [vmem:[%s581 + $0x48] sm:$0xf]
          %v601 = vld [vmem:[%s581 + $0x4c] sm:$0xf]
          %v602 = vld [vmem:[%s581 + $0x50] sm:$0xf]
          %v603 = vld [vmem:[%s581 + $0x54] sm:$0xf]
          %v604 = vld [vmem:[%s581 + $0x58] sm:$0xf]
          %v605 = vld [vmem:[%s581 + $0x5c] sm:$0xf]
          %v606 = vld [vmem:[%s581 + $0x60] sm:$0xf]
          %v607 = vld [vmem:[%s581 + $0x64] sm:$0xf]
          %v608 = vld [vmem:[%s581 + $0x68] sm:$0xf]
          %v609 = vld [vmem:[%s581 + $0x6c] sm:$0xf]
          %v610 = vld [vmem:[%s581 + $0x70] sm:$0xf]
          %v611 = vld [vmem:[%s581 + $0x74] sm:$0xf]
          %v612 = vld [vmem:[%s581 + $0x78] sm:$0xf]
          %v613 = vld [vmem:[%s581 + $0x7c] sm:$0xf]
          %v646 = vunpack.c.l.b16 %v582
          %v647 = vunpack.c.l.b16 %v583
          %v648 = vunpack.c.l.b16 %v584
          %v649 = vunpack.c.l.b16 %v585
          %v650 = vunpack.c.l.b16 %v586
          %v651 = vunpack.c.l.b16 %v587
          %v652 = vunpack.c.l.b16 %v588
          %v653 = vunpack.c.l.b16 %v589
          %v654 = vunpack.c.l.b16 %v590
          %v655 = vunpack.c.l.b16 %v591
          %v656 = vunpack.c.l.b16 %v592
          %v657 = vunpack.c.l.b16 %v593
          %v658 = vunpack.c.l.b16 %v594
          %v659 = vunpack.c.l.b16 %v595
          %v660 = vunpack.c.l.b16 %v596
          %v661 = vunpack.c.l.b16 %v597
          %v662 = vunpack.c.l.b16 %v598
          %v663 = vunpack.c.l.b16 %v599
          %v664 = vunpack.c.l.b16 %v600
          %v665 = vunpack.c.l.b16 %v601
          %v666 = vunpack.c.l.b16 %v602
          %v667 = vunpack.c.l.b16 %v603
          %v668 = vunpack.c.l.b16 %v604
          %v669 = vunpack.c.l.b16 %v605
          %v670 = vunpack.c.l.b16 %v606
          %v671 = vunpack.c.l.b16 %v607
          %v672 = vunpack.c.l.b16 %v608
          %v673 = vunpack.c.l.b16 %v609
          %v674 = vunpack.c.l.b16 %v610
          %v675 = vunpack.c.l.b16 %v611
          %v676 = vunpack.c.l.b16 %v612
          %v677 = vunpack.c.l.b16 %v613
          %v678 = vpack.c.b16 %v647, %v646
          %v679 = vpack.c.b16 %v649, %v648
          %v680 = vpack.c.b16 %v651, %v650
          %v681 = vpack.c.b16 %v653, %v652
          %v682 = vpack.c.b16 %v655, %v654
          %v683 = vpack.c.b16 %v657, %v656
          %v684 = vpack.c.b16 %v659, %v658
          %v685 = vpack.c.b16 %v661, %v660
          %v686 = vpack.c.b16 %v663, %v662
          %v687 = vpack.c.b16 %v665, %v664
          %v688 = vpack.c.b16 %v667, %v666
          %v689 = vpack.c.b16 %v669, %v668
          %v690 = vpack.c.b16 %v671, %v670
          %v691 = vpack.c.b16 %v673, %v672
          %v692 = vpack.c.b16 %v675, %v674
          %v693 = vpack.c.b16 %v677, %v676
          %710 = vmatprep.subr.bf16.mxu0 0
          %711 = vmatpush1.bf16.msra.mxu0 %v678
          %712 = vmatprep.subr.bf16.mxu0 0
          %713 = vmatpush1.bf16.msra.mxu0 %v679
          %714 = vmatprep.subr.bf16.mxu0 0
          %715 = vmatpush1.bf16.msra.mxu0 %v680
          %716 = vmatprep.subr.bf16.mxu0 0
          %717 = vmatpush1.bf16.msra.mxu0 %v681
          %718 = vmatprep.subr.bf16.mxu0 0
          %719 = vmatpush1.bf16.msra.mxu0 %v682
          %720 = vmatprep.subr.bf16.mxu0 0
          %721 = vmatpush1.bf16.msra.mxu0 %v683
          %722 = vmatprep.subr.bf16.mxu0 0
          %723 = vmatpush1.bf16.msra.mxu0 %v684
          %724 = vmatprep.subr.bf16.mxu0 0
          %725 = vmatpush1.bf16.msra.mxu0 %v685
          %726 = vmatprep.subr.bf16.mxu0 0
          %727 = vmatpush1.bf16.msra.mxu0 %v686
          %728 = vmatprep.subr.bf16.mxu0 0
          %729 = vmatpush1.bf16.msra.mxu0 %v687
          %730 = vmatprep.subr.bf16.mxu0 0
          %731 = vmatpush1.bf16.msra.mxu0 %v688
          %732 = vmatprep.subr.bf16.mxu0 0
          %733 = vmatpush1.bf16.msra.mxu0 %v689
          %734 = vmatprep.subr.bf16.mxu0 0
          %735 = vmatpush1.bf16.msra.mxu0 %v690
          %736 = vmatprep.subr.bf16.mxu0 0
          %737 = vmatpush1.bf16.msra.mxu0 %v691
          %738 = vmatprep.subr.bf16.mxu0 0
          %739 = vmatpush1.bf16.msra.mxu0 %v692
          %740 = vmatprep.subr.bf16.mxu0 0
          %741 = vmatpush1.bf16.msra.mxu0 %v693
          %742 = vmatprep.mubr.bf16.mxu0 %v510
          %743 = vmatmul.mubr.bf16.gmra.mrb[0].mxu0 %v509
          %v744 = vpop.f32.mrb[0].mxu0
          %v745 = vadd.f32 0.0, %v744
          %v746 = vpop.f32.mrb[0].mxu0
          %v747 = vpop.f32.mrb[0].mxu0
          %v748 = vadd.f32 0.0, %v747
          %v749 = vpop.f32.mrb[0].mxu0
          %750 = vmatprep.mubr.bf16.mxu0 %v512
          %751 = vmatmul.mubr.bf16.gmra.mrb[0].mxu0 %v511
          %v752 = vpop.f32.mrb[0].mxu0
          %v753 = vadd.f32 0.0, %v752
          %v754 = vpop.f32.mrb[0].mxu0
          %v755 = vpop.f32.mrb[0].mxu0
          %v756 = vadd.f32 0.0, %v755
          %v757 = vpop.f32.mrb[0].mxu0
          %758 = vmatprep.mubr.bf16.mxu0 %v514
          %759 = vmatmul.mubr.bf16.gmra.mrb[0].mxu0 %v513
          %v760 = vpop.f32.mrb[0].mxu0
          %v761 = vadd.f32 0.0, %v760
          %v762 = vpop.f32.mrb[0].mxu0
          %v763 = vpop.f32.mrb[0].mxu0
          %v764 = vadd.f32 0.0, %v763
          %v765 = vpop.f32.mrb[0].mxu0
          %766 = vmatprep.mubr.bf16.mxu0 %v516
          %767 = vmatmul.mubr.bf16.gmra.mrb[0].mxu0 %v515
          %v768 = vpop.f32.mrb[0].mxu0
          %v769 = vadd.f32 0.0, %v768
          %v770 = vpop.f32.mrb[0].mxu0
          %v771 = vpop.f32.mrb[0].mxu0
          %v772 = vadd.f32 0.0, %v771
          %v773 = vpop.f32.mrb[0].mxu0
          %774 = vmatprep.mubr.bf16.mxu0 %v518
          %775 = vmatmul.mubr.bf16.gmra.mrb[0].mxu0 %v517
          %v776 = vpop.f32.mrb[0].mxu0
          %v777 = vadd.f32 0.0, %v776
          %v778 = vpop.f32.mrb[0].mxu0
          %v779 = vpop.f32.mrb[0].mxu0
          %v780 = vadd.f32 0.0, %v779
          %v781 = vpop.f32.mrb[0].mxu0
          %782 = vmatprep.mubr.bf16.mxu0 %v520
          %783 = vmatmul.mubr.bf16.gmra.mrb[0].mxu0 %v519
          %v784 = vpop.f32.mrb[0].mxu0
          %v785 = vadd.f32 0.0, %v784
          %v786 = vpop.f32.mrb[0].mxu0
          %v787 = vpop.f32.mrb[0].mxu0
          %v788 = vadd.f32 0.0, %v787
          %v789 = vpop.f32.mrb[0].mxu0
          %790 = vmatprep.mubr.bf16.mxu0 %v522
          %791 = vmatmul.mubr.bf16.gmra.mrb[0].mxu0 %v521
          %v792 = vpop.f32.mrb[0].mxu0
          %v793 = vadd.f32 0.0, %v792
          %v794 = vpop.f32.mrb[0].mxu0
          %v795 = vpop.f32.mrb[0].mxu0
          %v796 = vadd.f32 0.0, %v795
          %v797 = vpop.f32.mrb[0].mxu0
          %798 = vmatprep.mubr.bf16.mxu0 %v524
          %799 = vmatmul.mubr.bf16.gmra.mrb[0].mxu0 %v523
          %v800 = vpop.f32.mrb[0].mxu0
          %v801 = vadd.f32 0.0, %v800
          %v802 = vpop.f32.mrb[0].mxu0
          %v803 = vpop.f32.mrb[0].mxu0
          %v804 = vadd.f32 0.0, %v803
          %v805 = vpop.f32.mrb[0].mxu0
          %806 = vmatprep.mubr.bf16.mxu0 %v526
          %807 = vmatmul.mubr.bf16.gmra.mrb[0].mxu0 %v525
          %v808 = vpop.f32.mrb[0].mxu0
          %v809 = vadd.f32 0.0, %v808
          %v810 = vpop.f32.mrb[0].mxu0
          %v811 = vpop.f32.mrb[0].mxu0
          %v812 = vadd.f32 0.0, %v811
          %v813 = vpop.f32.mrb[0].mxu0
          %814 = vmatprep.mubr.bf16.mxu0 %v528
          %815 = vmatmul.mubr.bf16.gmra.mrb[0].mxu0 %v527
          %v816 = vpop.f32.mrb[0].mxu0
          %v817 = vadd.f32 0.0, %v816
          %v818 = vpop.f32.mrb[0].mxu0
          %v819 = vpop.f32.mrb[0].mxu0
          %v820 = vadd.f32 0.0, %v819
          %v821 = vpop.f32.mrb[0].mxu0
          %822 = vmatprep.mubr.bf16.mxu0 %v530
          %823 = vmatmul.mubr.bf16.gmra.mrb[0].mxu0 %v529
          %v824 = vpop.f32.mrb[0].mxu0
          %v825 = vadd.f32 0.0, %v824
          %v826 = vpop.f32.mrb[0].mxu0
          %v827 = vpop.f32.mrb[0].mxu0
          %v828 = vadd.f32 0.0, %v827
          %v829 = vpop.f32.mrb[0].mxu0
          %830 = vmatprep.mubr.bf16.mxu0 %v532
          %831 = vmatmul.mubr.bf16.gmra.mrb[0].mxu0 %v531
          %v832 = vpop.f32.mrb[0].mxu0
          %v833 = vadd.f32 0.0, %v832
          %v834 = vpop.f32.mrb[0].mxu0
          %v835 = vpop.f32.mrb[0].mxu0
          %v836 = vadd.f32 0.0, %v835
          %v837 = vpop.f32.mrb[0].mxu0
          %838 = vmatprep.mubr.bf16.mxu0 %v534
          %839 = vmatmul.mubr.bf16.gmra.mrb[0].mxu0 %v533
          %v840 = vpop.f32.mrb[0].mxu0
          %v841 = vadd.f32 0.0, %v840
          %v842 = vpop.f32.mrb[0].mxu0
          %v843 = vpop.f32.mrb[0].mxu0
          %v844 = vadd.f32 0.0, %v843
          %v845 = vpop.f32.mrb[0].mxu0
          %846 = vmatprep.mubr.bf16.mxu0 %v536
          %847 = vmatmul.mubr.bf16.gmra.mrb[0].mxu0 %v535
          %v848 = vpop.f32.mrb[0].mxu0
          %v849 = vadd.f32 0.0, %v848
          %v850 = vpop.f32.mrb[0].mxu0
          %v851 = vpop.f32.mrb[0].mxu0
          %v852 = vadd.f32 0.0, %v851
          %v853 = vpop.f32.mrb[0].mxu0
          %854 = vmatprep.mubr.bf16.mxu0 %v538
          %855 = vmatmul.mubr.bf16.gmra.mrb[0].mxu0 %v537
          %v856 = vpop.f32.mrb[0].mxu0
          %v857 = vadd.f32 0.0, %v856
          %v858 = vpop.f32.mrb[0].mxu0
          %v859 = vpop.f32.mrb[0].mxu0
          %v860 = vadd.f32 0.0, %v859
          %v861 = vpop.f32.mrb[0].mxu0
          %862 = vmatprep.mubr.bf16.mxu0 %v540
          %863 = vmatmul.mubr.bf16.gmra.mrb[0].mxu0 %v539
          %v864 = vpop.f32.mrb[0].mxu0
          %v865 = vadd.f32 0.0, %v864
          %v866 = vpop.f32.mrb[0].mxu0
          %v867 = vpop.f32.mrb[0].mxu0
          %v868 = vadd.f32 0.0, %v867
          %v869 = vpop.f32.mrb[0].mxu0
          %870 = vdwg.mxu0
          %v871 = vadd.f32 %v546, %v745
          %v872 = vadd.f32 %v547, %v748
          %v873 = vadd.f32 %v548, %v753
          %v874 = vadd.f32 %v549, %v756
          %v875 = vadd.f32 %v550, %v761
          %v876 = vadd.f32 %v551, %v764
          %v877 = vadd.f32 %v552, %v769
          %v878 = vadd.f32 %v553, %v772
          %v879 = vadd.f32 %v554, %v777
          %v880 = vadd.f32 %v555, %v780
          %v881 = vadd.f32 %v556, %v785
          %v882 = vadd.f32 %v557, %v788
          %v883 = vadd.f32 %v558, %v793
          %v884 = vadd.f32 %v559, %v796
          %v885 = vadd.f32 %v560, %v801
          %v886 = vadd.f32 %v561, %v804
          %v887 = vadd.f32 %v562, %v809
          %v888 = vadd.f32 %v563, %v812
          %v889 = vadd.f32 %v564, %v817
          %v890 = vadd.f32 %v565, %v820
          %v891 = vadd.f32 %v566, %v825
          %v892 = vadd.f32 %v567, %v828
          %v893 = vadd.f32 %v568, %v833
          %v894 = vadd.f32 %v569, %v836
          %v895 = vadd.f32 %v570, %v841
          %v896 = vadd.f32 %v571, %v844
          %v897 = vadd.f32 %v572, %v849
          %v898 = vadd.f32 %v573, %v852
          %v899 = vadd.f32 %v574, %v857
          %v900 = vadd.f32 %v575, %v860
          %v901 = vadd.f32 %v576, %v865
          %v902 = vadd.f32 %v577, %v868
          %903 = vst [vmem:[#allocation3] sm:$0xff] %v871
          %904 = vst [vmem:[#allocation3 + $0x8] sm:$0xff] %v872
          %905 = vst [vmem:[#allocation3 + $0x10] sm:$0xff] %v873
          %906 = vst [vmem:[#allocation3 + $0x18] sm:$0xff] %v874
          %907 = vst [vmem:[#allocation3 + $0x20] sm:$0xff] %v875
          %908 = vst [vmem:[#allocation3 + $0x28] sm:$0xff] %v876
          %909 = vst [vmem:[#allocation3 + $0x30] sm:$0xff] %v877
          %910 = vst [vmem:[#allocation3 + $0x38] sm:$0xff] %v878
          %911 = vst [vmem:[#allocation3 + $0x40] sm:$0xff] %v879
          %912 = vst [vmem:[#allocation3 + $0x48] sm:$0xff] %v880
          %913 = vst [vmem:[#allocation3 + $0x50] sm:$0xff] %v881
          %914 = vst [vmem:[#allocation3 + $0x58] sm:$0xff] %v882
          %915 = vst [vmem:[#allocation3 + $0x60] sm:$0xff] %v883
          %916 = vst [vmem:[#allocation3 + $0x68] sm:$0xff] %v884
          %917 = vst [vmem:[#allocation3 + $0x70] sm:$0xff] %v885
          %918 = vst [vmem:[#allocation3 + $0x78] sm:$0xff] %v886
          %919 = vst [vmem:[#allocation3 + $0x80] sm:$0xff] %v887
          %920 = vst [vmem:[#allocation3 + $0x88] sm:$0xff] %v888
          %921 = vst [vmem:[#allocation3 + $0x90] sm:$0xff] %v889
          %922 = vst [vmem:[#allocation3 + $0x98] sm:$0xff] %v890
          %923 = vst [vmem:[#allocation3 + $0xa0] sm:$0xff] %v891
          %924 = vst [vmem:[#allocation3 + $0xa8] sm:$0xff] %v892
          %925 = vst [vmem:[#allocation3 + $0xb0] sm:$0xff] %v893
          %926 = vst [vmem:[#allocation3 + $0xb8] sm:$0xff] %v894
          %927 = vst [vmem:[#allocation3 + $0xc0] sm:$0xff] %v895
          %928 = vst [vmem:[#allocation3 + $0xc8] sm:$0xff] %v896
          %929 = vst [vmem:[#allocation3 + $0xd0] sm:$0xff] %v897
          %930 = vst [vmem:[#allocation3 + $0xd8] sm:$0xff] %v898
          %931 = vst [vmem:[#allocation3 + $0xe0] sm:$0xff] %v899
          %932 = vst [vmem:[#allocation3 + $0xe8] sm:$0xff] %v900
          %933 = vst [vmem:[#allocation3 + $0xf0] sm:$0xff] %v901
          %934 = vst [vmem:[#allocation3 + $0xf8] sm:$0xff] %v902
        $region80: #{tpu_custom_call.1} parent=55 // pred_fallthru
          _
        %p935 = scmp.eq.s32.totalorder %s31, 1
        // Predicated region
        $region81: #{tpu_custom_call.1} parent=55 // pred_check
          %p936 = pneg %p935
        $region82: #{tpu_custom_call.1} parent=55 // pred_check_branch
          %938 = sbr.rel (%p936) target = $region84
        $region83: #{tpu_custom_call.1} parent=55 // pred_region
          %v939 = vld [vmem:[#allocation3] sm:$0xff]
          %v940 = vld [vmem:[#allocation3 + $0x8] sm:$0xff]
          %v941 = vld [vmem:[#allocation3 + $0x10] sm:$0xff]
          %v942 = vld [vmem:[#allocation3 + $0x18] sm:$0xff]
          %v943 = vld [vmem:[#allocation3 + $0x20] sm:$0xff]
          %v944 = vld [vmem:[#allocation3 + $0x28] sm:$0xff]
          %v945 = vld [vmem:[#allocation3 + $0x30] sm:$0xff]
          %v946 = vld [vmem:[#allocation3 + $0x38] sm:$0xff]
          %v947 = vld [vmem:[#allocation3 + $0x40] sm:$0xff]
          %v948 = vld [vmem:[#allocation3 + $0x48] sm:$0xff]
          %v949 = vld [vmem:[#allocation3 + $0x50] sm:$0xff]
          %v950 = vld [vmem:[#allocation3 + $0x58] sm:$0xff]
          %v951 = vld [vmem:[#allocation3 + $0x60] sm:$0xff]
          %v952 = vld [vmem:[#allocation3 + $0x68] sm:$0xff]
          %v953 = vld [vmem:[#allocation3 + $0x70] sm:$0xff]
          %v954 = vld [vmem:[#allocation3 + $0x78] sm:$0xff]
          %v955 = vld [vmem:[#allocation3 + $0x80] sm:$0xff]
          %v956 = vld [vmem:[#allocation3 + $0x88] sm:$0xff]
          %v957 = vld [vmem:[#allocation3 + $0x90] sm:$0xff]
          %v958 = vld [vmem:[#allocation3 + $0x98] sm:$0xff]
          %v959 = vld [vmem:[#allocation3 + $0xa0] sm:$0xff]
          %v960 = vld [vmem:[#allocation3 + $0xa8] sm:$0xff]
          %v961 = vld [vmem:[#allocation3 + $0xb0] sm:$0xff]
          %v962 = vld [vmem:[#allocation3 + $0xb8] sm:$0xff]
          %v963 = vld [vmem:[#allocation3 + $0xc0] sm:$0xff]
          %v964 = vld [vmem:[#allocation3 + $0xc8] sm:$0xff]
          %v965 = vld [vmem:[#allocation3 + $0xd0] sm:$0xff]
          %v966 = vld [vmem:[#allocation3 + $0xd8] sm:$0xff]
          %v967 = vld [vmem:[#allocation3 + $0xe0] sm:$0xff]
          %v968 = vld [vmem:[#allocation3 + $0xe8] sm:$0xff]
          %v969 = vld [vmem:[#allocation3 + $0xf0] sm:$0xff]
          %v970 = vld [vmem:[#allocation3 + $0xf8] sm:$0xff]
          %s971 = sshra.s32 %s541, 4
          %s972 = sand.u32 %s541, 15
          %s973 = smul.addr %s971, 8
          %s974 = scalar_lea.vmem [#allocation2], %s973
          %v975 = vld [vmem:[%s974] sm:$0xff]
          %v976 = vld [vmem:[%s974 + $0x8] sm:$0xff]
          %v977 = vld [vmem:[%s974 + $0x10] sm:$0xff]
          %v978 = vld [vmem:[%s974 + $0x18] sm:$0xff]
          %v979 = vld [vmem:[%s974 + $0x20] sm:$0xff]
          %v980 = vld [vmem:[%s974 + $0x28] sm:$0xff]
          %v981 = vld [vmem:[%s974 + $0x30] sm:$0xff]
          %v982 = vld [vmem:[%s974 + $0x38] sm:$0xff]
          %v983 = vld [vmem:[%s974 + $0x40] sm:$0xff]
          %v984 = vld [vmem:[%s974 + $0x48] sm:$0xff]
          %v985 = vld [vmem:[%s974 + $0x50] sm:$0xff]
          %v986 = vld [vmem:[%s974 + $0x58] sm:$0xff]
          %v987 = vld [vmem:[%s974 + $0x60] sm:$0xff]
          %v988 = vld [vmem:[%s974 + $0x68] sm:$0xff]
          %v989 = vld [vmem:[%s974 + $0x70] sm:$0xff]
          %v990 = vld [vmem:[%s974 + $0x78] sm:$0xff]
          %991 = vmatprep.subr.bf16.mxu0 0
          %992 = vmatpush1.bf16.msra.mxu0 %v975
          %993 = vmatprep.subr.bf16.mxu0 0
          %994 = vmatpush1.bf16.msra.mxu0 %v976
          %995 = vmatprep.subr.bf16.mxu0 0
          %996 = vmatpush1.bf16.msra.mxu0 %v977
          %997 = vmatprep.subr.bf16.mxu0 0
          %998 = vmatpush1.bf16.msra.mxu0 %v978
          %999 = vmatprep.subr.bf16.mxu0 0
          %1000 = vmatpush1.bf16.msra.mxu0 %v979
          %1001 = vmatprep.subr.bf16.mxu0 0
          %1002 = vmatpush1.bf16.msra.mxu0 %v980
          %1003 = vmatprep.subr.bf16.mxu0 0
          %1004 = vmatpush1.bf16.msra.mxu0 %v981
          %1005 = vmatprep.subr.bf16.mxu0 0
          %1006 = vmatpush1.bf16.msra.mxu0 %v982
          %1007 = vmatprep.subr.bf16.mxu0 0
          %1008 = vmatpush1.bf16.msra.mxu0 %v983
          %1009 = vmatprep.subr.bf16.mxu0 0
          %1010 = vmatpush1.bf16.msra.mxu0 %v984
          %1011 = vmatprep.subr.bf16.mxu0 0
          %1012 = vmatpush1.bf16.msra.mxu0 %v985
          %1013 = vmatprep.subr.bf16.mxu0 0
          %1014 = vmatpush1.bf16.msra.mxu0 %v986
          %1015 = vmatprep.subr.bf16.mxu0 0
          %1016 = vmatpush1.bf16.msra.mxu0 %v987
          %1017 = vmatprep.subr.bf16.mxu0 0
          %1018 = vmatpush1.bf16.msra.mxu0 %v988
          %1019 = vmatprep.subr.bf16.mxu0 0
          %1020 = vmatpush1.bf16.msra.mxu0 %v989
          %1021 = vmatprep.subr.bf16.mxu0 0
          %1022 = vmatpush1.bf16.msra.mxu0 %v990
          %1023 = vmatprep.mubr.bf16.mxu0 %v510
          %1024 = vmatmul.mubr.bf16.gmra.mrb[0].mxu0 %v509
          %v1025 = vpop.f32.mrb[0].mxu0
          %v1026 = vadd.f32 0.0, %v1025
          %v1027 = vpop.f32.mrb[0].mxu0
          %v1028 = vpop.f32.mrb[0].mxu0
          %v1029 = vadd.f32 0.0, %v1028
          %v1030 = vpop.f32.mrb[0].mxu0
          %1031 = vmatprep.mubr.bf16.mxu0 %v512
          %1032 = vmatmul.mubr.bf16.gmra.mrb[0].mxu0 %v511
          %v1033 = vpop.f32.mrb[0].mxu0
          %v1034 = vadd.f32 0.0, %v1033
          %v1035 = vpop.f32.mrb[0].mxu0
          %v1036 = vpop.f32.mrb[0].mxu0
          %v1037 = vadd.f32 0.0, %v1036
          %v1038 = vpop.f32.mrb[0].mxu0
          %1039 = vmatprep.mubr.bf16.mxu0 %v514
          %1040 = vmatmul.mubr.bf16.gmra.mrb[0].mxu0 %v513
          %v1041 = vpop.f32.mrb[0].mxu0
          %v1042 = vadd.f32 0.0, %v1041
          %v1043 = vpop.f32.mrb[0].mxu0
          %v1044 = vpop.f32.mrb[0].mxu0
          %v1045 = vadd.f32 0.0, %v1044
          %v1046 = vpop.f32.mrb[0].mxu0
          %1047 = vmatprep.mubr.bf16.mxu0 %v516
          %1048 = vmatmul.mubr.bf16.gmra.mrb[0].mxu0 %v515
          %v1049 = vpop.f32.mrb[0].mxu0
          %v1050 = vadd.f32 0.0, %v1049
          %v1051 = vpop.f32.mrb[0].mxu0
          %v1052 = vpop.f32.mrb[0].mxu0
          %v1053 = vadd.f32 0.0, %v1052
          %v1054 = vpop.f32.mrb[0].mxu0
          %1055 = vmatprep.mubr.bf16.mxu0 %v518
          %1056 = vmatmul.mubr.bf16.gmra.mrb[0].mxu0 %v517
          %v1057 = vpop.f32.mrb[0].mxu0
          %v1058 = vadd.f32 0.0, %v1057
          %v1059 = vpop.f32.mrb[0].mxu0
          %v1060 = vpop.f32.mrb[0].mxu0
          %v1061 = vadd.f32 0.0, %v1060
          %v1062 = vpop.f32.mrb[0].mxu0
          %1063 = vmatprep.mubr.bf16.mxu0 %v520
          %1064 = vmatmul.mubr.bf16.gmra.mrb[0].mxu0 %v519
          %v1065 = vpop.f32.mrb[0].mxu0
          %v1066 = vadd.f32 0.0, %v1065
          %v1067 = vpop.f32.mrb[0].mxu0
          %v1068 = vpop.f32.mrb[0].mxu0
          %v1069 = vadd.f32 0.0, %v1068
          %v1070 = vpop.f32.mrb[0].mxu0
          %1071 = vmatprep.mubr.bf16.mxu0 %v522
          %1072 = vmatmul.mubr.bf16.gmra.mrb[0].mxu0 %v521
          %v1073 = vpop.f32.mrb[0].mxu0
          %v1074 = vadd.f32 0.0, %v1073
          %v1075 = vpop.f32.mrb[0].mxu0
          %v1076 = vpop.f32.mrb[0].mxu0
          %v1077 = vadd.f32 0.0, %v1076
          %v1078 = vpop.f32.mrb[0].mxu0
          %1079 = vmatprep.mubr.bf16.mxu0 %v524
          %1080 = vmatmul.mubr.bf16.gmra.mrb[0].mxu0 %v523
          %v1081 = vpop.f32.mrb[0].mxu0
          %v1082 = vadd.f32 0.0, %v1081
          %v1083 = vpop.f32.mrb[0].mxu0
          %v1084 = vpop.f32.mrb[0].mxu0
          %v1085 = vadd.f32 0.0, %v1084
          %v1086 = vpop.f32.mrb[0].mxu0
          %1087 = vmatprep.mubr.bf16.mxu0 %v526
          %1088 = vmatmul.mubr.bf16.gmra.mrb[0].mxu0 %v525
          %v1089 = vpop.f32.mrb[0].mxu0
          %v1090 = vadd.f32 0.0, %v1089
          %v1091 = vpop.f32.mrb[0].mxu0
          %v1092 = vpop.f32.mrb[0].mxu0
          %v1093 = vadd.f32 0.0, %v1092
          %v1094 = vpop.f32.mrb[0].mxu0
          %1095 = vmatprep.mubr.bf16.mxu0 %v528
          %1096 = vmatmul.mubr.bf16.gmra.mrb[0].mxu0 %v527
          %v1097 = vpop.f32.mrb[0].mxu0
          %v1098 = vadd.f32 0.0, %v1097
          %v1099 = vpop.f32.mrb[0].mxu0
          %v1100 = vpop.f32.mrb[0].mxu0
          %v1101 = vadd.f32 0.0, %v1100
          %v1102 = vpop.f32.mrb[0].mxu0
          %1103 = vmatprep.mubr.bf16.mxu0 %v530
          %1104 = vmatmul.mubr.bf16.gmra.mrb[0].mxu0 %v529
          %v1105 = vpop.f32.mrb[0].mxu0
          %v1106 = vadd.f32 0.0, %v1105
          %v1107 = vpop.f32.mrb[0].mxu0
          %v1108 = vpop.f32.mrb[0].mxu0
          %v1109 = vadd.f32 0.0, %v1108
          %v1110 = vpop.f32.mrb[0].mxu0
          %1111 = vmatprep.mubr.bf16.mxu0 %v532
          %1112 = vmatmul.mubr.bf16.gmra.mrb[0].mxu0 %v531
          %v1113 = vpop.f32.mrb[0].mxu0
          %v1114 = vadd.f32 0.0, %v1113
          %v1115 = vpop.f32.mrb[0].mxu0
          %v1116 = vpop.f32.mrb[0].mxu0
          %v1117 = vadd.f32 0.0, %v1116
          %v1118 = vpop.f32.mrb[0].mxu0
          %1119 = vmatprep.mubr.bf16.mxu0 %v534
          %1120 = vmatmul.mubr.bf16.gmra.mrb[0].mxu0 %v533
          %v1121 = vpop.f32.mrb[0].mxu0
          %v1122 = vadd.f32 0.0, %v1121
          %v1123 = vpop.f32.mrb[0].mxu0
          %v1124 = vpop.f32.mrb[0].mxu0
          %v1125 = vadd.f32 0.0, %v1124
          %v1126 = vpop.f32.mrb[0].mxu0
          %1127 = vmatprep.mubr.bf16.mxu0 %v536
          %1128 = vmatmul.mubr.bf16.gmra.mrb[0].mxu0 %v535
          %v1129 = vpop.f32.mrb[0].mxu0
          %v1130 = vadd.f32 0.0, %v1129
          %v1131 = vpop.f32.mrb[0].mxu0
          %v1132 = vpop.f32.mrb[0].mxu0
          %v1133 = vadd.f32 0.0, %v1132
          %v1134 = vpop.f32.mrb[0].mxu0
          %1135 = vmatprep.mubr.bf16.mxu0 %v538
          %1136 = vmatmul.mubr.bf16.gmra.mrb[0].mxu0 %v537
          %v1137 = vpop.f32.mrb[0].mxu0
          %v1138 = vadd.f32 0.0, %v1137
          %v1139 = vpop.f32.mrb[0].mxu0
          %v1140 = vpop.f32.mrb[0].mxu0
          %v1141 = vadd.f32 0.0, %v1140
          %v1142 = vpop.f32.mrb[0].mxu0
          %1143 = vmatprep.mubr.bf16.mxu0 %v540
          %1144 = vmatmul.mubr.bf16.gmra.mrb[0].mxu0 %v539
          %v1145 = vpop.f32.mrb[0].mxu0
          %v1146 = vadd.f32 0.0, %v1145
          %v1147 = vpop.f32.mrb[0].mxu0
          %v1148 = vpop.f32.mrb[0].mxu0
          %v1149 = vadd.f32 0.0, %v1148
          %v1150 = vpop.f32.mrb[0].mxu0
          %1151 = vdwg.mxu0
          %v1152 = vadd.f32 %v939, %v1026
          %v1153 = vadd.f32 %v940, %v1029
          %v1154 = vadd.f32 %v941, %v1034
          %v1155 = vadd.f32 %v942, %v1037
          %v1156 = vadd.f32 %v943, %v1042
          %v1157 = vadd.f32 %v944, %v1045
          %v1158 = vadd.f32 %v945, %v1050
          %v1159 = vadd.f32 %v946, %v1053
          %v1160 = vadd.f32 %v947, %v1058
          %v1161 = vadd.f32 %v948, %v1061
          %v1162 = vadd.f32 %v949, %v1066
          %v1163 = vadd.f32 %v950, %v1069
          %v1164 = vadd.f32 %v951, %v1074
          %v1165 = vadd.f32 %v952, %v1077
          %v1166 = vadd.f32 %v953, %v1082
          %v1167 = vadd.f32 %v954, %v1085
          %v1168 = vadd.f32 %v955, %v1090
          %v1169 = vadd.f32 %v956, %v1093
          %v1170 = vadd.f32 %v957, %v1098
          %v1171 = vadd.f32 %v958, %v1101
          %v1172 = vadd.f32 %v959, %v1106
          %v1173 = vadd.f32 %v960, %v1109
          %v1174 = vadd.f32 %v961, %v1114
          %v1175 = vadd.f32 %v962, %v1117
          %v1176 = vadd.f32 %v963, %v1122
          %v1177 = vadd.f32 %v964, %v1125
          %v1178 = vadd.f32 %v965, %v1130
          %v1179 = vadd.f32 %v966, %v1133
          %v1180 = vadd.f32 %v967, %v1138
          %v1181 = vadd.f32 %v968, %v1141
          %v1182 = vadd.f32 %v969, %v1146
          %v1183 = vadd.f32 %v970, %v1149
          %1184 = vst [vmem:[#allocation3] sm:$0xff] %v1152
          %1185 = vst [vmem:[#allocation3 + $0x8] sm:$0xff] %v1153
          %1186 = vst [vmem:[#allocation3 + $0x10] sm:$0xff] %v1154
          %1187 = vst [vmem:[#allocation3 + $0x18] sm:$0xff] %v1155
          %1188 = vst [vmem:[#allocation3 + $0x20] sm:$0xff] %v1156
          %1189 = vst [vmem:[#allocation3 + $0x28] sm:$0xff] %v1157
          %1190 = vst [vmem:[#allocation3 + $0x30] sm:$0xff] %v1158
          %1191 = vst [vmem:[#allocation3 + $0x38] sm:$0xff] %v1159
          %1192 = vst [vmem:[#allocation3 + $0x40] sm:$0xff] %v1160
          %1193 = vst [vmem:[#allocation3 + $0x48] sm:$0xff] %v1161
          %1194 = vst [vmem:[#allocation3 + $0x50] sm:$0xff] %v1162
          %1195 = vst [vmem:[#allocation3 + $0x58] sm:$0xff] %v1163
          %1196 = vst [vmem:[#allocation3 + $0x60] sm:$0xff] %v1164
          %1197 = vst [vmem:[#allocation3 + $0x68] sm:$0xff] %v1165
          %1198 = vst [vmem:[#allocation3 + $0x70] sm:$0xff] %v1166
          %1199 = vst [vmem:[#allocation3 + $0x78] sm:$0xff] %v1167
          %1200 = vst [vmem:[#allocation3 + $0x80] sm:$0xff] %v1168
          %1201 = vst [vmem:[#allocation3 + $0x88] sm:$0xff] %v1169
          %1202 = vst [vmem:[#allocation3 + $0x90] sm:$0xff] %v1170
          %1203 = vst [vmem:[#allocation3 + $0x98] sm:$0xff] %v1171
          %1204 = vst [vmem:[#allocation3 + $0xa0] sm:$0xff] %v1172
          %1205 = vst [vmem:[#allocation3 + $0xa8] sm:$0xff] %v1173
          %1206 = vst [vmem:[#allocation3 + $0xb0] sm:$0xff] %v1174
          %1207 = vst [vmem:[#allocation3 + $0xb8] sm:$0xff] %v1175
          %1208 = vst [vmem:[#allocation3 + $0xc0] sm:$0xff] %v1176
          %1209 = vst [vmem:[#allocation3 + $0xc8] sm:$0xff] %v1177
          %1210 = vst [vmem:[#allocation3 + $0xd0] sm:$0xff] %v1178
          %1211 = vst [vmem:[#allocation3 + $0xd8] sm:$0xff] %v1179
          %1212 = vst [vmem:[#allocation3 + $0xe0] sm:$0xff] %v1180
          %1213 = vst [vmem:[#allocation3 + $0xe8] sm:$0xff] %v1181
          %1214 = vst [vmem:[#allocation3 + $0xf0] sm:$0xff] %v1182
          %1215 = vst [vmem:[#allocation3 + $0xf8] sm:$0xff] %v1183
        $region84: #{tpu_custom_call.1} parent=55 // pred_fallthru
          _
        %p1216 = pnand %p542, %p457
        %p1217 = pneg %p1216
        // Predicated region
        $region85: #{tpu_custom_call.1} parent=55 // pred_check
          _
        $region86: #{tpu_custom_call.1} parent=55 // pred_check_branch
          %1219 = sbr.rel (%p1216) target = $region88
        $region87: #{tpu_custom_call.1} parent=55 // pred_region
          %s1220 = smul.u32 %s32, 256
          %v1221 = vld [vmem:[#allocation3] sm:$0xff]
          %v1222 = vld [vmem:[#allocation3 + $0x8] sm:$0xff]
          %v1223 = vld [vmem:[#allocation3 + $0x10] sm:$0xff]
          %v1224 = vld [vmem:[#allocation3 + $0x18] sm:$0xff]
          %v1225 = vld [vmem:[#allocation3 + $0x20] sm:$0xff]
          %v1226 = vld [vmem:[#allocation3 + $0x28] sm:$0xff]
          %v1227 = vld [vmem:[#allocation3 + $0x30] sm:$0xff]
          %v1228 = vld [vmem:[#allocation3 + $0x38] sm:$0xff]
          %v1229 = vld [vmem:[#allocation3 + $0x40] sm:$0xff]
          %v1230 = vld [vmem:[#allocation3 + $0x48] sm:$0xff]
          %v1231 = vld [vmem:[#allocation3 + $0x50] sm:$0xff]
          %v1232 = vld [vmem:[#allocation3 + $0x58] sm:$0xff]
          %v1233 = vld [vmem:[#allocation3 + $0x60] sm:$0xff]
          %v1234 = vld [vmem:[#allocation3 + $0x68] sm:$0xff]
          %v1235 = vld [vmem:[#allocation3 + $0x70] sm:$0xff]
          %v1236 = vld [vmem:[#allocation3 + $0x78] sm:$0xff]
          %v1237 = vld [vmem:[#allocation3 + $0x80] sm:$0xff]
          %v1238 = vld [vmem:[#allocation3 + $0x88] sm:$0xff]
          %v1239 = vld [vmem:[#allocation3 + $0x90] sm:$0xff]
          %v1240 = vld [vmem:[#allocation3 + $0x98] sm:$0xff]
          %v1241 = vld [vmem:[#allocation3 + $0xa0] sm:$0xff]
          %v1242 = vld [vmem:[#allocation3 + $0xa8] sm:$0xff]
          %v1243 = vld [vmem:[#allocation3 + $0xb0] sm:$0xff]
          %v1244 = vld [vmem:[#allocation3 + $0xb8] sm:$0xff]
          %v1245 = vld [vmem:[#allocation3 + $0xc0] sm:$0xff]
          %v1246 = vld [vmem:[#allocation3 + $0xc8] sm:$0xff]
          %v1247 = vld [vmem:[#allocation3 + $0xd0] sm:$0xff]
          %v1248 = vld [vmem:[#allocation3 + $0xd8] sm:$0xff]
          %v1249 = vld [vmem:[#allocation3 + $0xe0] sm:$0xff]
          %v1250 = vld [vmem:[#allocation3 + $0xe8] sm:$0xff]
          %v1251 = vld [vmem:[#allocation3 + $0xf0] sm:$0xff]
          %v1252 = vld [vmem:[#allocation3 + $0xf8] sm:$0xff]
          %v1253 = vld [vmem:[%s452] sm:$0xff]
          %v1254 = vld [vmem:[%s452 + $0x8] sm:$0xff]
          %v1255 = vld [vmem:[%s452 + $0x10] sm:$0xff]
          %v1256 = vld [vmem:[%s452 + $0x18] sm:$0xff]
          %v1257 = vld [vmem:[%s452 + $0x20] sm:$0xff]
          %v1258 = vld [vmem:[%s452 + $0x28] sm:$0xff]
          %v1259 = vld [vmem:[%s452 + $0x30] sm:$0xff]
          %v1260 = vld [vmem:[%s452 + $0x38] sm:$0xff]
          %v1261 = vld [vmem:[%s452 + $0x40] sm:$0xff]
          %v1262 = vld [vmem:[%s452 + $0x48] sm:$0xff]
          %v1263 = vld [vmem:[%s452 + $0x50] sm:$0xff]
          %v1264 = vld [vmem:[%s452 + $0x58] sm:$0xff]
          %v1265 = vld [vmem:[%s452 + $0x60] sm:$0xff]
          %v1266 = vld [vmem:[%s452 + $0x68] sm:$0xff]
          %v1267 = vld [vmem:[%s452 + $0x70] sm:$0xff]
          %v1268 = vld [vmem:[%s452 + $0x78] sm:$0xff]
          %v1269 = vld [vmem:[%s452 + $0x80] sm:$0xff]
          %v1270 = vld [vmem:[%s452 + $0x88] sm:$0xff]
          %v1271 = vld [vmem:[%s452 + $0x90] sm:$0xff]
          %v1272 = vld [vmem:[%s452 + $0x98] sm:$0xff]
          %v1273 = vld [vmem:[%s452 + $0xa0] sm:$0xff]
          %v1274 = vld [vmem:[%s452 + $0xa8] sm:$0xff]
          %v1275 = vld [vmem:[%s452 + $0xb0] sm:$0xff]
          %v1276 = vld [vmem:[%s452 + $0xb8] sm:$0xff]
          %v1277 = vld [vmem:[%s452 + $0xc0] sm:$0xff]
          %v1278 = vld [vmem:[%s452 + $0xc8] sm:$0xff]
          %v1279 = vld [vmem:[%s452 + $0xd0] sm:$0xff]
          %v1280 = vld [vmem:[%s452 + $0xd8] sm:$0xff]
          %v1281 = vld [vmem:[%s452 + $0xe0] sm:$0xff]
          %v1282 = vld [vmem:[%s452 + $0xe8] sm:$0xff]
          %v1283 = vld [vmem:[%s452 + $0xf0] sm:$0xff]
          %v1284 = vld [vmem:[%s452 + $0xf8] sm:$0xff]
          %1286 = vset.pattern.permute.xlu0 0
          %1287 = vperm.xlu0 %1286, %v1253
          %v1288 = vpop.permute.xlu0 %1287
          %1291 = vset.pattern.permute.xlu0 0
          %1292 = vperm.xlu0 %1291, %v1254
          %v1293 = vpop.permute.xlu0 %1292
          %1296 = vset.pattern.permute.xlu0 0
          %1297 = vperm.xlu0 %1296, %v1255
          %v1298 = vpop.permute.xlu0 %1297
          %1301 = vset.pattern.permute.xlu0 0
          %1302 = vperm.xlu0 %1301, %v1256
          %v1303 = vpop.permute.xlu0 %1302
          %1306 = vset.pattern.permute.xlu0 0
          %1307 = vperm.xlu0 %1306, %v1257
          %v1308 = vpop.permute.xlu0 %1307
          %1311 = vset.pattern.permute.xlu0 0
          %1312 = vperm.xlu0 %1311, %v1258
          %v1313 = vpop.permute.xlu0 %1312
          %1316 = vset.pattern.permute.xlu0 0
          %1317 = vperm.xlu0 %1316, %v1259
          %v1318 = vpop.permute.xlu0 %1317
          %1321 = vset.pattern.permute.xlu0 0
          %1322 = vperm.xlu0 %1321, %v1260
          %v1323 = vpop.permute.xlu0 %1322
          %1326 = vset.pattern.permute.xlu0 0
          %1327 = vperm.xlu0 %1326, %v1261
          %v1328 = vpop.permute.xlu0 %1327
          %1331 = vset.pattern.permute.xlu0 0
          %1332 = vperm.xlu0 %1331, %v1262
          %v1333 = vpop.permute.xlu0 %1332
          %1336 = vset.pattern.permute.xlu0 0
          %1337 = vperm.xlu0 %1336, %v1263
          %v1338 = vpop.permute.xlu0 %1337
          %1341 = vset.pattern.permute.xlu0 0
          %1342 = vperm.xlu0 %1341, %v1264
          %v1343 = vpop.permute.xlu0 %1342
          %1346 = vset.pattern.permute.xlu0 0
          %1347 = vperm.xlu0 %1346, %v1265
          %v1348 = vpop.permute.xlu0 %1347
          %1351 = vset.pattern.permute.xlu0 0
          %1352 = vperm.xlu0 %1351, %v1266
          %v1353 = vpop.permute.xlu0 %1352
          %1356 = vset.pattern.permute.xlu0 0
          %1357 = vperm.xlu0 %1356, %v1267
          %v1358 = vpop.permute.xlu0 %1357
          %1361 = vset.pattern.permute.xlu0 0
          %1362 = vperm.xlu0 %1361, %v1268
          %v1363 = vpop.permute.xlu0 %1362
          %1366 = vset.pattern.permute.xlu0 0
          %1367 = vperm.xlu0 %1366, %v1269
          %v1368 = vpop.permute.xlu0 %1367
          %1371 = vset.pattern.permute.xlu0 0
          %1372 = vperm.xlu0 %1371, %v1270
          %v1373 = vpop.permute.xlu0 %1372
          %1376 = vset.pattern.permute.xlu0 0
          %1377 = vperm.xlu0 %1376, %v1271
          %v1378 = vpop.permute.xlu0 %1377
          %1381 = vset.pattern.permute.xlu0 0
          %1382 = vperm.xlu0 %1381, %v1272
          %v1383 = vpop.permute.xlu0 %1382
          %1386 = vset.pattern.permute.xlu0 0
          %1387 = vperm.xlu0 %1386, %v1273
          %v1388 = vpop.permute.xlu0 %1387
          %1391 = vset.pattern.permute.xlu0 0
          %1392 = vperm.xlu0 %1391, %v1274
          %v1393 = vpop.permute.xlu0 %1392
          %1396 = vset.pattern.permute.xlu0 0
          %1397 = vperm.xlu0 %1396, %v1275
          %v1398 = vpop.permute.xlu0 %1397
          %1401 = vset.pattern.permute.xlu0 0
          %1402 = vperm.xlu0 %1401, %v1276
          %v1403 = vpop.permute.xlu0 %1402
          %1406 = vset.pattern.permute.xlu0 0
          %1407 = vperm.xlu0 %1406, %v1277
          %v1408 = vpop.permute.xlu0 %1407
          %1411 = vset.pattern.permute.xlu0 0
          %1412 = vperm.xlu0 %1411, %v1278
          %v1413 = vpop.permute.xlu0 %1412
          %1416 = vset.pattern.permute.xlu0 0
          %1417 = vperm.xlu0 %1416, %v1279
          %v1418 = vpop.permute.xlu0 %1417
          %1421 = vset.pattern.permute.xlu0 0
          %1422 = vperm.xlu0 %1421, %v1280
          %v1423 = vpop.permute.xlu0 %1422
          %1426 = vset.pattern.permute.xlu0 0
          %1427 = vperm.xlu0 %1426, %v1281
          %v1428 = vpop.permute.xlu0 %1427
          %1431 = vset.pattern.permute.xlu0 0
          %1432 = vperm.xlu0 %1431, %v1282
          %v1433 = vpop.permute.xlu0 %1432
          %1436 = vset.pattern.permute.xlu0 0
          %1437 = vperm.xlu0 %1436, %v1283
          %v1438 = vpop.permute.xlu0 %1437
          %1441 = vset.pattern.permute.xlu0 0
          %1442 = vperm.xlu0 %1441, %v1284
          %v1443 = vpop.permute.xlu0 %1442
          %v1445 = vmul.f32 %v1221, %v1288
          %v1446 = vmul.f32 %v1222, %v1293
          %v1447 = vmul.f32 %v1223, %v1298
          %v1448 = vmul.f32 %v1224, %v1303
          %v1449 = vmul.f32 %v1225, %v1308
          %v1450 = vmul.f32 %v1226, %v1313
          %v1451 = vmul.f32 %v1227, %v1318
          %v1452 = vmul.f32 %v1228, %v1323
          %v1453 = vmul.f32 %v1229, %v1328
          %v1454 = vmul.f32 %v1230, %v1333
          %v1455 = vmul.f32 %v1231, %v1338
          %v1456 = vmul.f32 %v1232, %v1343
          %v1457 = vmul.f32 %v1233, %v1348
          %v1458 = vmul.f32 %v1234, %v1353
          %v1459 = vmul.f32 %v1235, %v1358
          %v1460 = vmul.f32 %v1236, %v1363
          %v1461 = vmul.f32 %v1237, %v1368
          %v1462 = vmul.f32 %v1238, %v1373
          %v1463 = vmul.f32 %v1239, %v1378
          %v1464 = vmul.f32 %v1240, %v1383
          %v1465 = vmul.f32 %v1241, %v1388
          %v1466 = vmul.f32 %v1242, %v1393
          %v1467 = vmul.f32 %v1243, %v1398
          %v1468 = vmul.f32 %v1244, %v1403
          %v1469 = vmul.f32 %v1245, %v1408
          %v1470 = vmul.f32 %v1246, %v1413
          %v1471 = vmul.f32 %v1247, %v1418
          %v1472 = vmul.f32 %v1248, %v1423
          %v1473 = vmul.f32 %v1249, %v1428
          %v1474 = vmul.f32 %v1250, %v1433
          %v1475 = vmul.f32 %v1251, %v1438
          %v1476 = vmul.f32 %v1252, %v1443
          %v1477 = vpack.c.bf16 %v1446, %v1445
          %v1478 = vpack.c.bf16 %v1448, %v1447
          %v1479 = vpack.c.bf16 %v1450, %v1449
          %v1480 = vpack.c.bf16 %v1452, %v1451
          %v1481 = vpack.c.bf16 %v1454, %v1453
          %v1482 = vpack.c.bf16 %v1456, %v1455
          %v1483 = vpack.c.bf16 %v1458, %v1457
          %v1484 = vpack.c.bf16 %v1460, %v1459
          %v1485 = vpack.c.bf16 %v1462, %v1461
          %v1486 = vpack.c.bf16 %v1464, %v1463
          %v1487 = vpack.c.bf16 %v1466, %v1465
          %v1488 = vpack.c.bf16 %v1468, %v1467
          %v1489 = vpack.c.bf16 %v1470, %v1469
          %v1490 = vpack.c.bf16 %v1472, %v1471
          %v1491 = vpack.c.bf16 %v1474, %v1473
          %v1492 = vpack.c.bf16 %v1476, %v1475
          %v1493 = vld [vmem:[#allocation4] sm:$0xf]
          %v1494 = vld [vmem:[#allocation4 + $0x4] sm:$0xf]
          %v1495 = vld [vmem:[#allocation4 + $0x8] sm:$0xf]
          %v1496 = vld [vmem:[#allocation4 + $0xc] sm:$0xf]
          %v1497 = vld [vmem:[#allocation4 + $0x10] sm:$0xf]
          %v1498 = vld [vmem:[#allocation4 + $0x14] sm:$0xf]
          %v1499 = vld [vmem:[#allocation4 + $0x18] sm:$0xf]
          %v1500 = vld [vmem:[#allocation4 + $0x1c] sm:$0xf]
          %v1501 = vld [vmem:[#allocation4 + $0x20] sm:$0xf]
          %v1502 = vld [vmem:[#allocation4 + $0x24] sm:$0xf]
          %v1503 = vld [vmem:[#allocation4 + $0x28] sm:$0xf]
          %v1504 = vld [vmem:[#allocation4 + $0x2c] sm:$0xf]
          %v1505 = vld [vmem:[#allocation4 + $0x30] sm:$0xf]
          %v1506 = vld [vmem:[#allocation4 + $0x34] sm:$0xf]
          %v1507 = vld [vmem:[#allocation4 + $0x38] sm:$0xf]
          %v1508 = vld [vmem:[#allocation4 + $0x3c] sm:$0xf]
          %s1509 = sshra.s32 %s1220, 3
          %s1510 = sand.u32 %s1220, 7
          %s1511 = smul.addr %s1509, 4
          %s1512 = scalar_lea.vmem %s1, %s1511
          %v1513 = vld [vmem:[%s1512] sm:$0xf]
          %v1514 = vld [vmem:[%s1512 + $0x4] sm:$0xf]
          %v1515 = vld [vmem:[%s1512 + $0x8] sm:$0xf]
          %v1516 = vld [vmem:[%s1512 + $0xc] sm:$0xf]
          %v1517 = vld [vmem:[%s1512 + $0x10] sm:$0xf]
          %v1518 = vld [vmem:[%s1512 + $0x14] sm:$0xf]
          %v1519 = vld [vmem:[%s1512 + $0x18] sm:$0xf]
          %v1520 = vld [vmem:[%s1512 + $0x1c] sm:$0xf]
          %v1521 = vld [vmem:[%s1512 + $0x20] sm:$0xf]
          %v1522 = vld [vmem:[%s1512 + $0x24] sm:$0xf]
          %v1523 = vld [vmem:[%s1512 + $0x28] sm:$0xf]
          %v1524 = vld [vmem:[%s1512 + $0x2c] sm:$0xf]
          %v1525 = vld [vmem:[%s1512 + $0x30] sm:$0xf]
          %v1526 = vld [vmem:[%s1512 + $0x34] sm:$0xf]
          %v1527 = vld [vmem:[%s1512 + $0x38] sm:$0xf]
          %v1528 = vld [vmem:[%s1512 + $0x3c] sm:$0xf]
          %v1529 = vld [vmem:[%s1512 + $0x40] sm:$0xf]
          %v1530 = vld [vmem:[%s1512 + $0x44] sm:$0xf]
          %v1531 = vld [vmem:[%s1512 + $0x48] sm:$0xf]
          %v1532 = vld [vmem:[%s1512 + $0x4c] sm:$0xf]
          %v1533 = vld [vmem:[%s1512 + $0x50] sm:$0xf]
          %v1534 = vld [vmem:[%s1512 + $0x54] sm:$0xf]
          %v1535 = vld [vmem:[%s1512 + $0x58] sm:$0xf]
          %v1536 = vld [vmem:[%s1512 + $0x5c] sm:$0xf]
          %v1537 = vld [vmem:[%s1512 + $0x60] sm:$0xf]
          %v1538 = vld [vmem:[%s1512 + $0x64] sm:$0xf]
          %v1539 = vld [vmem:[%s1512 + $0x68] sm:$0xf]
          %v1540 = vld [vmem:[%s1512 + $0x6c] sm:$0xf]
          %v1541 = vld [vmem:[%s1512 + $0x70] sm:$0xf]
          %v1542 = vld [vmem:[%s1512 + $0x74] sm:$0xf]
          %v1543 = vld [vmem:[%s1512 + $0x78] sm:$0xf]
          %v1544 = vld [vmem:[%s1512 + $0x7c] sm:$0xf]
          %v1545 = vld [vmem:[#allocation7] sm:$0xf]
          %v1546 = vld [vmem:[#allocation7 + $0x4] sm:$0xf]
          %v1547 = vld [vmem:[#allocation7 + $0x8] sm:$0xf]
          %v1548 = vld [vmem:[#allocation7 + $0xc] sm:$0xf]
          %v1549 = vld [vmem:[#allocation7 + $0x10] sm:$0xf]
          %v1550 = vld [vmem:[#allocation7 + $0x14] sm:$0xf]
          %v1551 = vld [vmem:[#allocation7 + $0x18] sm:$0xf]
          %v1552 = vld [vmem:[#allocation7 + $0x1c] sm:$0xf]
          %v1553 = vld [vmem:[#allocation7 + $0x20] sm:$0xf]
          %v1554 = vld [vmem:[#allocation7 + $0x24] sm:$0xf]
          %v1555 = vld [vmem:[#allocation7 + $0x28] sm:$0xf]
          %v1556 = vld [vmem:[#allocation7 + $0x2c] sm:$0xf]
          %v1557 = vld [vmem:[#allocation7 + $0x30] sm:$0xf]
          %v1558 = vld [vmem:[#allocation7 + $0x34] sm:$0xf]
          %v1559 = vld [vmem:[#allocation7 + $0x38] sm:$0xf]
          %v1560 = vld [vmem:[#allocation7 + $0x3c] sm:$0xf]
          %v1593 = vunpack.c.l.b16 %v1513
          %v1594 = vunpack.c.l.b16 %v1514
          %v1595 = vunpack.c.l.b16 %v1515
          %v1596 = vunpack.c.l.b16 %v1516
          %v1597 = vunpack.c.l.b16 %v1517
          %v1598 = vunpack.c.l.b16 %v1518
          %v1599 = vunpack.c.l.b16 %v1519
          %v1600 = vunpack.c.l.b16 %v1520
          %v1601 = vunpack.c.l.b16 %v1521
          %v1602 = vunpack.c.l.b16 %v1522
          %v1603 = vunpack.c.l.b16 %v1523
          %v1604 = vunpack.c.l.b16 %v1524
          %v1605 = vunpack.c.l.b16 %v1525
          %v1606 = vunpack.c.l.b16 %v1526
          %v1607 = vunpack.c.l.b16 %v1527
          %v1608 = vunpack.c.l.b16 %v1528
          %v1609 = vunpack.c.l.b16 %v1529
          %v1610 = vunpack.c.l.b16 %v1530
          %v1611 = vunpack.c.l.b16 %v1531
          %v1612 = vunpack.c.l.b16 %v1532
          %v1613 = vunpack.c.l.b16 %v1533
          %v1614 = vunpack.c.l.b16 %v1534
          %v1615 = vunpack.c.l.b16 %v1535
          %v1616 = vunpack.c.l.b16 %v1536
          %v1617 = vunpack.c.l.b16 %v1537
          %v1618 = vunpack.c.l.b16 %v1538
          %v1619 = vunpack.c.l.b16 %v1539
          %v1620 = vunpack.c.l.b16 %v1540
          %v1621 = vunpack.c.l.b16 %v1541
          %v1622 = vunpack.c.l.b16 %v1542
          %v1623 = vunpack.c.l.b16 %v1543
          %v1624 = vunpack.c.l.b16 %v1544
          %v1625 = vpack.c.b16 %v1594, %v1593
          %v1626 = vpack.c.b16 %v1596, %v1595
          %v1627 = vpack.c.b16 %v1598, %v1597
          %v1628 = vpack.c.b16 %v1600, %v1599
          %v1629 = vpack.c.b16 %v1602, %v1601
          %v1630 = vpack.c.b16 %v1604, %v1603
          %v1631 = vpack.c.b16 %v1606, %v1605
          %v1632 = vpack.c.b16 %v1608, %v1607
          %v1633 = vpack.c.b16 %v1610, %v1609
          %v1634 = vpack.c.b16 %v1612, %v1611
          %v1635 = vpack.c.b16 %v1614, %v1613
          %v1636 = vpack.c.b16 %v1616, %v1615
          %v1637 = vpack.c.b16 %v1618, %v1617
          %v1638 = vpack.c.b16 %v1620, %v1619
          %v1639 = vpack.c.b16 %v1622, %v1621
          %v1640 = vpack.c.b16 %v1624, %v1623
          %v1673 = vunpack.c.l.b16 %v1545
          %v1674 = vunpack.c.l.b16 %v1546
          %v1675 = vunpack.c.l.b16 %v1547
          %v1676 = vunpack.c.l.b16 %v1548
          %v1677 = vunpack.c.l.b16 %v1549
          %v1678 = vunpack.c.l.b16 %v1550
          %v1679 = vunpack.c.l.b16 %v1551
          %v1680 = vunpack.c.l.b16 %v1552
          %v1681 = vunpack.c.l.b16 %v1553
          %v1682 = vunpack.c.l.b16 %v1554
          %v1683 = vunpack.c.l.b16 %v1555
          %v1684 = vunpack.c.l.b16 %v1556
          %v1685 = vunpack.c.l.b16 %v1557
          %v1686 = vunpack.c.l.b16 %v1558
          %v1687 = vunpack.c.l.b16 %v1559
          %v1688 = vunpack.c.l.b16 %v1560
          %v1689 = vpack.c.b16 %v1674, %v1673
          %v1690 = vpack.c.b16 %v1676, %v1675
          %v1691 = vpack.c.b16 %v1678, %v1677
          %v1692 = vpack.c.b16 %v1680, %v1679
          %v1693 = vpack.c.b16 %v1682, %v1681
          %v1694 = vpack.c.b16 %v1684, %v1683
          %v1695 = vpack.c.b16 %v1686, %v1685
          %v1696 = vpack.c.b16 %v1688, %v1687
          %1705 = vmatprep.subr.bf16.mxu0 0
          %1706 = vmatpush1.bf16.msra.mxu0 %v1689
          %1707 = vmatprep.subr.bf16.mxu0 0
          %1708 = vmatpush1.bf16.msra.mxu0 %v1690
          %1709 = vmatprep.subr.bf16.mxu0 0
          %1710 = vmatpush1.bf16.msra.mxu0 %v1691
          %1711 = vmatprep.subr.bf16.mxu0 0
          %1712 = vmatpush1.bf16.msra.mxu0 %v1692
          %1713 = vmatprep.subr.bf16.mxu0 0
          %1714 = vmatpush1.bf16.msra.mxu0 %v1693
          %1715 = vmatprep.subr.bf16.mxu0 0
          %1716 = vmatpush1.bf16.msra.mxu0 %v1694
          %1717 = vmatprep.subr.bf16.mxu0 0
          %1718 = vmatpush1.bf16.msra.mxu0 %v1695
          %1719 = vmatprep.subr.bf16.mxu0 0
          %1720 = vmatpush1.bf16.msra.mxu0 %v1696
          %1721 = vmatprep.subr.bf16.mxu0 0
          %1722 = vmatpush1.bf16.msra.mxu0 0
          %1723 = vmatprep.subr.bf16.mxu0 0
          %1724 = vmatpush1.bf16.msra.mxu0 0
          %1725 = vmatprep.subr.bf16.mxu0 0
          %1726 = vmatpush1.bf16.msra.mxu0 0
          %1727 = vmatprep.subr.bf16.mxu0 0
          %1728 = vmatpush1.bf16.msra.mxu0 0
          %1729 = vmatprep.subr.bf16.mxu0 0
          %1730 = vmatpush1.bf16.msra.mxu0 0
          %1731 = vmatprep.subr.bf16.mxu0 0
          %1732 = vmatpush1.bf16.msra.mxu0 0
          %1733 = vmatprep.subr.bf16.mxu0 0
          %1734 = vmatpush1.bf16.msra.mxu0 0
          %1735 = vmatprep.subr.bf16.mxu0 0
          %1736 = vmatpush1.bf16.msra.mxu0 0
          %1737 = vmatprep.mubr.bf16.mxu0 0
          %1738 = vmatmul.mubr.bf16.gmra.mrb[0].mxu0 %v1625
          %v1739 = vpop.f32.mrb[0].mxu0
          %v1740 = vadd.f32 0.0, %v1739
          %v1741 = vpop.f32.mrb[0].mxu0
          %v1742 = vpop.f32.mrb[0].mxu0
          %v1743 = vadd.f32 0.0, %v1742
          %v1744 = vpop.f32.mrb[0].mxu0
          %1745 = vmatprep.mubr.bf16.mxu0 0
          %1746 = vmatmul.mubr.bf16.gmra.mrb[0].mxu0 %v1626
          %v1747 = vpop.f32.mrb[0].mxu0
          %v1748 = vadd.f32 0.0, %v1747
          %v1749 = vpop.f32.mrb[0].mxu0
          %v1750 = vpop.f32.mrb[0].mxu0
          %v1751 = vadd.f32 0.0, %v1750
          %v1752 = vpop.f32.mrb[0].mxu0
          %1753 = vmatprep.mubr.bf16.mxu0 0
          %1754 = vmatmul.mubr.bf16.gmra.mrb[0].mxu0 %v1627
          %v1755 = vpop.f32.mrb[0].mxu0
          %v1756 = vadd.f32 0.0, %v1755
          %v1757 = vpop.f32.mrb[0].mxu0
          %v1758 = vpop.f32.mrb[0].mxu0
          %v1759 = vadd.f32 0.0, %v1758
          %v1760 = vpop.f32.mrb[0].mxu0
          %1761 = vmatprep.mubr.bf16.mxu0 0
          %1762 = vmatmul.mubr.bf16.gmra.mrb[0].mxu0 %v1628
          %v1763 = vpop.f32.mrb[0].mxu0
          %v1764 = vadd.f32 0.0, %v1763
          %v1765 = vpop.f32.mrb[0].mxu0
          %v1766 = vpop.f32.mrb[0].mxu0
          %v1767 = vadd.f32 0.0, %v1766
          %v1768 = vpop.f32.mrb[0].mxu0
          %1769 = vmatprep.mubr.bf16.mxu0 0
          %1770 = vmatmul.mubr.bf16.gmra.mrb[0].mxu0 %v1629
          %v1771 = vpop.f32.mrb[0].mxu0
          %v1772 = vadd.f32 0.0, %v1771
          %v1773 = vpop.f32.mrb[0].mxu0
          %v1774 = vpop.f32.mrb[0].mxu0
          %v1775 = vadd.f32 0.0, %v1774
          %v1776 = vpop.f32.mrb[0].mxu0
          %1777 = vmatprep.mubr.bf16.mxu0 0
          %1778 = vmatmul.mubr.bf16.gmra.mrb[0].mxu0 %v1630
          %v1779 = vpop.f32.mrb[0].mxu0
          %v1780 = vadd.f32 0.0, %v1779
          %v1781 = vpop.f32.mrb[0].mxu0
          %v1782 = vpop.f32.mrb[0].mxu0
          %v1783 = vadd.f32 0.0, %v1782
          %v1784 = vpop.f32.mrb[0].mxu0
          %1785 = vmatprep.mubr.bf16.mxu0 0
          %1786 = vmatmul.mubr.bf16.gmra.mrb[0].mxu0 %v1631
          %v1787 = vpop.f32.mrb[0].mxu0
          %v1788 = vadd.f32 0.0, %v1787
          %v1789 = vpop.f32.mrb[0].mxu0
          %v1790 = vpop.f32.mrb[0].mxu0
          %v1791 = vadd.f32 0.0, %v1790
          %v1792 = vpop.f32.mrb[0].mxu0
          %1793 = vmatprep.mubr.bf16.mxu0 0
          %1794 = vmatmul.mubr.bf16.gmra.mrb[0].mxu0 %v1632
          %v1795 = vpop.f32.mrb[0].mxu0
          %v1796 = vadd.f32 0.0, %v1795
          %v1797 = vpop.f32.mrb[0].mxu0
          %v1798 = vpop.f32.mrb[0].mxu0
          %v1799 = vadd.f32 0.0, %v1798
          %v1800 = vpop.f32.mrb[0].mxu0
          %1801 = vmatprep.mubr.bf16.mxu0 0
          %1802 = vmatmul.mubr.bf16.gmra.mrb[0].mxu0 %v1633
          %v1803 = vpop.f32.mrb[0].mxu0
          %v1804 = vadd.f32 0.0, %v1803
          %v1805 = vpop.f32.mrb[0].mxu0
          %v1806 = vpop.f32.mrb[0].mxu0
          %v1807 = vadd.f32 0.0, %v1806
          %v1808 = vpop.f32.mrb[0].mxu0
          %1809 = vmatprep.mubr.bf16.mxu0 0
          %1810 = vmatmul.mubr.bf16.gmra.mrb[0].mxu0 %v1634
          %v1811 = vpop.f32.mrb[0].mxu0
          %v1812 = vadd.f32 0.0, %v1811
          %v1813 = vpop.f32.mrb[0].mxu0
          %v1814 = vpop.f32.mrb[0].mxu0
          %v1815 = vadd.f32 0.0, %v1814
          %v1816 = vpop.f32.mrb[0].mxu0
          %1817 = vmatprep.mubr.bf16.mxu0 0
          %1818 = vmatmul.mubr.bf16.gmra.mrb[0].mxu0 %v1635
          %v1819 = vpop.f32.mrb[0].mxu0
          %v1820 = vadd.f32 0.0, %v1819
          %v1821 = vpop.f32.mrb[0].mxu0
          %v1822 = vpop.f32.mrb[0].mxu0
          %v1823 = vadd.f32 0.0, %v1822
          %v1824 = vpop.f32.mrb[0].mxu0
          %1825 = vmatprep.mubr.bf16.mxu0 0
          %1826 = vmatmul.mubr.bf16.gmra.mrb[0].mxu0 %v1636
          %v1827 = vpop.f32.mrb[0].mxu0
          %v1828 = vadd.f32 0.0, %v1827
          %v1829 = vpop.f32.mrb[0].mxu0
          %v1830 = vpop.f32.mrb[0].mxu0
          %v1831 = vadd.f32 0.0, %v1830
          %v1832 = vpop.f32.mrb[0].mxu0
          %1833 = vmatprep.mubr.bf16.mxu0 0
          %1834 = vmatmul.mubr.bf16.gmra.mrb[0].mxu0 %v1637
          %v1835 = vpop.f32.mrb[0].mxu0
          %v1836 = vadd.f32 0.0, %v1835
          %v1837 = vpop.f32.mrb[0].mxu0
          %v1838 = vpop.f32.mrb[0].mxu0
          %v1839 = vadd.f32 0.0, %v1838
          %v1840 = vpop.f32.mrb[0].mxu0
          %1841 = vmatprep.mubr.bf16.mxu0 0
          %1842 = vmatmul.mubr.bf16.gmra.mrb[0].mxu0 %v1638
          %v1843 = vpop.f32.mrb[0].mxu0
          %v1844 = vadd.f32 0.0, %v1843
          %v1845 = vpop.f32.mrb[0].mxu0
          %v1846 = vpop.f32.mrb[0].mxu0
          %v1847 = vadd.f32 0.0, %v1846
          %v1848 = vpop.f32.mrb[0].mxu0
          %1849 = vmatprep.mubr.bf16.mxu0 0
          %1850 = vmatmul.mubr.bf16.gmra.mrb[0].mxu0 %v1639
          %v1851 = vpop.f32.mrb[0].mxu0
          %v1852 = vadd.f32 0.0, %v1851
          %v1853 = vpop.f32.mrb[0].mxu0
          %v1854 = vpop.f32.mrb[0].mxu0
          %v1855 = vadd.f32 0.0, %v1854
          %v1856 = vpop.f32.mrb[0].mxu0
          %1857 = vmatprep.mubr.bf16.mxu0 0
          %1858 = vmatmul.mubr.bf16.gmra.mrb[0].mxu0 %v1640
          %v1859 = vpop.f32.mrb[0].mxu0
          %v1860 = vadd.f32 0.0, %v1859
          %v1861 = vpop.f32.mrb[0].mxu0
          %v1862 = vpop.f32.mrb[0].mxu0
          %v1863 = vadd.f32 0.0, %v1862
          %v1864 = vpop.f32.mrb[0].mxu0
          %1865 = vdwg.mxu0
          %v1882 = vunpack.c.l.b16 %v1493
          %v1883 = vunpack.c.l.b16 %v1494
          %v1884 = vunpack.c.l.b16 %v1495
          %v1885 = vunpack.c.l.b16 %v1496
          %v1886 = vunpack.c.l.b16 %v1497
          %v1887 = vunpack.c.l.b16 %v1498
          %v1888 = vunpack.c.l.b16 %v1499
          %v1889 = vunpack.c.l.b16 %v1500
          %v1890 = vunpack.c.l.b16 %v1501
          %v1891 = vunpack.c.l.b16 %v1502
          %v1892 = vunpack.c.l.b16 %v1503
          %v1893 = vunpack.c.l.b16 %v1504
          %v1894 = vunpack.c.l.b16 %v1505
          %v1895 = vunpack.c.l.b16 %v1506
          %v1896 = vunpack.c.l.b16 %v1507
          %v1897 = vunpack.c.l.b16 %v1508
          %v1898 = vpack.c.b16 %v1883, %v1882
          %v1899 = vpack.c.b16 %v1885, %v1884
          %v1900 = vpack.c.b16 %v1887, %v1886
          %v1901 = vpack.c.b16 %v1889, %v1888
          %v1902 = vpack.c.b16 %v1891, %v1890
          %v1903 = vpack.c.b16 %v1893, %v1892
          %v1904 = vpack.c.b16 %v1895, %v1894
          %v1905 = vpack.c.b16 %v1897, %v1896
          %1914 = vmatprep.subr.bf16.mxu0 0
          %1915 = vmatpush1.bf16.msra.mxu0 %v1898
          %1916 = vmatprep.subr.bf16.mxu0 0
          %1917 = vmatpush1.bf16.msra.mxu0 %v1899
          %1918 = vmatprep.subr.bf16.mxu0 0
          %1919 = vmatpush1.bf16.msra.mxu0 %v1900
          %1920 = vmatprep.subr.bf16.mxu0 0
          %1921 = vmatpush1.bf16.msra.mxu0 %v1901
          %1922 = vmatprep.subr.bf16.mxu0 0
          %1923 = vmatpush1.bf16.msra.mxu0 %v1902
          %1924 = vmatprep.subr.bf16.mxu0 0
          %1925 = vmatpush1.bf16.msra.mxu0 %v1903
          %1926 = vmatprep.subr.bf16.mxu0 0
          %1927 = vmatpush1.bf16.msra.mxu0 %v1904
          %1928 = vmatprep.subr.bf16.mxu0 0
          %1929 = vmatpush1.bf16.msra.mxu0 %v1905
          %1930 = vmatprep.subr.bf16.mxu0 0
          %1931 = vmatpush1.bf16.msra.mxu0 0
          %1932 = vmatprep.subr.bf16.mxu0 0
          %1933 = vmatpush1.bf16.msra.mxu0 0
          %1934 = vmatprep.subr.bf16.mxu0 0
          %1935 = vmatpush1.bf16.msra.mxu0 0
          %1936 = vmatprep.subr.bf16.mxu0 0
          %1937 = vmatpush1.bf16.msra.mxu0 0
          %1938 = vmatprep.subr.bf16.mxu0 0
          %1939 = vmatpush1.bf16.msra.mxu0 0
          %1940 = vmatprep.subr.bf16.mxu0 0
          %1941 = vmatpush1.bf16.msra.mxu0 0
          %1942 = vmatprep.subr.bf16.mxu0 0
          %1943 = vmatpush1.bf16.msra.mxu0 0
          %1944 = vmatprep.subr.bf16.mxu0 0
          %1945 = vmatpush1.bf16.msra.mxu0 0
          %1946 = vmatprep.mubr.bf16.mxu0 0
          %1947 = vmatmul.mubr.bf16.gmra.mrb[0].mxu0 %v1477
          %v1948 = vpop.f32.mrb[0].mxu0
          %v1949 = vadd.f32 %v1740, %v1948
          %v1950 = vpop.f32.mrb[0].mxu0
          %v1951 = vpop.f32.mrb[0].mxu0
          %v1952 = vadd.f32 %v1743, %v1951
          %v1953 = vpop.f32.mrb[0].mxu0
          %1954 = vmatprep.mubr.bf16.mxu0 0
          %1955 = vmatmul.mubr.bf16.gmra.mrb[0].mxu0 %v1478
          %v1956 = vpop.f32.mrb[0].mxu0
          %v1957 = vadd.f32 %v1748, %v1956
          %v1958 = vpop.f32.mrb[0].mxu0
          %v1959 = vpop.f32.mrb[0].mxu0
          %v1960 = vadd.f32 %v1751, %v1959
          %v1961 = vpop.f32.mrb[0].mxu0
          %1962 = vmatprep.mubr.bf16.mxu0 0
          %1963 = vmatmul.mubr.bf16.gmra.mrb[0].mxu0 %v1479
          %v1964 = vpop.f32.mrb[0].mxu0
          %v1965 = vadd.f32 %v1756, %v1964
          %v1966 = vpop.f32.mrb[0].mxu0
          %v1967 = vpop.f32.mrb[0].mxu0
          %v1968 = vadd.f32 %v1759, %v1967
          %v1969 = vpop.f32.mrb[0].mxu0
          %1970 = vmatprep.mubr.bf16.mxu0 0
          %1971 = vmatmul.mubr.bf16.gmra.mrb[0].mxu0 %v1480
          %v1972 = vpop.f32.mrb[0].mxu0
          %v1973 = vadd.f32 %v1764, %v1972
          %v1974 = vpop.f32.mrb[0].mxu0
          %v1975 = vpop.f32.mrb[0].mxu0
          %v1976 = vadd.f32 %v1767, %v1975
          %v1977 = vpop.f32.mrb[0].mxu0
          %1978 = vmatprep.mubr.bf16.mxu0 0
          %1979 = vmatmul.mubr.bf16.gmra.mrb[0].mxu0 %v1481
          %v1980 = vpop.f32.mrb[0].mxu0
          %v1981 = vadd.f32 %v1772, %v1980
          %v1982 = vpop.f32.mrb[0].mxu0
          %v1983 = vpop.f32.mrb[0].mxu0
          %v1984 = vadd.f32 %v1775, %v1983
          %v1985 = vpop.f32.mrb[0].mxu0
          %1986 = vmatprep.mubr.bf16.mxu0 0
          %1987 = vmatmul.mubr.bf16.gmra.mrb[0].mxu0 %v1482
          %v1988 = vpop.f32.mrb[0].mxu0
          %v1989 = vadd.f32 %v1780, %v1988
          %v1990 = vpop.f32.mrb[0].mxu0
          %v1991 = vpop.f32.mrb[0].mxu0
          %v1992 = vadd.f32 %v1783, %v1991
          %v1993 = vpop.f32.mrb[0].mxu0
          %1994 = vmatprep.mubr.bf16.mxu0 0
          %1995 = vmatmul.mubr.bf16.gmra.mrb[0].mxu0 %v1483
          %v1996 = vpop.f32.mrb[0].mxu0
          %v1997 = vadd.f32 %v1788, %v1996
          %v1998 = vpop.f32.mrb[0].mxu0
          %v1999 = vpop.f32.mrb[0].mxu0
          %v2000 = vadd.f32 %v1791, %v1999
          %v2001 = vpop.f32.mrb[0].mxu0
          %2002 = vmatprep.mubr.bf16.mxu0 0
          %2003 = vmatmul.mubr.bf16.gmra.mrb[0].mxu0 %v1484
          %v2004 = vpop.f32.mrb[0].mxu0
          %v2005 = vadd.f32 %v1796, %v2004
          %v2006 = vpop.f32.mrb[0].mxu0
          %v2007 = vpop.f32.mrb[0].mxu0
          %v2008 = vadd.f32 %v1799, %v2007
          %v2009 = vpop.f32.mrb[0].mxu0
          %2010 = vmatprep.mubr.bf16.mxu0 0
          %2011 = vmatmul.mubr.bf16.gmra.mrb[0].mxu0 %v1485
          %v2012 = vpop.f32.mrb[0].mxu0
          %v2013 = vadd.f32 %v1804, %v2012
          %v2014 = vpop.f32.mrb[0].mxu0
          %v2015 = vpop.f32.mrb[0].mxu0
          %v2016 = vadd.f32 %v1807, %v2015
          %v2017 = vpop.f32.mrb[0].mxu0
          %2018 = vmatprep.mubr.bf16.mxu0 0
          %2019 = vmatmul.mubr.bf16.gmra.mrb[0].mxu0 %v1486
          %v2020 = vpop.f32.mrb[0].mxu0
          %v2021 = vadd.f32 %v1812, %v2020
          %v2022 = vpop.f32.mrb[0].mxu0
          %v2023 = vpop.f32.mrb[0].mxu0
          %v2024 = vadd.f32 %v1815, %v2023
          %v2025 = vpop.f32.mrb[0].mxu0
          %2026 = vmatprep.mubr.bf16.mxu0 0
          %2027 = vmatmul.mubr.bf16.gmra.mrb[0].mxu0 %v1487
          %v2028 = vpop.f32.mrb[0].mxu0
          %v2029 = vadd.f32 %v1820, %v2028
          %v2030 = vpop.f32.mrb[0].mxu0
          %v2031 = vpop.f32.mrb[0].mxu0
          %v2032 = vadd.f32 %v1823, %v2031
          %v2033 = vpop.f32.mrb[0].mxu0
          %2034 = vmatprep.mubr.bf16.mxu0 0
          %2035 = vmatmul.mubr.bf16.gmra.mrb[0].mxu0 %v1488
          %v2036 = vpop.f32.mrb[0].mxu0
          %v2037 = vadd.f32 %v1828, %v2036
          %v2038 = vpop.f32.mrb[0].mxu0
          %v2039 = vpop.f32.mrb[0].mxu0
          %v2040 = vadd.f32 %v1831, %v2039
          %v2041 = vpop.f32.mrb[0].mxu0
          %2042 = vmatprep.mubr.bf16.mxu0 0
          %2043 = vmatmul.mubr.bf16.gmra.mrb[0].mxu0 %v1489
          %v2044 = vpop.f32.mrb[0].mxu0
          %v2045 = vadd.f32 %v1836, %v2044
          %v2046 = vpop.f32.mrb[0].mxu0
          %v2047 = vpop.f32.mrb[0].mxu0
          %v2048 = vadd.f32 %v1839, %v2047
          %v2049 = vpop.f32.mrb[0].mxu0
          %2050 = vmatprep.mubr.bf16.mxu0 0
          %2051 = vmatmul.mubr.bf16.gmra.mrb[0].mxu0 %v1490
          %v2052 = vpop.f32.mrb[0].mxu0
          %v2053 = vadd.f32 %v1844, %v2052
          %v2054 = vpop.f32.mrb[0].mxu0
          %v2055 = vpop.f32.mrb[0].mxu0
          %v2056 = vadd.f32 %v1847, %v2055
          %v2057 = vpop.f32.mrb[0].mxu0
          %2058 = vmatprep.mubr.bf16.mxu0 0
          %2059 = vmatmul.mubr.bf16.gmra.mrb[0].mxu0 %v1491
          %v2060 = vpop.f32.mrb[0].mxu0
          %v2061 = vadd.f32 %v1852, %v2060
          %v2062 = vpop.f32.mrb[0].mxu0
          %v2063 = vpop.f32.mrb[0].mxu0
          %v2064 = vadd.f32 %v1855, %v2063
          %v2065 = vpop.f32.mrb[0].mxu0
          %2066 = vmatprep.mubr.bf16.mxu0 0
          %2067 = vmatmul.mubr.bf16.gmra.mrb[0].mxu0 %v1492
          %v2068 = vpop.f32.mrb[0].mxu0
          %v2069 = vadd.f32 %v1860, %v2068
          %v2070 = vpop.f32.mrb[0].mxu0
          %v2071 = vpop.f32.mrb[0].mxu0
          %v2072 = vadd.f32 %v1863, %v2071
          %v2073 = vpop.f32.mrb[0].mxu0
          %2074 = vdwg.mxu0
          %v2075 = vld [vmem:[%s5] sm:$0x1]
          %v2077 = vlaneseq
          %v2078 = vshrl.u32 %v2077, 7
          %v2079 = vsub.s32 0, %v2078
          %v2080 = vrot.slane %v2075, %v2079
          %v2082 = vadd.f32 %v1949, %v2080
          %v2083 = vadd.f32 %v1952, %v2080
          %v2084 = vadd.f32 %v1957, %v2080
          %v2085 = vadd.f32 %v1960, %v2080
          %v2086 = vadd.f32 %v1965, %v2080
          %v2087 = vadd.f32 %v1968, %v2080
          %v2088 = vadd.f32 %v1973, %v2080
          %v2089 = vadd.f32 %v1976, %v2080
          %v2090 = vadd.f32 %v1981, %v2080
          %v2091 = vadd.f32 %v1984, %v2080
          %v2092 = vadd.f32 %v1989, %v2080
          %v2093 = vadd.f32 %v1992, %v2080
          %v2094 = vadd.f32 %v1997, %v2080
          %v2095 = vadd.f32 %v2000, %v2080
          %v2096 = vadd.f32 %v2005, %v2080
          %v2097 = vadd.f32 %v2008, %v2080
          %v2098 = vadd.f32 %v2013, %v2080
          %v2099 = vadd.f32 %v2016, %v2080
          %v2100 = vadd.f32 %v2021, %v2080
          %v2101 = vadd.f32 %v2024, %v2080
          %v2102 = vadd.f32 %v2029, %v2080
          %v2103 = vadd.f32 %v2032, %v2080
          %v2104 = vadd.f32 %v2037, %v2080
          %v2105 = vadd.f32 %v2040, %v2080
          %v2106 = vadd.f32 %v2045, %v2080
          %v2107 = vadd.f32 %v2048, %v2080
          %v2108 = vadd.f32 %v2053, %v2080
          %v2109 = vadd.f32 %v2056, %v2080
          %v2110 = vadd.f32 %v2061, %v2080
          %v2111 = vadd.f32 %v2064, %v2080
          %v2112 = vadd.f32 %v2069, %v2080
          %v2113 = vadd.f32 %v2072, %v2080
          %v2114 = vmax.f32 %v2082, 0.0
          %v2115 = vmax.f32 %v2083, 0.0
          %v2116 = vmax.f32 %v2084, 0.0
          %v2117 = vmax.f32 %v2085, 0.0
          %v2118 = vmax.f32 %v2086, 0.0
          %v2119 = vmax.f32 %v2087, 0.0
          %v2120 = vmax.f32 %v2088, 0.0
          %v2121 = vmax.f32 %v2089, 0.0
          %v2122 = vmax.f32 %v2090, 0.0
          %v2123 = vmax.f32 %v2091, 0.0
          %v2124 = vmax.f32 %v2092, 0.0
          %v2125 = vmax.f32 %v2093, 0.0
          %v2126 = vmax.f32 %v2094, 0.0
          %v2127 = vmax.f32 %v2095, 0.0
          %v2128 = vmax.f32 %v2096, 0.0
          %v2129 = vmax.f32 %v2097, 0.0
          %v2130 = vmax.f32 %v2098, 0.0
          %v2131 = vmax.f32 %v2099, 0.0
          %v2132 = vmax.f32 %v2100, 0.0
          %v2133 = vmax.f32 %v2101, 0.0
          %v2134 = vmax.f32 %v2102, 0.0
          %v2135 = vmax.f32 %v2103, 0.0
          %v2136 = vmax.f32 %v2104, 0.0
          %v2137 = vmax.f32 %v2105, 0.0
          %v2138 = vmax.f32 %v2106, 0.0
          %v2139 = vmax.f32 %v2107, 0.0
          %v2140 = vmax.f32 %v2108, 0.0
          %v2141 = vmax.f32 %v2109, 0.0
          %v2142 = vmax.f32 %v2110, 0.0
          %v2143 = vmax.f32 %v2111, 0.0
          %v2144 = vmax.f32 %v2112, 0.0
          %v2145 = vmax.f32 %v2113, 0.0
          %v2146 = vpack.c.bf16 %v2115, %v2114
          %v2147 = vpack.c.bf16 %v2117, %v2116
          %v2148 = vpack.c.bf16 %v2119, %v2118
          %v2149 = vpack.c.bf16 %v2121, %v2120
          %v2150 = vpack.c.bf16 %v2123, %v2122
          %v2151 = vpack.c.bf16 %v2125, %v2124
          %v2152 = vpack.c.bf16 %v2127, %v2126
          %v2153 = vpack.c.bf16 %v2129, %v2128
          %v2154 = vpack.c.bf16 %v2131, %v2130
          %v2155 = vpack.c.bf16 %v2133, %v2132
          %v2156 = vpack.c.bf16 %v2135, %v2134
          %v2157 = vpack.c.bf16 %v2137, %v2136
          %v2158 = vpack.c.bf16 %v2139, %v2138
          %v2159 = vpack.c.bf16 %v2141, %v2140
          %v2160 = vpack.c.bf16 %v2143, %v2142
          %v2161 = vpack.c.bf16 %v2145, %v2144
          %s2162 = sshra.s32 %s1220, 4
          %s2163 = sand.u32 %s1220, 15
          %s2164 = smul.addr %s2162, 8
          %s2165 = scalar_lea.vmem [#allocation2], %s2164
          %2166 = vst [vmem:[%s2165] sm:$0xff] %v2146
          %2167 = vst [vmem:[%s2165 + $0x8] sm:$0xff] %v2147
          %2168 = vst [vmem:[%s2165 + $0x10] sm:$0xff] %v2148
          %2169 = vst [vmem:[%s2165 + $0x18] sm:$0xff] %v2149
          %2170 = vst [vmem:[%s2165 + $0x20] sm:$0xff] %v2150
          %2171 = vst [vmem:[%s2165 + $0x28] sm:$0xff] %v2151
          %2172 = vst [vmem:[%s2165 + $0x30] sm:$0xff] %v2152
          %2173 = vst [vmem:[%s2165 + $0x38] sm:$0xff] %v2153
          %2174 = vst [vmem:[%s2165 + $0x40] sm:$0xff] %v2154
          %2175 = vst [vmem:[%s2165 + $0x48] sm:$0xff] %v2155
          %2176 = vst [vmem:[%s2165 + $0x50] sm:$0xff] %v2156
          %2177 = vst [vmem:[%s2165 + $0x58] sm:$0xff] %v2157
          %2178 = vst [vmem:[%s2165 + $0x60] sm:$0xff] %v2158
          %2179 = vst [vmem:[%s2165 + $0x68] sm:$0xff] %v2159
          %2180 = vst [vmem:[%s2165 + $0x70] sm:$0xff] %v2160
          %2181 = vst [vmem:[%s2165 + $0x78] sm:$0xff] %v2161
        $region88: #{tpu_custom_call.1} parent=55 // pred_fallthru
          _
        %p2182 = pnand %p935, %p457
        %p2183 = pneg %p2182
        // Predicated region
        $region89: #{tpu_custom_call.1} parent=55 // pred_check
          _
        $region90: #{tpu_custom_call.1} parent=55 // pred_check_branch
          %2185 = sbr.rel (%p2182) target = $region92
        $region91: #{tpu_custom_call.1} parent=55 // pred_region
          %s2186 = smul.u32 %s32, 256
          %v2187 = vld [vmem:[#allocation3] sm:$0xff]
          %v2188 = vld [vmem:[#allocation3 + $0x8] sm:$0xff]
          %v2189 = vld [vmem:[#allocation3 + $0x10] sm:$0xff]
          %v2190 = vld [vmem:[#allocation3 + $0x18] sm:$0xff]
          %v2191 = vld [vmem:[#allocation3 + $0x20] sm:$0xff]
          %v2192 = vld [vmem:[#allocation3 + $0x28] sm:$0xff]
          %v2193 = vld [vmem:[#allocation3 + $0x30] sm:$0xff]
          %v2194 = vld [vmem:[#allocation3 + $0x38] sm:$0xff]
          %v2195 = vld [vmem:[#allocation3 + $0x40] sm:$0xff]
          %v2196 = vld [vmem:[#allocation3 + $0x48] sm:$0xff]
          %v2197 = vld [vmem:[#allocation3 + $0x50] sm:$0xff]
          %v2198 = vld [vmem:[#allocation3 + $0x58] sm:$0xff]
          %v2199 = vld [vmem:[#allocation3 + $0x60] sm:$0xff]
          %v2200 = vld [vmem:[#allocation3 + $0x68] sm:$0xff]
          %v2201 = vld [vmem:[#allocation3 + $0x70] sm:$0xff]
          %v2202 = vld [vmem:[#allocation3 + $0x78] sm:$0xff]
          %v2203 = vld [vmem:[#allocation3 + $0x80] sm:$0xff]
          %v2204 = vld [vmem:[#allocation3 + $0x88] sm:$0xff]
          %v2205 = vld [vmem:[#allocation3 + $0x90] sm:$0xff]
          %v2206 = vld [vmem:[#allocation3 + $0x98] sm:$0xff]
          %v2207 = vld [vmem:[#allocation3 + $0xa0] sm:$0xff]
          %v2208 = vld [vmem:[#allocation3 + $0xa8] sm:$0xff]
          %v2209 = vld [vmem:[#allocation3 + $0xb0] sm:$0xff]
          %v2210 = vld [vmem:[#allocation3 + $0xb8] sm:$0xff]
          %v2211 = vld [vmem:[#allocation3 + $0xc0] sm:$0xff]
          %v2212 = vld [vmem:[#allocation3 + $0xc8] sm:$0xff]
          %v2213 = vld [vmem:[#allocation3 + $0xd0] sm:$0xff]
          %v2214 = vld [vmem:[#allocation3 + $0xd8] sm:$0xff]
          %v2215 = vld [vmem:[#allocation3 + $0xe0] sm:$0xff]
          %v2216 = vld [vmem:[#allocation3 + $0xe8] sm:$0xff]
          %v2217 = vld [vmem:[#allocation3 + $0xf0] sm:$0xff]
          %v2218 = vld [vmem:[#allocation3 + $0xf8] sm:$0xff]
          %v2219 = vld [vmem:[%s452] sm:$0xff]
          %v2220 = vld [vmem:[%s452 + $0x8] sm:$0xff]
          %v2221 = vld [vmem:[%s452 + $0x10] sm:$0xff]
          %v2222 = vld [vmem:[%s452 + $0x18] sm:$0xff]
          %v2223 = vld [vmem:[%s452 + $0x20] sm:$0xff]
          %v2224 = vld [vmem:[%s452 + $0x28] sm:$0xff]
          %v2225 = vld [vmem:[%s452 + $0x30] sm:$0xff]
          %v2226 = vld [vmem:[%s452 + $0x38] sm:$0xff]
          %v2227 = vld [vmem:[%s452 + $0x40] sm:$0xff]
          %v2228 = vld [vmem:[%s452 + $0x48] sm:$0xff]
          %v2229 = vld [vmem:[%s452 + $0x50] sm:$0xff]
          %v2230 = vld [vmem:[%s452 + $0x58] sm:$0xff]
          %v2231 = vld [vmem:[%s452 + $0x60] sm:$0xff]
          %v2232 = vld [vmem:[%s452 + $0x68] sm:$0xff]
          %v2233 = vld [vmem:[%s452 + $0x70] sm:$0xff]
          %v2234 = vld [vmem:[%s452 + $0x78] sm:$0xff]
          %v2235 = vld [vmem:[%s452 + $0x80] sm:$0xff]
          %v2236 = vld [vmem:[%s452 + $0x88] sm:$0xff]
          %v2237 = vld [vmem:[%s452 + $0x90] sm:$0xff]
          %v2238 = vld [vmem:[%s452 + $0x98] sm:$0xff]
          %v2239 = vld [vmem:[%s452 + $0xa0] sm:$0xff]
          %v2240 = vld [vmem:[%s452 + $0xa8] sm:$0xff]
          %v2241 = vld [vmem:[%s452 + $0xb0] sm:$0xff]
          %v2242 = vld [vmem:[%s452 + $0xb8] sm:$0xff]
          %v2243 = vld [vmem:[%s452 + $0xc0] sm:$0xff]
          %v2244 = vld [vmem:[%s452 + $0xc8] sm:$0xff]
          %v2245 = vld [vmem:[%s452 + $0xd0] sm:$0xff]
          %v2246 = vld [vmem:[%s452 + $0xd8] sm:$0xff]
          %v2247 = vld [vmem:[%s452 + $0xe0] sm:$0xff]
          %v2248 = vld [vmem:[%s452 + $0xe8] sm:$0xff]
          %v2249 = vld [vmem:[%s452 + $0xf0] sm:$0xff]
          %v2250 = vld [vmem:[%s452 + $0xf8] sm:$0xff]
          %2252 = vset.pattern.permute.xlu0 0
          %2253 = vperm.xlu0 %2252, %v2219
          %v2254 = vpop.permute.xlu0 %2253
          %2257 = vset.pattern.permute.xlu0 0
          %2258 = vperm.xlu0 %2257, %v2220
          %v2259 = vpop.permute.xlu0 %2258
          %2262 = vset.pattern.permute.xlu0 0
          %2263 = vperm.xlu0 %2262, %v2221
          %v2264 = vpop.permute.xlu0 %2263
          %2267 = vset.pattern.permute.xlu0 0
          %2268 = vperm.xlu0 %2267, %v2222
          %v2269 = vpop.permute.xlu0 %2268
          %2272 = vset.pattern.permute.xlu0 0
          %2273 = vperm.xlu0 %2272, %v2223
          %v2274 = vpop.permute.xlu0 %2273
          %2277 = vset.pattern.permute.xlu0 0
          %2278 = vperm.xlu0 %2277, %v2224
          %v2279 = vpop.permute.xlu0 %2278
          %2282 = vset.pattern.permute.xlu0 0
          %2283 = vperm.xlu0 %2282, %v2225
          %v2284 = vpop.permute.xlu0 %2283
          %2287 = vset.pattern.permute.xlu0 0
          %2288 = vperm.xlu0 %2287, %v2226
          %v2289 = vpop.permute.xlu0 %2288
          %2292 = vset.pattern.permute.xlu0 0
          %2293 = vperm.xlu0 %2292, %v2227
          %v2294 = vpop.permute.xlu0 %2293
          %2297 = vset.pattern.permute.xlu0 0
          %2298 = vperm.xlu0 %2297, %v2228
          %v2299 = vpop.permute.xlu0 %2298
          %2302 = vset.pattern.permute.xlu0 0
          %2303 = vperm.xlu0 %2302, %v2229
          %v2304 = vpop.permute.xlu0 %2303
          %2307 = vset.pattern.permute.xlu0 0
          %2308 = vperm.xlu0 %2307, %v2230
          %v2309 = vpop.permute.xlu0 %2308
          %2312 = vset.pattern.permute.xlu0 0
          %2313 = vperm.xlu0 %2312, %v2231
          %v2314 = vpop.permute.xlu0 %2313
          %2317 = vset.pattern.permute.xlu0 0
          %2318 = vperm.xlu0 %2317, %v2232
          %v2319 = vpop.permute.xlu0 %2318
          %2322 = vset.pattern.permute.xlu0 0
          %2323 = vperm.xlu0 %2322, %v2233
          %v2324 = vpop.permute.xlu0 %2323
          %2327 = vset.pattern.permute.xlu0 0
          %2328 = vperm.xlu0 %2327, %v2234
          %v2329 = vpop.permute.xlu0 %2328
          %2332 = vset.pattern.permute.xlu0 0
          %2333 = vperm.xlu0 %2332, %v2235
          %v2334 = vpop.permute.xlu0 %2333
          %2337 = vset.pattern.permute.xlu0 0
          %2338 = vperm.xlu0 %2337, %v2236
          %v2339 = vpop.permute.xlu0 %2338
          %2342 = vset.pattern.permute.xlu0 0
          %2343 = vperm.xlu0 %2342, %v2237
          %v2344 = vpop.permute.xlu0 %2343
          %2347 = vset.pattern.permute.xlu0 0
          %2348 = vperm.xlu0 %2347, %v2238
          %v2349 = vpop.permute.xlu0 %2348
          %2352 = vset.pattern.permute.xlu0 0
          %2353 = vperm.xlu0 %2352, %v2239
          %v2354 = vpop.permute.xlu0 %2353
          %2357 = vset.pattern.permute.xlu0 0
          %2358 = vperm.xlu0 %2357, %v2240
          %v2359 = vpop.permute.xlu0 %2358
          %2362 = vset.pattern.permute.xlu0 0
          %2363 = vperm.xlu0 %2362, %v2241
          %v2364 = vpop.permute.xlu0 %2363
          %2367 = vset.pattern.permute.xlu0 0
          %2368 = vperm.xlu0 %2367, %v2242
          %v2369 = vpop.permute.xlu0 %2368
          %2372 = vset.pattern.permute.xlu0 0
          %2373 = vperm.xlu0 %2372, %v2243
          %v2374 = vpop.permute.xlu0 %2373
          %2377 = vset.pattern.permute.xlu0 0
          %2378 = vperm.xlu0 %2377, %v2244
          %v2379 = vpop.permute.xlu0 %2378
          %2382 = vset.pattern.permute.xlu0 0
          %2383 = vperm.xlu0 %2382, %v2245
          %v2384 = vpop.permute.xlu0 %2383
          %2387 = vset.pattern.permute.xlu0 0
          %2388 = vperm.xlu0 %2387, %v2246
          %v2389 = vpop.permute.xlu0 %2388
          %2392 = vset.pattern.permute.xlu0 0
          %2393 = vperm.xlu0 %2392, %v2247
          %v2394 = vpop.permute.xlu0 %2393
          %2397 = vset.pattern.permute.xlu0 0
          %2398 = vperm.xlu0 %2397, %v2248
          %v2399 = vpop.permute.xlu0 %2398
          %2402 = vset.pattern.permute.xlu0 0
          %2403 = vperm.xlu0 %2402, %v2249
          %v2404 = vpop.permute.xlu0 %2403
          %2407 = vset.pattern.permute.xlu0 0
          %2408 = vperm.xlu0 %2407, %v2250
          %v2409 = vpop.permute.xlu0 %2408
          %v2411 = vmul.f32 %v2187, %v2254
          %v2412 = vmul.f32 %v2188, %v2259
          %v2413 = vmul.f32 %v2189, %v2264
          %v2414 = vmul.f32 %v2190, %v2269
          %v2415 = vmul.f32 %v2191, %v2274
          %v2416 = vmul.f32 %v2192, %v2279
          %v2417 = vmul.f32 %v2193, %v2284
          %v2418 = vmul.f32 %v2194, %v2289
          %v2419 = vmul.f32 %v2195, %v2294
          %v2420 = vmul.f32 %v2196, %v2299
          %v2421 = vmul.f32 %v2197, %v2304
          %v2422 = vmul.f32 %v2198, %v2309
          %v2423 = vmul.f32 %v2199, %v2314
          %v2424 = vmul.f32 %v2200, %v2319
          %v2425 = vmul.f32 %v2201, %v2324
          %v2426 = vmul.f32 %v2202, %v2329
          %v2427 = vmul.f32 %v2203, %v2334
          %v2428 = vmul.f32 %v2204, %v2339
          %v2429 = vmul.f32 %v2205, %v2344
          %v2430 = vmul.f32 %v2206, %v2349
          %v2431 = vmul.f32 %v2207, %v2354
          %v2432 = vmul.f32 %v2208, %v2359
          %v2433 = vmul.f32 %v2209, %v2364
          %v2434 = vmul.f32 %v2210, %v2369
          %v2435 = vmul.f32 %v2211, %v2374
          %v2436 = vmul.f32 %v2212, %v2379
          %v2437 = vmul.f32 %v2213, %v2384
          %v2438 = vmul.f32 %v2214, %v2389
          %v2439 = vmul.f32 %v2215, %v2394
          %v2440 = vmul.f32 %v2216, %v2399
          %v2441 = vmul.f32 %v2217, %v2404
          %v2442 = vmul.f32 %v2218, %v2409
          %v2443 = vpack.c.bf16 %v2412, %v2411
          %v2444 = vpack.c.bf16 %v2414, %v2413
          %v2445 = vpack.c.bf16 %v2416, %v2415
          %v2446 = vpack.c.bf16 %v2418, %v2417
          %v2447 = vpack.c.bf16 %v2420, %v2419
          %v2448 = vpack.c.bf16 %v2422, %v2421
          %v2449 = vpack.c.bf16 %v2424, %v2423
          %v2450 = vpack.c.bf16 %v2426, %v2425
          %v2451 = vpack.c.bf16 %v2428, %v2427
          %v2452 = vpack.c.bf16 %v2430, %v2429
          %v2453 = vpack.c.bf16 %v2432, %v2431
          %v2454 = vpack.c.bf16 %v2434, %v2433
          %v2455 = vpack.c.bf16 %v2436, %v2435
          %v2456 = vpack.c.bf16 %v2438, %v2437
          %v2457 = vpack.c.bf16 %v2440, %v2439
          %v2458 = vpack.c.bf16 %v2442, %v2441
          %v2459 = vld [vmem:[#allocation9] sm:$0xf]
          %v2460 = vld [vmem:[#allocation9 + $0x4] sm:$0xf]
          %v2461 = vld [vmem:[#allocation9 + $0x8] sm:$0xf]
          %v2462 = vld [vmem:[#allocation9 + $0xc] sm:$0xf]
          %v2463 = vld [vmem:[#allocation9 + $0x10] sm:$0xf]
          %v2464 = vld [vmem:[#allocation9 + $0x14] sm:$0xf]
          %v2465 = vld [vmem:[#allocation9 + $0x18] sm:$0xf]
          %v2466 = vld [vmem:[#allocation9 + $0x1c] sm:$0xf]
          %v2467 = vld [vmem:[#allocation9 + $0x20] sm:$0xf]
          %v2468 = vld [vmem:[#allocation9 + $0x24] sm:$0xf]
          %v2469 = vld [vmem:[#allocation9 + $0x28] sm:$0xf]
          %v2470 = vld [vmem:[#allocation9 + $0x2c] sm:$0xf]
          %v2471 = vld [vmem:[#allocation9 + $0x30] sm:$0xf]
          %v2472 = vld [vmem:[#allocation9 + $0x34] sm:$0xf]
          %v2473 = vld [vmem:[#allocation9 + $0x38] sm:$0xf]
          %v2474 = vld [vmem:[#allocation9 + $0x3c] sm:$0xf]
          %s2475 = sshra.s32 %s2186, 4
          %s2476 = sand.u32 %s2186, 15
          %s2477 = smul.addr %s2475, 8
          %s2478 = scalar_lea.vmem [#allocation2], %s2477
          %v2479 = vld [vmem:[%s2478] sm:$0xff]
          %v2480 = vld [vmem:[%s2478 + $0x8] sm:$0xff]
          %v2481 = vld [vmem:[%s2478 + $0x10] sm:$0xff]
          %v2482 = vld [vmem:[%s2478 + $0x18] sm:$0xff]
          %v2483 = vld [vmem:[%s2478 + $0x20] sm:$0xff]
          %v2484 = vld [vmem:[%s2478 + $0x28] sm:$0xff]
          %v2485 = vld [vmem:[%s2478 + $0x30] sm:$0xff]
          %v2486 = vld [vmem:[%s2478 + $0x38] sm:$0xff]
          %v2487 = vld [vmem:[%s2478 + $0x40] sm:$0xff]
          %v2488 = vld [vmem:[%s2478 + $0x48] sm:$0xff]
          %v2489 = vld [vmem:[%s2478 + $0x50] sm:$0xff]
          %v2490 = vld [vmem:[%s2478 + $0x58] sm:$0xff]
          %v2491 = vld [vmem:[%s2478 + $0x60] sm:$0xff]
          %v2492 = vld [vmem:[%s2478 + $0x68] sm:$0xff]
          %v2493 = vld [vmem:[%s2478 + $0x70] sm:$0xff]
          %v2494 = vld [vmem:[%s2478 + $0x78] sm:$0xff]
          %v2495 = vld [vmem:[#allocation10] sm:$0xf]
          %v2496 = vld [vmem:[#allocation10 + $0x4] sm:$0xf]
          %v2497 = vld [vmem:[#allocation10 + $0x8] sm:$0xf]
          %v2498 = vld [vmem:[#allocation10 + $0xc] sm:$0xf]
          %v2499 = vld [vmem:[#allocation10 + $0x10] sm:$0xf]
          %v2500 = vld [vmem:[#allocation10 + $0x14] sm:$0xf]
          %v2501 = vld [vmem:[#allocation10 + $0x18] sm:$0xf]
          %v2502 = vld [vmem:[#allocation10 + $0x1c] sm:$0xf]
          %v2503 = vld [vmem:[#allocation10 + $0x20] sm:$0xf]
          %v2504 = vld [vmem:[#allocation10 + $0x24] sm:$0xf]
          %v2505 = vld [vmem:[#allocation10 + $0x28] sm:$0xf]
          %v2506 = vld [vmem:[#allocation10 + $0x2c] sm:$0xf]
          %v2507 = vld [vmem:[#allocation10 + $0x30] sm:$0xf]
          %v2508 = vld [vmem:[#allocation10 + $0x34] sm:$0xf]
          %v2509 = vld [vmem:[#allocation10 + $0x38] sm:$0xf]
          %v2510 = vld [vmem:[#allocation10 + $0x3c] sm:$0xf]
          %v2527 = vunpack.c.l.b16 %v2495
          %v2528 = vunpack.c.l.b16 %v2496
          %v2529 = vunpack.c.l.b16 %v2497
          %v2530 = vunpack.c.l.b16 %v2498
          %v2531 = vunpack.c.l.b16 %v2499
          %v2532 = vunpack.c.l.b16 %v2500
          %v2533 = vunpack.c.l.b16 %v2501
          %v2534 = vunpack.c.l.b16 %v2502
          %v2535 = vunpack.c.l.b16 %v2503
          %v2536 = vunpack.c.l.b16 %v2504
          %v2537 = vunpack.c.l.b16 %v2505
          %v2538 = vunpack.c.l.b16 %v2506
          %v2539 = vunpack.c.l.b16 %v2507
          %v2540 = vunpack.c.l.b16 %v2508
          %v2541 = vunpack.c.l.b16 %v2509
          %v2542 = vunpack.c.l.b16 %v2510
          %v2543 = vpack.c.b16 %v2528, %v2527
          %v2544 = vpack.c.b16 %v2530, %v2529
          %v2545 = vpack.c.b16 %v2532, %v2531
          %v2546 = vpack.c.b16 %v2534, %v2533
          %v2547 = vpack.c.b16 %v2536, %v2535
          %v2548 = vpack.c.b16 %v2538, %v2537
          %v2549 = vpack.c.b16 %v2540, %v2539
          %v2550 = vpack.c.b16 %v2542, %v2541
          %2559 = vmatprep.subr.bf16.mxu0 0
          %2560 = vmatpush1.bf16.msra.mxu0 %v2543
          %2561 = vmatprep.subr.bf16.mxu0 0
          %2562 = vmatpush1.bf16.msra.mxu0 %v2544
          %2563 = vmatprep.subr.bf16.mxu0 0
          %2564 = vmatpush1.bf16.msra.mxu0 %v2545
          %2565 = vmatprep.subr.bf16.mxu0 0
          %2566 = vmatpush1.bf16.msra.mxu0 %v2546
          %2567 = vmatprep.subr.bf16.mxu0 0
          %2568 = vmatpush1.bf16.msra.mxu0 %v2547
          %2569 = vmatprep.subr.bf16.mxu0 0
          %2570 = vmatpush1.bf16.msra.mxu0 %v2548
          %2571 = vmatprep.subr.bf16.mxu0 0
          %2572 = vmatpush1.bf16.msra.mxu0 %v2549
          %2573 = vmatprep.subr.bf16.mxu0 0
          %2574 = vmatpush1.bf16.msra.mxu0 %v2550
          %2575 = vmatprep.subr.bf16.mxu0 0
          %2576 = vmatpush1.bf16.msra.mxu0 0
          %2577 = vmatprep.subr.bf16.mxu0 0
          %2578 = vmatpush1.bf16.msra.mxu0 0
          %2579 = vmatprep.subr.bf16.mxu0 0
          %2580 = vmatpush1.bf16.msra.mxu0 0
          %2581 = vmatprep.subr.bf16.mxu0 0
          %2582 = vmatpush1.bf16.msra.mxu0 0
          %2583 = vmatprep.subr.bf16.mxu0 0
          %2584 = vmatpush1.bf16.msra.mxu0 0
          %2585 = vmatprep.subr.bf16.mxu0 0
          %2586 = vmatpush1.bf16.msra.mxu0 0
          %2587 = vmatprep.subr.bf16.mxu0 0
          %2588 = vmatpush1.bf16.msra.mxu0 0
          %2589 = vmatprep.subr.bf16.mxu0 0
          %2590 = vmatpush1.bf16.msra.mxu0 0
          %2591 = vmatprep.mubr.bf16.mxu0 0
          %2592 = vmatmul.mubr.bf16.gmra.mrb[0].mxu0 %v2479
          %v2593 = vpop.f32.mrb[0].mxu0
          %v2594 = vadd.f32 0.0, %v2593
          %v2595 = vpop.f32.mrb[0].mxu0
          %v2596 = vpop.f32.mrb[0].mxu0
          %v2597 = vadd.f32 0.0, %v2596
          %v2598 = vpop.f32.mrb[0].mxu0
          %2599 = vmatprep.mubr.bf16.mxu0 0
          %2600 = vmatmul.mubr.bf16.gmra.mrb[0].mxu0 %v2480
          %v2601 = vpop.f32.mrb[0].mxu0
          %v2602 = vadd.f32 0.0, %v2601
          %v2603 = vpop.f32.mrb[0].mxu0
          %v2604 = vpop.f32.mrb[0].mxu0
          %v2605 = vadd.f32 0.0, %v2604
          %v2606 = vpop.f32.mrb[0].mxu0
          %2607 = vmatprep.mubr.bf16.mxu0 0
          %2608 = vmatmul.mubr.bf16.gmra.mrb[0].mxu0 %v2481
          %v2609 = vpop.f32.mrb[0].mxu0
          %v2610 = vadd.f32 0.0, %v2609
          %v2611 = vpop.f32.mrb[0].mxu0
          %v2612 = vpop.f32.mrb[0].mxu0
          %v2613 = vadd.f32 0.0, %v2612
          %v2614 = vpop.f32.mrb[0].mxu0
          %2615 = vmatprep.mubr.bf16.mxu0 0
          %2616 = vmatmul.mubr.bf16.gmra.mrb[0].mxu0 %v2482
          %v2617 = vpop.f32.mrb[0].mxu0
          %v2618 = vadd.f32 0.0, %v2617
          %v2619 = vpop.f32.mrb[0].mxu0
          %v2620 = vpop.f32.mrb[0].mxu0
          %v2621 = vadd.f32 0.0, %v2620
          %v2622 = vpop.f32.mrb[0].mxu0
          %2623 = vmatprep.mubr.bf16.mxu0 0
          %2624 = vmatmul.mubr.bf16.gmra.mrb[0].mxu0 %v2483
          %v2625 = vpop.f32.mrb[0].mxu0
          %v2626 = vadd.f32 0.0, %v2625
          %v2627 = vpop.f32.mrb[0].mxu0
          %v2628 = vpop.f32.mrb[0].mxu0
          %v2629 = vadd.f32 0.0, %v2628
          %v2630 = vpop.f32.mrb[0].mxu0
          %2631 = vmatprep.mubr.bf16.mxu0 0
          %2632 = vmatmul.mubr.bf16.gmra.mrb[0].mxu0 %v2484
          %v2633 = vpop.f32.mrb[0].mxu0
          %v2634 = vadd.f32 0.0, %v2633
          %v2635 = vpop.f32.mrb[0].mxu0
          %v2636 = vpop.f32.mrb[0].mxu0
          %v2637 = vadd.f32 0.0, %v2636
          %v2638 = vpop.f32.mrb[0].mxu0
          %2639 = vmatprep.mubr.bf16.mxu0 0
          %2640 = vmatmul.mubr.bf16.gmra.mrb[0].mxu0 %v2485
          %v2641 = vpop.f32.mrb[0].mxu0
          %v2642 = vadd.f32 0.0, %v2641
          %v2643 = vpop.f32.mrb[0].mxu0
          %v2644 = vpop.f32.mrb[0].mxu0
          %v2645 = vadd.f32 0.0, %v2644
          %v2646 = vpop.f32.mrb[0].mxu0
          %2647 = vmatprep.mubr.bf16.mxu0 0
          %2648 = vmatmul.mubr.bf16.gmra.mrb[0].mxu0 %v2486
          %v2649 = vpop.f32.mrb[0].mxu0
          %v2650 = vadd.f32 0.0, %v2649
          %v2651 = vpop.f32.mrb[0].mxu0
          %v2652 = vpop.f32.mrb[0].mxu0
          %v2653 = vadd.f32 0.0, %v2652
          %v2654 = vpop.f32.mrb[0].mxu0
          %2655 = vmatprep.mubr.bf16.mxu0 0
          %2656 = vmatmul.mubr.bf16.gmra.mrb[0].mxu0 %v2487
          %v2657 = vpop.f32.mrb[0].mxu0
          %v2658 = vadd.f32 0.0, %v2657
          %v2659 = vpop.f32.mrb[0].mxu0
          %v2660 = vpop.f32.mrb[0].mxu0
          %v2661 = vadd.f32 0.0, %v2660
          %v2662 = vpop.f32.mrb[0].mxu0
          %2663 = vmatprep.mubr.bf16.mxu0 0
          %2664 = vmatmul.mubr.bf16.gmra.mrb[0].mxu0 %v2488
          %v2665 = vpop.f32.mrb[0].mxu0
          %v2666 = vadd.f32 0.0, %v2665
          %v2667 = vpop.f32.mrb[0].mxu0
          %v2668 = vpop.f32.mrb[0].mxu0
          %v2669 = vadd.f32 0.0, %v2668
          %v2670 = vpop.f32.mrb[0].mxu0
          %2671 = vmatprep.mubr.bf16.mxu0 0
          %2672 = vmatmul.mubr.bf16.gmra.mrb[0].mxu0 %v2489
          %v2673 = vpop.f32.mrb[0].mxu0
          %v2674 = vadd.f32 0.0, %v2673
          %v2675 = vpop.f32.mrb[0].mxu0
          %v2676 = vpop.f32.mrb[0].mxu0
          %v2677 = vadd.f32 0.0, %v2676
          %v2678 = vpop.f32.mrb[0].mxu0
          %2679 = vmatprep.mubr.bf16.mxu0 0
          %2680 = vmatmul.mubr.bf16.gmra.mrb[0].mxu0 %v2490
          %v2681 = vpop.f32.mrb[0].mxu0
          %v2682 = vadd.f32 0.0, %v2681
          %v2683 = vpop.f32.mrb[0].mxu0
          %v2684 = vpop.f32.mrb[0].mxu0
          %v2685 = vadd.f32 0.0, %v2684
          %v2686 = vpop.f32.mrb[0].mxu0
          %2687 = vmatprep.mubr.bf16.mxu0 0
          %2688 = vmatmul.mubr.bf16.gmra.mrb[0].mxu0 %v2491
          %v2689 = vpop.f32.mrb[0].mxu0
          %v2690 = vadd.f32 0.0, %v2689
          %v2691 = vpop.f32.mrb[0].mxu0
          %v2692 = vpop.f32.mrb[0].mxu0
          %v2693 = vadd.f32 0.0, %v2692
          %v2694 = vpop.f32.mrb[0].mxu0
          %2695 = vmatprep.mubr.bf16.mxu0 0
          %2696 = vmatmul.mubr.bf16.gmra.mrb[0].mxu0 %v2492
          %v2697 = vpop.f32.mrb[0].mxu0
          %v2698 = vadd.f32 0.0, %v2697
          %v2699 = vpop.f32.mrb[0].mxu0
          %v2700 = vpop.f32.mrb[0].mxu0
          %v2701 = vadd.f32 0.0, %v2700
          %v2702 = vpop.f32.mrb[0].mxu0
          %2703 = vmatprep.mubr.bf16.mxu0 0
          %2704 = vmatmul.mubr.bf16.gmra.mrb[0].mxu0 %v2493
          %v2705 = vpop.f32.mrb[0].mxu0
          %v2706 = vadd.f32 0.0, %v2705
          %v2707 = vpop.f32.mrb[0].mxu0
          %v2708 = vpop.f32.mrb[0].mxu0
          %v2709 = vadd.f32 0.0, %v2708
          %v2710 = vpop.f32.mrb[0].mxu0
          %2711 = vmatprep.mubr.bf16.mxu0 0
          %2712 = vmatmul.mubr.bf16.gmra.mrb[0].mxu0 %v2494
          %v2713 = vpop.f32.mrb[0].mxu0
          %v2714 = vadd.f32 0.0, %v2713
          %v2715 = vpop.f32.mrb[0].mxu0
          %v2716 = vpop.f32.mrb[0].mxu0
          %v2717 = vadd.f32 0.0, %v2716
          %v2718 = vpop.f32.mrb[0].mxu0
          %2719 = vdwg.mxu0
          %v2736 = vunpack.c.l.b16 %v2459
          %v2737 = vunpack.c.l.b16 %v2460
          %v2738 = vunpack.c.l.b16 %v2461
          %v2739 = vunpack.c.l.b16 %v2462
          %v2740 = vunpack.c.l.b16 %v2463
          %v2741 = vunpack.c.l.b16 %v2464
          %v2742 = vunpack.c.l.b16 %v2465
          %v2743 = vunpack.c.l.b16 %v2466
          %v2744 = vunpack.c.l.b16 %v2467
          %v2745 = vunpack.c.l.b16 %v2468
          %v2746 = vunpack.c.l.b16 %v2469
          %v2747 = vunpack.c.l.b16 %v2470
          %v2748 = vunpack.c.l.b16 %v2471
          %v2749 = vunpack.c.l.b16 %v2472
          %v2750 = vunpack.c.l.b16 %v2473
          %v2751 = vunpack.c.l.b16 %v2474
          %v2752 = vpack.c.b16 %v2737, %v2736
          %v2753 = vpack.c.b16 %v2739, %v2738
          %v2754 = vpack.c.b16 %v2741, %v2740
          %v2755 = vpack.c.b16 %v2743, %v2742
          %v2756 = vpack.c.b16 %v2745, %v2744
          %v2757 = vpack.c.b16 %v2747, %v2746
          %v2758 = vpack.c.b16 %v2749, %v2748
          %v2759 = vpack.c.b16 %v2751, %v2750
          %2768 = vmatprep.subr.bf16.mxu0 0
          %2769 = vmatpush1.bf16.msra.mxu0 %v2752
          %2770 = vmatprep.subr.bf16.mxu0 0
          %2771 = vmatpush1.bf16.msra.mxu0 %v2753
          %2772 = vmatprep.subr.bf16.mxu0 0
          %2773 = vmatpush1.bf16.msra.mxu0 %v2754
          %2774 = vmatprep.subr.bf16.mxu0 0
          %2775 = vmatpush1.bf16.msra.mxu0 %v2755
          %2776 = vmatprep.subr.bf16.mxu0 0
          %2777 = vmatpush1.bf16.msra.mxu0 %v2756
          %2778 = vmatprep.subr.bf16.mxu0 0
          %2779 = vmatpush1.bf16.msra.mxu0 %v2757
          %2780 = vmatprep.subr.bf16.mxu0 0
          %2781 = vmatpush1.bf16.msra.mxu0 %v2758
          %2782 = vmatprep.subr.bf16.mxu0 0
          %2783 = vmatpush1.bf16.msra.mxu0 %v2759
          %2784 = vmatprep.subr.bf16.mxu0 0
          %2785 = vmatpush1.bf16.msra.mxu0 0
          %2786 = vmatprep.subr.bf16.mxu0 0
          %2787 = vmatpush1.bf16.msra.mxu0 0
          %2788 = vmatprep.subr.bf16.mxu0 0
          %2789 = vmatpush1.bf16.msra.mxu0 0
          %2790 = vmatprep.subr.bf16.mxu0 0
          %2791 = vmatpush1.bf16.msra.mxu0 0
          %2792 = vmatprep.subr.bf16.mxu0 0
          %2793 = vmatpush1.bf16.msra.mxu0 0
          %2794 = vmatprep.subr.bf16.mxu0 0
          %2795 = vmatpush1.bf16.msra.mxu0 0
          %2796 = vmatprep.subr.bf16.mxu0 0
          %2797 = vmatpush1.bf16.msra.mxu0 0
          %2798 = vmatprep.subr.bf16.mxu0 0
          %2799 = vmatpush1.bf16.msra.mxu0 0
          %2800 = vmatprep.mubr.bf16.mxu0 0
          %2801 = vmatmul.mubr.bf16.gmra.mrb[0].mxu0 %v2443
          %v2802 = vpop.f32.mrb[0].mxu0
          %v2803 = vadd.f32 %v2594, %v2802
          %v2804 = vpop.f32.mrb[0].mxu0
          %v2805 = vpop.f32.mrb[0].mxu0
          %v2806 = vadd.f32 %v2597, %v2805
          %v2807 = vpop.f32.mrb[0].mxu0
          %2808 = vmatprep.mubr.bf16.mxu0 0
          %2809 = vmatmul.mubr.bf16.gmra.mrb[0].mxu0 %v2444
          %v2810 = vpop.f32.mrb[0].mxu0
          %v2811 = vadd.f32 %v2602, %v2810
          %v2812 = vpop.f32.mrb[0].mxu0
          %v2813 = vpop.f32.mrb[0].mxu0
          %v2814 = vadd.f32 %v2605, %v2813
          %v2815 = vpop.f32.mrb[0].mxu0
          %2816 = vmatprep.mubr.bf16.mxu0 0
          %2817 = vmatmul.mubr.bf16.gmra.mrb[0].mxu0 %v2445
          %v2818 = vpop.f32.mrb[0].mxu0
          %v2819 = vadd.f32 %v2610, %v2818
          %v2820 = vpop.f32.mrb[0].mxu0
          %v2821 = vpop.f32.mrb[0].mxu0
          %v2822 = vadd.f32 %v2613, %v2821
          %v2823 = vpop.f32.mrb[0].mxu0
          %2824 = vmatprep.mubr.bf16.mxu0 0
          %2825 = vmatmul.mubr.bf16.gmra.mrb[0].mxu0 %v2446
          %v2826 = vpop.f32.mrb[0].mxu0
          %v2827 = vadd.f32 %v2618, %v2826
          %v2828 = vpop.f32.mrb[0].mxu0
          %v2829 = vpop.f32.mrb[0].mxu0
          %v2830 = vadd.f32 %v2621, %v2829
          %v2831 = vpop.f32.mrb[0].mxu0
          %2832 = vmatprep.mubr.bf16.mxu0 0
          %2833 = vmatmul.mubr.bf16.gmra.mrb[0].mxu0 %v2447
          %v2834 = vpop.f32.mrb[0].mxu0
          %v2835 = vadd.f32 %v2626, %v2834
          %v2836 = vpop.f32.mrb[0].mxu0
          %v2837 = vpop.f32.mrb[0].mxu0
          %v2838 = vadd.f32 %v2629, %v2837
          %v2839 = vpop.f32.mrb[0].mxu0
          %2840 = vmatprep.mubr.bf16.mxu0 0
          %2841 = vmatmul.mubr.bf16.gmra.mrb[0].mxu0 %v2448
          %v2842 = vpop.f32.mrb[0].mxu0
          %v2843 = vadd.f32 %v2634, %v2842
          %v2844 = vpop.f32.mrb[0].mxu0
          %v2845 = vpop.f32.mrb[0].mxu0
          %v2846 = vadd.f32 %v2637, %v2845
          %v2847 = vpop.f32.mrb[0].mxu0
          %2848 = vmatprep.mubr.bf16.mxu0 0
          %2849 = vmatmul.mubr.bf16.gmra.mrb[0].mxu0 %v2449
          %v2850 = vpop.f32.mrb[0].mxu0
          %v2851 = vadd.f32 %v2642, %v2850
          %v2852 = vpop.f32.mrb[0].mxu0
          %v2853 = vpop.f32.mrb[0].mxu0
          %v2854 = vadd.f32 %v2645, %v2853
          %v2855 = vpop.f32.mrb[0].mxu0
          %2856 = vmatprep.mubr.bf16.mxu0 0
          %2857 = vmatmul.mubr.bf16.gmra.mrb[0].mxu0 %v2450
          %v2858 = vpop.f32.mrb[0].mxu0
          %v2859 = vadd.f32 %v2650, %v2858
          %v2860 = vpop.f32.mrb[0].mxu0
          %v2861 = vpop.f32.mrb[0].mxu0
          %v2862 = vadd.f32 %v2653, %v2861
          %v2863 = vpop.f32.mrb[0].mxu0
          %2864 = vmatprep.mubr.bf16.mxu0 0
          %2865 = vmatmul.mubr.bf16.gmra.mrb[0].mxu0 %v2451
          %v2866 = vpop.f32.mrb[0].mxu0
          %v2867 = vadd.f32 %v2658, %v2866
          %v2868 = vpop.f32.mrb[0].mxu0
          %v2869 = vpop.f32.mrb[0].mxu0
          %v2870 = vadd.f32 %v2661, %v2869
          %v2871 = vpop.f32.mrb[0].mxu0
          %2872 = vmatprep.mubr.bf16.mxu0 0
          %2873 = vmatmul.mubr.bf16.gmra.mrb[0].mxu0 %v2452
          %v2874 = vpop.f32.mrb[0].mxu0
          %v2875 = vadd.f32 %v2666, %v2874
          %v2876 = vpop.f32.mrb[0].mxu0
          %v2877 = vpop.f32.mrb[0].mxu0
          %v2878 = vadd.f32 %v2669, %v2877
          %v2879 = vpop.f32.mrb[0].mxu0
          %2880 = vmatprep.mubr.bf16.mxu0 0
          %2881 = vmatmul.mubr.bf16.gmra.mrb[0].mxu0 %v2453
          %v2882 = vpop.f32.mrb[0].mxu0
          %v2883 = vadd.f32 %v2674, %v2882
          %v2884 = vpop.f32.mrb[0].mxu0
          %v2885 = vpop.f32.mrb[0].mxu0
          %v2886 = vadd.f32 %v2677, %v2885
          %v2887 = vpop.f32.mrb[0].mxu0
          %2888 = vmatprep.mubr.bf16.mxu0 0
          %2889 = vmatmul.mubr.bf16.gmra.mrb[0].mxu0 %v2454
          %v2890 = vpop.f32.mrb[0].mxu0
          %v2891 = vadd.f32 %v2682, %v2890
          %v2892 = vpop.f32.mrb[0].mxu0
          %v2893 = vpop.f32.mrb[0].mxu0
          %v2894 = vadd.f32 %v2685, %v2893
          %v2895 = vpop.f32.mrb[0].mxu0
          %2896 = vmatprep.mubr.bf16.mxu0 0
          %2897 = vmatmul.mubr.bf16.gmra.mrb[0].mxu0 %v2455
          %v2898 = vpop.f32.mrb[0].mxu0
          %v2899 = vadd.f32 %v2690, %v2898
          %v2900 = vpop.f32.mrb[0].mxu0
          %v2901 = vpop.f32.mrb[0].mxu0
          %v2902 = vadd.f32 %v2693, %v2901
          %v2903 = vpop.f32.mrb[0].mxu0
          %2904 = vmatprep.mubr.bf16.mxu0 0
          %2905 = vmatmul.mubr.bf16.gmra.mrb[0].mxu0 %v2456
          %v2906 = vpop.f32.mrb[0].mxu0
          %v2907 = vadd.f32 %v2698, %v2906
          %v2908 = vpop.f32.mrb[0].mxu0
          %v2909 = vpop.f32.mrb[0].mxu0
          %v2910 = vadd.f32 %v2701, %v2909
          %v2911 = vpop.f32.mrb[0].mxu0
          %2912 = vmatprep.mubr.bf16.mxu0 0
          %2913 = vmatmul.mubr.bf16.gmra.mrb[0].mxu0 %v2457
          %v2914 = vpop.f32.mrb[0].mxu0
          %v2915 = vadd.f32 %v2706, %v2914
          %v2916 = vpop.f32.mrb[0].mxu0
          %v2917 = vpop.f32.mrb[0].mxu0
          %v2918 = vadd.f32 %v2709, %v2917
          %v2919 = vpop.f32.mrb[0].mxu0
          %2920 = vmatprep.mubr.bf16.mxu0 0
          %2921 = vmatmul.mubr.bf16.gmra.mrb[0].mxu0 %v2458
          %v2922 = vpop.f32.mrb[0].mxu0
          %v2923 = vadd.f32 %v2714, %v2922
          %v2924 = vpop.f32.mrb[0].mxu0
          %v2925 = vpop.f32.mrb[0].mxu0
          %v2926 = vadd.f32 %v2717, %v2925
          %v2927 = vpop.f32.mrb[0].mxu0
          %2928 = vdwg.mxu0
          %v2929 = vld [vmem:[%s8] sm:$0x1]
          %v2931 = vlaneseq
          %v2932 = vshrl.u32 %v2931, 7
          %v2933 = vsub.s32 0, %v2932
          %v2934 = vrot.slane %v2929, %v2933
          %v2936 = vadd.f32 %v2803, %v2934
          %v2937 = vadd.f32 %v2806, %v2934
          %v2938 = vadd.f32 %v2811, %v2934
          %v2939 = vadd.f32 %v2814, %v2934
          %v2940 = vadd.f32 %v2819, %v2934
          %v2941 = vadd.f32 %v2822, %v2934
          %v2942 = vadd.f32 %v2827, %v2934
          %v2943 = vadd.f32 %v2830, %v2934
          %v2944 = vadd.f32 %v2835, %v2934
          %v2945 = vadd.f32 %v2838, %v2934
          %v2946 = vadd.f32 %v2843, %v2934
          %v2947 = vadd.f32 %v2846, %v2934
          %v2948 = vadd.f32 %v2851, %v2934
          %v2949 = vadd.f32 %v2854, %v2934
          %v2950 = vadd.f32 %v2859, %v2934
          %v2951 = vadd.f32 %v2862, %v2934
          %v2952 = vadd.f32 %v2867, %v2934
          %v2953 = vadd.f32 %v2870, %v2934
          %v2954 = vadd.f32 %v2875, %v2934
          %v2955 = vadd.f32 %v2878, %v2934
          %v2956 = vadd.f32 %v2883, %v2934
          %v2957 = vadd.f32 %v2886, %v2934
          %v2958 = vadd.f32 %v2891, %v2934
          %v2959 = vadd.f32 %v2894, %v2934
          %v2960 = vadd.f32 %v2899, %v2934
          %v2961 = vadd.f32 %v2902, %v2934
          %v2962 = vadd.f32 %v2907, %v2934
          %v2963 = vadd.f32 %v2910, %v2934
          %v2964 = vadd.f32 %v2915, %v2934
          %v2965 = vadd.f32 %v2918, %v2934
          %v2966 = vadd.f32 %v2923, %v2934
          %v2967 = vadd.f32 %v2926, %v2934
          %2968 = vst [vmem:[%s435] sm:$0xff] %v2936
          %2969 = vst [vmem:[%s435 + $0x8] sm:$0xff] %v2937
          %2970 = vst [vmem:[%s435 + $0x10] sm:$0xff] %v2938
          %2971 = vst [vmem:[%s435 + $0x18] sm:$0xff] %v2939
          %2972 = vst [vmem:[%s435 + $0x20] sm:$0xff] %v2940
          %2973 = vst [vmem:[%s435 + $0x28] sm:$0xff] %v2941
          %2974 = vst [vmem:[%s435 + $0x30] sm:$0xff] %v2942
          %2975 = vst [vmem:[%s435 + $0x38] sm:$0xff] %v2943
          %2976 = vst [vmem:[%s435 + $0x40] sm:$0xff] %v2944
          %2977 = vst [vmem:[%s435 + $0x48] sm:$0xff] %v2945
          %2978 = vst [vmem:[%s435 + $0x50] sm:$0xff] %v2946
          %2979 = vst [vmem:[%s435 + $0x58] sm:$0xff] %v2947
          %2980 = vst [vmem:[%s435 + $0x60] sm:$0xff] %v2948
          %2981 = vst [vmem:[%s435 + $0x68] sm:$0xff] %v2949
          %2982 = vst [vmem:[%s435 + $0x70] sm:$0xff] %v2950
          %2983 = vst [vmem:[%s435 + $0x78] sm:$0xff] %v2951
          %2984 = vst [vmem:[%s435 + $0x80] sm:$0xff] %v2952
          %2985 = vst [vmem:[%s435 + $0x88] sm:$0xff] %v2953
          %2986 = vst [vmem:[%s435 + $0x90] sm:$0xff] %v2954
          %2987 = vst [vmem:[%s435 + $0x98] sm:$0xff] %v2955
          %2988 = vst [vmem:[%s435 + $0xa0] sm:$0xff] %v2956
          %2989 = vst [vmem:[%s435 + $0xa8] sm:$0xff] %v2957
          %2990 = vst [vmem:[%s435 + $0xb0] sm:$0xff] %v2958
          %2991 = vst [vmem:[%s435 + $0xb8] sm:$0xff] %v2959
          %2992 = vst [vmem:[%s435 + $0xc0] sm:$0xff] %v2960
          %2993 = vst [vmem:[%s435 + $0xc8] sm:$0xff] %v2961
          %2994 = vst [vmem:[%s435 + $0xd0] sm:$0xff] %v2962
          %2995 = vst [vmem:[%s435 + $0xd8] sm:$0xff] %v2963
          %2996 = vst [vmem:[%s435 + $0xe0] sm:$0xff] %v2964
          %2997 = vst [vmem:[%s435 + $0xe8] sm:$0xff] %v2965
          %2998 = vst [vmem:[%s435 + $0xf0] sm:$0xff] %v2966
          %2999 = vst [vmem:[%s435 + $0xf8] sm:$0xff] %v2967
        $region92: #{tpu_custom_call.1} parent=55 // pred_fallthru
          _
        %s3000 = sand.u32 %s256, 1
        %s3001 = scalar_lea.sflag [#allocation6], %s3000
        %s3002 = sand.u32 %s256, 1
        %s3003 = smul.addr %s3002, 256
        %s3004 = scalar_lea.vmem [#allocation12], %s3003
        // Predicated region
        $region93: #{tpu_custom_call.1} parent=55 // pred_check
          %p3005 = pneg %p266
        $region94: #{tpu_custom_call.1} parent=55 // pred_check_branch
          %3007 = sbr.rel (%p3005) target = $region96
        $region95: #{tpu_custom_call.1} parent=55 // pred_region
          %s3008 = smul.u32 %s32, %s31
          %s3009 = smul.u32 32, %s3008
          %s3011 = ssub.s32 4096, 4096
          %3012 = vsyncadd %s3001, %s3011
          %s3013 = smul.addr %s3009, 128
          %s3014 = scalar_lea.hbm %s9, %s3013
          %s3015 = sshll.u32 %s3004, 4
          %s3016 = int_to_ptr.vmem [resolvable:$true] %s3015
          %3021 = dma.vmem_to_hbm [thread:$0]  %s3016, 4096, %s3014, %s3001, 128, 128, 8
        $region96: #{tpu_custom_call.1} parent=55 // pred_fallthru
          _
      $region56: #{tpu_custom_call.1} parent=5 // pred_fallthru
        _
      %p3022 = scmp.le.s32.totalorder 2, %s21
      // Predicated region
      $region97: #{tpu_custom_call.1} parent=5 // pred_check
        %p3023 = pneg %p3022
      $region98: #{tpu_custom_call.1} parent=5 // pred_check_branch
        %3025 = sbr.rel (%p3023) target = $region100
      $region99: #{tpu_custom_call.1} parent=5 // pred_region
        %s3026 = ssub.s32 %s21, 2
        // Predicated region
        $region101: #{tpu_custom_call.1} parent=99 // pred_check
          %p3027 = pneg %p272
        $region102: #{tpu_custom_call.1} parent=99 // pred_check_branch
          %3029 = sbr.rel (%p3027) target = $region104
        $region103: #{tpu_custom_call.1} parent=99 // pred_region
          %s3030 = sand.u32 %s257, 1
          %s3031 = scalar_lea.sflag [#allocation6], %s3030
          %s3032 = sand.u32 %s257, 1
          %s3033 = smul.addr %s3032, 256
          %s3034 = scalar_lea.vmem [#allocation12], %s3033
          %3035 = dma.done %s3031, 4096
        $region104: #{tpu_custom_call.1} parent=99 // pred_fallthru
          _
      $region100: #{tpu_custom_call.1} parent=5 // pred_fallthru
        _
    $region6: #{tpu_custom_call.1} parent=1 // loop_footer
      %s25 = sadd.s32 1, %s21
    $region7: #{tpu_custom_call.1} parent=1 // loop_footer_branch
      %20 = sbr.rel target = $region3
    $region8: #{tpu_custom_call.1} parent=1 // loop_exit
      _
    %3036 = vsyncpa [#allocation5], 1
    %s3037 = scalar_lea.sflag [#allocation5], 1
    %3038 = vsyncpa %s3037, 1
    %3039 = vsyncpa [#allocation8], 1
    %3040 = vsyncpa [#allocation11], 1
    %3041 = vsyncpa [#allocation6], 1
    %s3042 = scalar_lea.sflag [#allocation6], 1
    %3043 = vsyncpa %s3042, 1

</llo_original>
